<compile_context>
chip_gen: v6e
topology: v6e:2x2x1
jax: 0.10.0
libtpu: 0.0.40
codegen_flags: <defaults>
</compile_context>

<pallas_src>
import math

import jax
import jax.numpy as jnp
from jax.experimental import pallas as pl
from jax.experimental.pallas import tpu as pltpu  # noqa: F401  (not needed for the grid-less call)

D_MODEL = 32
D_FFN = 64
NHEAD = 4
HEAD_DIM = D_MODEL // NHEAD
EPS = 1e-5          # nn.LayerNorm default
NEG_INF = -1e9      # masked_fill value in the PyTorch module


def _layernorm(x, w, b):
    mu = jnp.mean(x, axis=-1, keepdims=True)
    var = jnp.mean((x - mu) ** 2, axis=-1, keepdims=True)
    return (x - mu) * jax.lax.rsqrt(var + EPS) * w + b


def _attention_core(q, k, v, wo_g, bo, mask):
    """Scaled-dot-product attention + output projection.

    q: (B*Lq, D); k, v: (B*Lk, D); wo_g: (B*H, dh, D) (per-head output weights,
    tiled over batch); bo: (1, D); mask: (B, Lq, Lk) int (0 = masked out).
    Returns (B*Lq, D).
    """
    B, Lq, Lk = mask.shape
    scale = 1.0 / math.sqrt(HEAD_DIM)

    # Build (B*H, L, dh) head-major stacks (g = b*H + h). Static slices + a
    # leading-dim stack; no lane-dim concatenate anywhere.
    def to_heads(t, L):
        return jnp.stack(
            [t[b * L:(b + 1) * L, h * HEAD_DIM:(h + 1) * HEAD_DIM]
             for b in range(B) for h in range(NHEAD)], axis=0)

    qh = to_heads(q, Lq)                                  # (B*H, Lq, dh)
    kh = to_heads(k, Lk)                                  # (B*H, Lk, dh)
    vh = to_heads(v, Lk)                                  # (B*H, Lk, dh)
    mg = jnp.concatenate(
        [mask[b:b + 1] for b in range(B) for _ in range(NHEAD)], axis=0)  # (B*H, Lq, Lk)

    s = jnp.einsum("gqd,gkd->gqk", qh, kh,
                   preferred_element_type=jnp.float32) * scale
    s = jnp.where(mg == 0, NEG_INF, s)
    # NOTE: a fully-masked row yields a uniform softmax (same as torch masked_fill + softmax).
    m = jnp.max(s, axis=-1, keepdims=True)
    e = jnp.exp(s - m)
    p = e * pl.reciprocal(jnp.sum(e, axis=-1, keepdims=True), approx=True)
    pv = jnp.einsum("gqk,gkd->gqd", p, vh,
                    preferred_element_type=jnp.float32)   # (B*H, Lq, dh)
    og = jnp.einsum("gqd,gdm->gqm", pv, wo_g,
                    preferred_element_type=jnp.float32)   # (B*H, Lq, D)
    # Sum heads within each batch; stack batches along rows (sublane concat only).
    out = jnp.concatenate(
        [jnp.sum(og[b * NHEAD:(b + 1) * NHEAD], axis=0) for b in range(B)], axis=0)
    return out + bo                                       # (B*Lq, D)


def decoder_layer_kernel(x_ref, mem_ref, tgt_mask_ref, src_mask_ref,
                         qkv_w_ref, wo_sa_ref, wo_ca_ref,
                         ff_w1_ref, ff_w2_ref, vec_ref, out_ref):
    D = D_MODEL
    x = x_ref[...].astype(jnp.float32)       # (B*Lq, D)
    mem = mem_ref[...].astype(jnp.float32)   # (B*Lk, D)
    tgt_mask = tgt_mask_ref[...]             # (B, Lq, Lq)
    src_mask = src_mask_ref[...]             # (B, Lq, Lk)
    vec = vec_ref[...]                       # (11, 3D) packed LN params + biases

    n1w, n1b = vec[0:1, :D], vec[1:2, :D]
    n2w, n2b = vec[2:3, :D], vec[3:4, :D]
    b_sa_qkv = vec[4:5, :3 * D]
    bo_sa = vec[5:6, :D]
    b_ca_q = vec[6:7, :D]
    b_ca_kv = vec[7:8, :2 * D]
    bo_ca = vec[8:9, :D]
    ff_b1 = vec[9:10, :D_FFN]
    ff_b2 = vec[10:11, :D]

    # ---- sublayer1: x + self_attn(norm1(x), norm1(x), norm1(x), tgt_mask) ----
    nx = _layernorm(x, n1w, n1b)
    qkv = jnp.dot(nx, qkv_w_ref[0], preferred_element_type=jnp.float32) + b_sa_qkv  # (B*Lq, 3D)
    x = x + _attention_core(qkv[:, :D], qkv[:, D:2 * D], qkv[:, 2 * D:],
                            wo_sa_ref[...], bo_sa, tgt_mask)

    # ---- sublayer2: x + src_attn(norm2(x), memory, memory, src_mask) ----
    nx = _layernorm(x, n2w, n2b)
    w_ca = qkv_w_ref[1]                                                  # (D, 3D)
    q = jnp.dot(nx, w_ca[:, :D], preferred_element_type=jnp.float32) + b_ca_q
    kv = jnp.dot(mem, w_ca[:, D:], preferred_element_type=jnp.float32) + b_ca_kv   # (B*Lk, 2D)
    x = x + _attention_core(q, kv[:, :D], kv[:, D:],
                            wo_ca_ref[...], bo_ca, src_mask)

    # ---- FFN through the REUSED sublayer2 LayerNorm (original module's quirk;
    #      sublayer3 is unused) ----
    nx = _layernorm(x, n2w, n2b)
    h = jnp.maximum(
        jnp.dot(nx, ff_w1_ref[...], preferred_element_type=jnp.float32) + ff_b1, 0.0)
    x = x + jnp.dot(h, ff_w2_ref[...], preferred_element_type=jnp.float32) + ff_b2

    out_ref[...] = x.astype(out_ref.dtype)


def transformer_decoder_layer(x, memory, src_mask, tgt_mask, params):
    """x: (B, Lq, D), memory: (B, Lk, D), masks: int (B, Lq, Lq)/(B, Lq, Lk)."""
    B, Lq, D = x.shape
    Lk = memory.shape[1]
    p = params

    # ---- wrapper-side parameter packing (tiny, fused away by XLA) ----
    qkv_w = jnp.stack([
        jnp.concatenate([p["sa_wq"], p["sa_wk"], p["sa_wv"]], axis=1),   # self: fused QKV
        jnp.concatenate([p["ca_wq"], p["ca_wk"], p["ca_wv"]], axis=1),   # cross: Q | fused KV
    ], axis=0)                                                           # (2, D, 3D)

    # per-head output projection weights, tiled over batch: (B*H, dh, D)
    wo_sa_g = jnp.tile(p["sa_wo"].reshape(NHEAD, HEAD_DIM, D), (B, 1, 1))
    wo_ca_g = jnp.tile(p["ca_wo"].reshape(NHEAD, HEAD_DIM, D), (B, 1, 1))

    width = 3 * D

    def pad_row(v):
        return jnp.pad(v, ((0, 0), (0, width - v.shape[1])))

    vec_pack = jnp.concatenate([pad_row(r) for r in (
        p["n1_w"], p["n1_b"], p["n2_w"], p["n2_b"],
        jnp.concatenate([p["sa_bq"], p["sa_bk"], p["sa_bv"]], axis=1),
        p["sa_bo"],
        p["ca_bq"],
        jnp.concatenate([p["ca_bk"], p["ca_bv"]], axis=1),
        p["ca_bo"],
        p["ff_b1"],
        p["ff_b2"],
    )], axis=0)                                                          # (11, 3D)

    out_flat = pl.pallas_call(
        decoder_layer_kernel,
        out_shape=jax.ShapeDtypeStruct((B * Lq, D), jnp.float32),
        # grid-less: one invocation, every operand resident in VMEM (few KB total)
    )(x.reshape(B * Lq, D), memory.reshape(B * Lk, D),
      tgt_mask.astype(jnp.int32), src_mask.astype(jnp.int32),
      qkv_w, wo_sa_g, wo_ca_g, p["ff_w1"], p["ff_w2"], vec_pack)

    return out_flat.reshape(B, Lq, D)


def init_params(key):
    """Deterministic synthetic init. Linear weights stored as (in, out) = W^T."""
    ks = iter(jax.random.split(key, 24))
    prm = {}

    def lin(d_in, d_out):
        w = jax.random.normal(next(ks), (d_in, d_out), jnp.float32) * 0.05
        b = jax.random.normal(next(ks), (1, d_out), jnp.float32) * 0.02
        return w, b

    # LayerNorm params (slightly perturbed so the check exercises gamma/beta).
    prm["n1_w"] = 1.0 + 0.1 * jax.random.normal(next(ks), (1, D_MODEL), jnp.float32)
    prm["n1_b"] = 0.1 * jax.random.normal(next(ks), (1, D_MODEL), jnp.float32)
    prm["n2_w"] = 1.0 + 0.1 * jax.random.normal(next(ks), (1, D_MODEL), jnp.float32)
    prm["n2_b"] = 0.1 * jax.random.normal(next(ks), (1, D_MODEL), jnp.float32)

    for prefix in ("sa", "ca"):
        for name in ("q", "k", "v", "o"):
            w, b = lin(D_MODEL, D_MODEL)
            prm[f"{prefix}_w{name}"] = w
            prm[f"{prefix}_b{name}"] = b

    prm["ff_w1"], prm["ff_b1"] = lin(D_MODEL, D_FFN)
    prm["ff_w2"], prm["ff_b2"] = lin(D_FFN, D_MODEL)
    return prm


def reference(x, memory, src_mask, tgt_mask, p):
    """Independent pure-JAX reference mirroring the PyTorch forward exactly."""
    def layernorm(t, w, b):
        mu = jnp.mean(t, axis=-1, keepdims=True)
        var = jnp.mean((t - mu) ** 2, axis=-1, keepdims=True)
        return (t - mu) / jnp.sqrt(var + EPS) * w + b

    def mha(q_in, kv_in, wq, bq, wk, bk, wv, bv, wo, bo, mask):
        B = q_in.shape[0]

        def split(t):
            return t.reshape(B, -1, NHEAD, HEAD_DIM).transpose(0, 2, 1, 3)

        q = split(q_in @ wq + bq)
        k = split(kv_in @ wk + bk)
        v = split(kv_in @ wv + bv)
        s = jnp.einsum("bhqd,bhkd->bhqk", q, k) / math.sqrt(HEAD_DIM)
        s = jnp.where(mask[:, None, :, :] == 0, NEG_INF, s)
        a = jax.nn.softmax(s, axis=-1)
        o = jnp.einsum("bhqk,bhkd->bhqd", a, v)
        o = o.transpose(0, 2, 1, 3).reshape(B, -1, NHEAD * HEAD_DIM)
        return o @ wo + bo

    h = x
    nx = layernorm(h, p["n1_w"], p["n1_b"])
    h = h + mha(nx, nx, p["sa_wq"], p["sa_bq"], p["sa_wk"], p["sa_bk"],
                p["sa_wv"], p["sa_bv"], p["sa_wo"], p["sa_bo"], tgt_mask)
    nx = layernorm(h, p["n2_w"], p["n2_b"])
    h = h + mha(nx, memory, p["ca_wq"], p["ca_bq"], p["ca_wk"], p["ca_bk"],
                p["ca_wv"], p["ca_bv"], p["ca_wo"], p["ca_bo"], src_mask)
    nx = layernorm(h, p["n2_w"], p["n2_b"])          # sublayer2 reused (module quirk)
    ff = jnp.maximum(nx @ p["ff_w1"] + p["ff_b1"], 0.0) @ p["ff_w2"] + p["ff_b2"]
    return h + ff


if __name__ == "__main__":
    B, Lq, Lk = 2, 8, 16
    key = jax.random.PRNGKey(0)
    kx, km, kp = jax.random.split(key, 3)

    x = jax.random.normal(kx, (B, Lq, D_MODEL), jnp.float32)
    memory = jax.random.normal(km, (B, Lk, D_MODEL), jnp.float32)
    # causal target mask, all-ones source mask (1 = attend, 0 = masked out)
    tgt_mask = jnp.broadcast_to(jnp.tril(jnp.ones((Lq, Lq), jnp.int32)), (B, Lq, Lq))
    src_mask = jnp.ones((B, Lq, Lk), jnp.int32)

    params = init_params(kp)

    out = jax.block_until_ready(
        transformer_decoder_layer(x, memory, src_mask, tgt_mask, params))
    ref = jax.block_until_ready(reference(x, memory, src_mask, tgt_mask, params))

    assert out.shape == (B, Lq, D_MODEL)
    # tolerance allows for pl.reciprocal(approx=True) in the softmax denominator
    assert jnp.allclose(out, ref, rtol=2e-3, atol=2e-3), "mismatch vs JAX reference"

    print("KERNEL_OK")
</pallas_src>

<mosaic_0001>
module attributes {stable_mosaic.version = 11 : i64} {
  func.func @decoder_layer_kernel(%arg0: memref<16x32xf32, #tpu.memory_space<vmem>>, %arg1: memref<32x32xf32, #tpu.memory_space<vmem>>, %arg2: memref<2x8x8xi32, #tpu.memory_space<vmem>>, %arg3: memref<2x8x16xi32, #tpu.memory_space<vmem>>, %arg4: memref<2x32x96xf32, #tpu.memory_space<vmem>>, %arg5: memref<8x8x32xf32, #tpu.memory_space<vmem>>, %arg6: memref<8x8x32xf32, #tpu.memory_space<vmem>>, %arg7: memref<32x64xf32, #tpu.memory_space<vmem>>, %arg8: memref<64x32xf32, #tpu.memory_space<vmem>>, %arg9: memref<11x96xf32, #tpu.memory_space<vmem>>, %arg10: memref<16x32xf32, #tpu.memory_space<vmem>>) attributes {dimension_semantics = [], scalar_prefetch = 0 : i64, scratch_operands = 0 : i64, tpu.core_type = #tpu.core_type<tc>} {
    %c0 = arith.constant 0 : index
    %c0_0 = arith.constant 0 : index
    %0 = vector.load %arg0[%c0, %c0_0] : memref<16x32xf32, #tpu.memory_space<vmem>>, vector<16x32xf32>
    %c0_1 = arith.constant 0 : index
    %c0_2 = arith.constant 0 : index
    %1 = vector.load %arg1[%c0_1, %c0_2] : memref<32x32xf32, #tpu.memory_space<vmem>>, vector<32x32xf32>
    %c0_3 = arith.constant 0 : index
    %c0_4 = arith.constant 0 : index
    %c0_5 = arith.constant 0 : index
    %2 = vector.load %arg2[%c0_3, %c0_4, %c0_5] : memref<2x8x8xi32, #tpu.memory_space<vmem>>, vector<2x8x8xi32>
    %c0_6 = arith.constant 0 : index
    %c0_7 = arith.constant 0 : index
    %c0_8 = arith.constant 0 : index
    %3 = vector.load %arg3[%c0_6, %c0_7, %c0_8] : memref<2x8x16xi32, #tpu.memory_space<vmem>>, vector<2x8x16xi32>
    %c0_9 = arith.constant 0 : index
    %c0_10 = arith.constant 0 : index
    %4 = vector.load %arg9[%c0_9, %c0_10] : memref<11x96xf32, #tpu.memory_space<vmem>>, vector<11x96xf32>
    %5 = vector.extract_strided_slice %4 {offsets = [0, 0], sizes = [1, 32], strides = [1, 1]} : vector<11x96xf32> to vector<1x32xf32>
    %6 = vector.extract_strided_slice %4 {offsets = [1, 0], sizes = [1, 32], strides = [1, 1]} : vector<11x96xf32> to vector<1x32xf32>
    %7 = vector.extract_strided_slice %4 {offsets = [2, 0], sizes = [1, 32], strides = [1, 1]} : vector<11x96xf32> to vector<1x32xf32>
    %8 = vector.extract_strided_slice %4 {offsets = [3, 0], sizes = [1, 32], strides = [1, 1]} : vector<11x96xf32> to vector<1x32xf32>
    %9 = vector.extract_strided_slice %4 {offsets = [4, 0], sizes = [1, 96], strides = [1, 1]} : vector<11x96xf32> to vector<1x96xf32>
    %10 = vector.extract_strided_slice %4 {offsets = [5, 0], sizes = [1, 32], strides = [1, 1]} : vector<11x96xf32> to vector<1x32xf32>
    %11 = vector.extract_strided_slice %4 {offsets = [6, 0], sizes = [1, 32], strides = [1, 1]} : vector<11x96xf32> to vector<1x32xf32>
    %12 = vector.extract_strided_slice %4 {offsets = [7, 0], sizes = [1, 64], strides = [1, 1]} : vector<11x96xf32> to vector<1x64xf32>
    %13 = vector.extract_strided_slice %4 {offsets = [8, 0], sizes = [1, 32], strides = [1, 1]} : vector<11x96xf32> to vector<1x32xf32>
    %14 = vector.extract_strided_slice %4 {offsets = [9, 0], sizes = [1, 64], strides = [1, 1]} : vector<11x96xf32> to vector<1x64xf32>
    %15 = vector.extract_strided_slice %4 {offsets = [10, 0], sizes = [1, 32], strides = [1, 1]} : vector<11x96xf32> to vector<1x32xf32>
    %cst = arith.constant dense<0.000000e+00> : vector<16xf32>
    %16 = vector.multi_reduction <add>, %0, %cst [1] : vector<16x32xf32> to vector<16xf32>
    %17 = vector.shape_cast %16 : vector<16xf32> to vector<16x1xf32>
    %cst_11 = arith.constant 3.200000e+01 : f32
    %18 = vector.broadcast %cst_11 : f32 to vector<16x1xf32>
    %19 = arith.divf %17, %18 : vector<16x1xf32>
    %20 = vector.broadcast %19 : vector<16x1xf32> to vector<16x32xf32>
    %21 = arith.subf %0, %20 : vector<16x32xf32>
    %22 = arith.mulf %21, %21 : vector<16x32xf32>
    %cst_12 = arith.constant dense<0.000000e+00> : vector<16xf32>
    %23 = vector.multi_reduction <add>, %22, %cst_12 [1] : vector<16x32xf32> to vector<16xf32>
    %24 = vector.shape_cast %23 : vector<16xf32> to vector<16x1xf32>
    %cst_13 = arith.constant 3.200000e+01 : f32
    %25 = vector.broadcast %cst_13 : f32 to vector<16x1xf32>
    %26 = arith.divf %24, %25 : vector<16x1xf32>
    %27 = vector.broadcast %19 : vector<16x1xf32> to vector<16x32xf32>
    %28 = arith.subf %0, %27 : vector<16x32xf32>
    %cst_14 = arith.constant 9.99999974E-6 : f32
    %29 = vector.broadcast %cst_14 : f32 to vector<16x1xf32>
    %30 = arith.addf %26, %29 : vector<16x1xf32>
    %31 = math.rsqrt %30 : vector<16x1xf32>
    %32 = vector.broadcast %31 : vector<16x1xf32> to vector<16x32xf32>
    %33 = arith.mulf %28, %32 : vector<16x32xf32>
    %34 = vector.broadcast %5 : vector<1x32xf32> to vector<16x32xf32>
    %35 = arith.mulf %33, %34 : vector<16x32xf32>
    %36 = vector.broadcast %6 : vector<1x32xf32> to vector<16x32xf32>
    %37 = arith.addf %35, %36 : vector<16x32xf32>
    %c0_15 = arith.constant 0 : index
    %c0_16 = arith.constant 0 : index
    %c0_17 = arith.constant 0 : index
    %38 = vector.load %arg4[%c0_15, %c0_16, %c0_17] : memref<2x32x96xf32, #tpu.memory_space<vmem>>, vector<1x32x96xf32>
    %39 = vector.shape_cast %38 : vector<1x32x96xf32> to vector<32x96xf32>
    %cst_18 = arith.constant dense<0.000000e+00> : vector<16x96xf32>
    %40 = tpu.matmul %37, %39, %cst_18 {dimension_numbers = #tpu.dot_dimension_numbers<[1], [0], [0], [1], [0, 0, 1, 1], [], []>} : vector<16x32xf32>, vector<32x96xf32>, vector<16x96xf32> -> vector<16x96xf32>
    %41 = vector.broadcast %9 : vector<1x96xf32> to vector<16x96xf32>
    %42 = arith.addf %40, %41 : vector<16x96xf32>
    %43 = vector.extract_strided_slice %42 {offsets = [0, 0], sizes = [16, 32], strides = [1, 1]} : vector<16x96xf32> to vector<16x32xf32>
    %44 = vector.extract_strided_slice %42 {offsets = [0, 32], sizes = [16, 32], strides = [1, 1]} : vector<16x96xf32> to vector<16x32xf32>
    %45 = vector.extract_strided_slice %42 {offsets = [0, 64], sizes = [16, 32], strides = [1, 1]} : vector<16x96xf32> to vector<16x32xf32>
    %c0_19 = arith.constant 0 : index
    %c0_20 = arith.constant 0 : index
    %c0_21 = arith.constant 0 : index
    %46 = vector.load %arg5[%c0_19, %c0_20, %c0_21] : memref<8x8x32xf32, #tpu.memory_space<vmem>>, vector<8x8x32xf32>
    %47 = vector.extract_strided_slice %43 {offsets = [0, 0], sizes = [8, 8], strides = [1, 1]} : vector<16x32xf32> to vector<8x8xf32>
    %48 = vector.extract_strided_slice %43 {offsets = [0, 8], sizes = [8, 8], strides = [1, 1]} : vector<16x32xf32> to vector<8x8xf32>
    %49 = vector.extract_strided_slice %43 {offsets = [0, 16], sizes = [8, 8], strides = [1, 1]} : vector<16x32xf32> to vector<8x8xf32>
    %50 = vector.extract_strided_slice %43 {offsets = [0, 24], sizes = [8, 8], strides = [1, 1]} : vector<16x32xf32> to vector<8x8xf32>
    %51 = vector.extract_strided_slice %43 {offsets = [8, 0], sizes = [8, 8], strides = [1, 1]} : vector<16x32xf32> to vector<8x8xf32>
    %52 = vector.extract_strided_slice %43 {offsets = [8, 8], sizes = [8, 8], strides = [1, 1]} : vector<16x32xf32> to vector<8x8xf32>
    %53 = vector.extract_strided_slice %43 {offsets = [8, 16], sizes = [8, 8], strides = [1, 1]} : vector<16x32xf32> to vector<8x8xf32>
    %54 = vector.extract_strided_slice %43 {offsets = [8, 24], sizes = [8, 8], strides = [1, 1]} : vector<16x32xf32> to vector<8x8xf32>
    %55 = vector.shape_cast %47 : vector<8x8xf32> to vector<1x8x8xf32>
    %56 = vector.shape_cast %48 : vector<8x8xf32> to vector<1x8x8xf32>
    %57 = vector.shape_cast %49 : vector<8x8xf32> to vector<1x8x8xf32>
    %58 = vector.shape_cast %50 : vector<8x8xf32> to vector<1x8x8xf32>
    %59 = vector.shape_cast %51 : vector<8x8xf32> to vector<1x8x8xf32>
    %60 = vector.shape_cast %52 : vector<8x8xf32> to vector<1x8x8xf32>
    %61 = vector.shape_cast %53 : vector<8x8xf32> to vector<1x8x8xf32>
    %62 = vector.shape_cast %54 : vector<8x8xf32> to vector<1x8x8xf32>
    %63 = tpu.concatenate %55, %56, %57, %58, %59, %60, %61, %62 in 0 : vector<1x8x8xf32>, vector<1x8x8xf32>, vector<1x8x8xf32>, vector<1x8x8xf32>, vector<1x8x8xf32>, vector<1x8x8xf32>, vector<1x8x8xf32>, vector<1x8x8xf32> -> vector<8x8x8xf32>
    %64 = vector.extract_strided_slice %44 {offsets = [0, 0], sizes = [8, 8], strides = [1, 1]} : vector<16x32xf32> to vector<8x8xf32>
    %65 = vector.extract_strided_slice %44 {offsets = [0, 8], sizes = [8, 8], strides = [1, 1]} : vector<16x32xf32> to vector<8x8xf32>
    %66 = vector.extract_strided_slice %44 {offsets = [0, 16], sizes = [8, 8], strides = [1, 1]} : vector<16x32xf32> to vector<8x8xf32>
    %67 = vector.extract_strided_slice %44 {offsets = [0, 24], sizes = [8, 8], strides = [1, 1]} : vector<16x32xf32> to vector<8x8xf32>
    %68 = vector.extract_strided_slice %44 {offsets = [8, 0], sizes = [8, 8], strides = [1, 1]} : vector<16x32xf32> to vector<8x8xf32>
    %69 = vector.extract_strided_slice %44 {offsets = [8, 8], sizes = [8, 8], strides = [1, 1]} : vector<16x32xf32> to vector<8x8xf32>
    %70 = vector.extract_strided_slice %44 {offsets = [8, 16], sizes = [8, 8], strides = [1, 1]} : vector<16x32xf32> to vector<8x8xf32>
    %71 = vector.extract_strided_slice %44 {offsets = [8, 24], sizes = [8, 8], strides = [1, 1]} : vector<16x32xf32> to vector<8x8xf32>
    %72 = vector.shape_cast %64 : vector<8x8xf32> to vector<1x8x8xf32>
    %73 = vector.shape_cast %65 : vector<8x8xf32> to vector<1x8x8xf32>
    %74 = vector.shape_cast %66 : vector<8x8xf32> to vector<1x8x8xf32>
    %75 = vector.shape_cast %67 : vector<8x8xf32> to vector<1x8x8xf32>
    %76 = vector.shape_cast %68 : vector<8x8xf32> to vector<1x8x8xf32>
    %77 = vector.shape_cast %69 : vector<8x8xf32> to vector<1x8x8xf32>
    %78 = vector.shape_cast %70 : vector<8x8xf32> to vector<1x8x8xf32>
    %79 = vector.shape_cast %71 : vector<8x8xf32> to vector<1x8x8xf32>
    %80 = tpu.concatenate %72, %73, %74, %75, %76, %77, %78, %79 in 0 : vector<1x8x8xf32>, vector<1x8x8xf32>, vector<1x8x8xf32>, vector<1x8x8xf32>, vector<1x8x8xf32>, vector<1x8x8xf32>, vector<1x8x8xf32>, vector<1x8x8xf32> -> vector<8x8x8xf32>
    %81 = vector.extract_strided_slice %45 {offsets = [0, 0], sizes = [8, 8], strides = [1, 1]} : vector<16x32xf32> to vector<8x8xf32>
    %82 = vector.extract_strided_slice %45 {offsets = [0, 8], sizes = [8, 8], strides = [1, 1]} : vector<16x32xf32> to vector<8x8xf32>
    %83 = vector.extract_strided_slice %45 {offsets = [0, 16], sizes = [8, 8], strides = [1, 1]} : vector<16x32xf32> to vector<8x8xf32>
    %84 = vector.extract_strided_slice %45 {offsets = [0, 24], sizes = [8, 8], strides = [1, 1]} : vector<16x32xf32> to vector<8x8xf32>
    %85 = vector.extract_strided_slice %45 {offsets = [8, 0], sizes = [8, 8], strides = [1, 1]} : vector<16x32xf32> to vector<8x8xf32>
    %86 = vector.extract_strided_slice %45 {offsets = [8, 8], sizes = [8, 8], strides = [1, 1]} : vector<16x32xf32> to vector<8x8xf32>
    %87 = vector.extract_strided_slice %45 {offsets = [8, 16], sizes = [8, 8], strides = [1, 1]} : vector<16x32xf32> to vector<8x8xf32>
    %88 = vector.extract_strided_slice %45 {offsets = [8, 24], sizes = [8, 8], strides = [1, 1]} : vector<16x32xf32> to vector<8x8xf32>
    %89 = vector.shape_cast %81 : vector<8x8xf32> to vector<1x8x8xf32>
    %90 = vector.shape_cast %82 : vector<8x8xf32> to vector<1x8x8xf32>
    %91 = vector.shape_cast %83 : vector<8x8xf32> to vector<1x8x8xf32>
    %92 = vector.shape_cast %84 : vector<8x8xf32> to vector<1x8x8xf32>
    %93 = vector.shape_cast %85 : vector<8x8xf32> to vector<1x8x8xf32>
    %94 = vector.shape_cast %86 : vector<8x8xf32> to vector<1x8x8xf32>
    %95 = vector.shape_cast %87 : vector<8x8xf32> to vector<1x8x8xf32>
    %96 = vector.shape_cast %88 : vector<8x8xf32> to vector<1x8x8xf32>
    %97 = tpu.concatenate %89, %90, %91, %92, %93, %94, %95, %96 in 0 : vector<1x8x8xf32>, vector<1x8x8xf32>, vector<1x8x8xf32>, vector<1x8x8xf32>, vector<1x8x8xf32>, vector<1x8x8xf32>, vector<1x8x8xf32>, vector<1x8x8xf32> -> vector<8x8x8xf32>
    %98 = vector.extract_strided_slice %2 {offsets = [0, 0, 0], sizes = [1, 8, 8], strides = [1, 1, 1]} : vector<2x8x8xi32> to vector<1x8x8xi32>
    %99 = vector.extract_strided_slice %2 {offsets = [0, 0, 0], sizes = [1, 8, 8], strides = [1, 1, 1]} : vector<2x8x8xi32> to vector<1x8x8xi32>
    %100 = vector.extract_strided_slice %2 {offsets = [0, 0, 0], sizes = [1, 8, 8], strides = [1, 1, 1]} : vector<2x8x8xi32> to vector<1x8x8xi32>
    %101 = vector.extract_strided_slice %2 {offsets = [0, 0, 0], sizes = [1, 8, 8], strides = [1, 1, 1]} : vector<2x8x8xi32> to vector<1x8x8xi32>
    %102 = vector.extract_strided_slice %2 {offsets = [1, 0, 0], sizes = [1, 8, 8], strides = [1, 1, 1]} : vector<2x8x8xi32> to vector<1x8x8xi32>
    %103 = vector.extract_strided_slice %2 {offsets = [1, 0, 0], sizes = [1, 8, 8], strides = [1, 1, 1]} : vector<2x8x8xi32> to vector<1x8x8xi32>
    %104 = vector.extract_strided_slice %2 {offsets = [1, 0, 0], sizes = [1, 8, 8], strides = [1, 1, 1]} : vector<2x8x8xi32> to vector<1x8x8xi32>
    %105 = vector.extract_strided_slice %2 {offsets = [1, 0, 0], sizes = [1, 8, 8], strides = [1, 1, 1]} : vector<2x8x8xi32> to vector<1x8x8xi32>
    %106 = tpu.concatenate %98, %99, %100, %101, %102, %103, %104, %105 in 0 : vector<1x8x8xi32>, vector<1x8x8xi32>, vector<1x8x8xi32>, vector<1x8x8xi32>, vector<1x8x8xi32>, vector<1x8x8xi32>, vector<1x8x8xi32>, vector<1x8x8xi32> -> vector<8x8x8xi32>
    "tpu.trace_start"() <{level = 10 : i32, message = "gqd,gkd->gqk"}> : () -> ()
    %cst_22 = arith.constant dense<0.000000e+00> : vector<8x8x8xf32>
    %107 = tpu.matmul %63, %80, %cst_22 {dimension_numbers = #tpu.dot_dimension_numbers<[2], [2], [1], [1], [0, 0, 0, 1, 1, 1], [0], [0]>} : vector<8x8x8xf32>, vector<8x8x8xf32>, vector<8x8x8xf32> -> vector<8x8x8xf32>
    "tpu.trace_stop"() : () -> ()
    %cst_23 = arith.constant 0.353553385 : f32
    %108 = vector.broadcast %cst_23 : f32 to vector<8x8x8xf32>
    %109 = arith.mulf %107, %108 : vector<8x8x8xf32>
    %c0_i32 = arith.constant 0 : i32
    %110 = vector.broadcast %c0_i32 : i32 to vector<8x8x8xi32>
    %111 = arith.cmpi eq, %106, %110 : vector<8x8x8xi32>
    %cst_24 = arith.constant -1.000000e+09 : f32
    %112 = vector.broadcast %cst_24 : f32 to vector<8x8x8xf32>
    %113 = arith.select %111, %112, %109 : vector<8x8x8xi1>, vector<8x8x8xf32>
    %cst_25 = arith.constant dense<0xFF800000> : vector<8x8xf32>
    %114 = vector.multi_reduction <maximumf>, %113, %cst_25 [2] : vector<8x8x8xf32> to vector<8x8xf32>
    %115 = vector.shape_cast %114 : vector<8x8xf32> to vector<8x8x1xf32>
    %116 = vector.broadcast %115 : vector<8x8x1xf32> to vector<8x8x8xf32>
    %117 = arith.subf %113, %116 : vector<8x8x8xf32>
    %118 = math.exp %117 : vector<8x8x8xf32>
    %cst_26 = arith.constant dense<0.000000e+00> : vector<8x8xf32>
    %119 = vector.multi_reduction <add>, %118, %cst_26 [2] : vector<8x8x8xf32> to vector<8x8xf32>
    %120 = vector.shape_cast %119 : vector<8x8xf32> to vector<8x8x1xf32>
    %121 = tpu.reciprocal %120 {approx = true} : vector<8x8x1xf32> -> vector<8x8x1xf32>
    %122 = vector.broadcast %121 : vector<8x8x1xf32> to vector<8x8x8xf32>
    %123 = arith.mulf %118, %122 : vector<8x8x8xf32>
    "tpu.trace_start"() <{level = 10 : i32, message = "gqk,gkd->gqd"}> : () -> ()
    %cst_27 = arith.constant dense<0.000000e+00> : vector<8x8x8xf32>
    %124 = tpu.matmul %123, %97, %cst_27 {dimension_numbers = #tpu.dot_dimension_numbers<[2], [1], [1], [2], [0, 0, 0, 1, 1, 2], [0], [0]>} : vector<8x8x8xf32>, vector<8x8x8xf32>, vector<8x8x8xf32> -> vector<8x8x8xf32>
    "tpu.trace_stop"() : () -> ()
    "tpu.trace_start"() <{level = 10 : i32, message = "gqd,gdm->gqm"}> : () -> ()
    %cst_28 = arith.constant dense<0.000000e+00> : vector<8x8x32xf32>
    %125 = tpu.matmul %124, %46, %cst_28 {dimension_numbers = #tpu.dot_dimension_numbers<[2], [1], [1], [2], [0, 0, 0, 1, 1, 2], [0], [0]>} : vector<8x8x8xf32>, vector<8x8x32xf32>, vector<8x8x32xf32> -> vector<8x8x32xf32>
    "tpu.trace_stop"() : () -> ()
    %126 = vector.extract_strided_slice %125 {offsets = [0, 0, 0], sizes = [4, 8, 32], strides = [1, 1, 1]} : vector<8x8x32xf32> to vector<4x8x32xf32>
    %cst_29 = arith.constant dense<0.000000e+00> : vector<8x32xf32>
    %127 = vector.multi_reduction <add>, %126, %cst_29 [0] : vector<4x8x32xf32> to vector<8x32xf32>
    %128 = vector.extract_strided_slice %125 {offsets = [4, 0, 0], sizes = [4, 8, 32], strides = [1, 1, 1]} : vector<8x8x32xf32> to vector<4x8x32xf32>
    %cst_30 = arith.constant dense<0.000000e+00> : vector<8x32xf32>
    %129 = vector.multi_reduction <add>, %128, %cst_30 [0] : vector<4x8x32xf32> to vector<8x32xf32>
    %130 = tpu.concatenate %127, %129 in 0 : vector<8x32xf32>, vector<8x32xf32> -> vector<16x32xf32>
    %131 = vector.broadcast %10 : vector<1x32xf32> to vector<16x32xf32>
    %132 = arith.addf %130, %131 : vector<16x32xf32>
    %133 = arith.addf %0, %132 : vector<16x32xf32>
    %cst_31 = arith.constant dense<0.000000e+00> : vector<16xf32>
    %134 = vector.multi_reduction <add>, %133, %cst_31 [1] : vector<16x32xf32> to vector<16xf32>
    %135 = vector.shape_cast %134 : vector<16xf32> to vector<16x1xf32>
    %cst_32 = arith.constant 3.200000e+01 : f32
    %136 = vector.broadcast %cst_32 : f32 to vector<16x1xf32>
    %137 = arith.divf %135, %136 : vector<16x1xf32>
    %138 = vector.broadcast %137 : vector<16x1xf32> to vector<16x32xf32>
    %139 = arith.subf %133, %138 : vector<16x32xf32>
    %140 = arith.mulf %139, %139 : vector<16x32xf32>
    %cst_33 = arith.constant dense<0.000000e+00> : vector<16xf32>
    %141 = vector.multi_reduction <add>, %140, %cst_33 [1] : vector<16x32xf32> to vector<16xf32>
    %142 = vector.shape_cast %141 : vector<16xf32> to vector<16x1xf32>
    %cst_34 = arith.constant 3.200000e+01 : f32
    %143 = vector.broadcast %cst_34 : f32 to vector<16x1xf32>
    %144 = arith.divf %142, %143 : vector<16x1xf32>
    %145 = vector.broadcast %137 : vector<16x1xf32> to vector<16x32xf32>
    %146 = arith.subf %133, %145 : vector<16x32xf32>
    %cst_35 = arith.constant 9.99999974E-6 : f32
    %147 = vector.broadcast %cst_35 : f32 to vector<16x1xf32>
    %148 = arith.addf %144, %147 : vector<16x1xf32>
    %149 = math.rsqrt %148 : vector<16x1xf32>
    %150 = vector.broadcast %149 : vector<16x1xf32> to vector<16x32xf32>
    %151 = arith.mulf %146, %150 : vector<16x32xf32>
    %152 = vector.broadcast %7 : vector<1x32xf32> to vector<16x32xf32>
    %153 = arith.mulf %151, %152 : vector<16x32xf32>
    %154 = vector.broadcast %8 : vector<1x32xf32> to vector<16x32xf32>
    %155 = arith.addf %153, %154 : vector<16x32xf32>
    %c1 = arith.constant 1 : index
    %c0_36 = arith.constant 0 : index
    %c0_37 = arith.constant 0 : index
    %156 = vector.load %arg4[%c1, %c0_36, %c0_37] : memref<2x32x96xf32, #tpu.memory_space<vmem>>, vector<1x32x96xf32>
    %157 = vector.shape_cast %156 : vector<1x32x96xf32> to vector<32x96xf32>
    %158 = vector.extract_strided_slice %157 {offsets = [0, 0], sizes = [32, 32], strides = [1, 1]} : vector<32x96xf32> to vector<32x32xf32>
    %cst_38 = arith.constant dense<0.000000e+00> : vector<16x32xf32>
    %159 = tpu.matmul %155, %158, %cst_38 {dimension_numbers = #tpu.dot_dimension_numbers<[1], [0], [0], [1], [0, 0, 1, 1], [], []>} : vector<16x32xf32>, vector<32x32xf32>, vector<16x32xf32> -> vector<16x32xf32>
    %160 = vector.broadcast %11 : vector<1x32xf32> to vector<16x32xf32>
    %161 = arith.addf %159, %160 : vector<16x32xf32>
    %162 = vector.extract_strided_slice %157 {offsets = [0, 32], sizes = [32, 64], strides = [1, 1]} : vector<32x96xf32> to vector<32x64xf32>
    %cst_39 = arith.constant dense<0.000000e+00> : vector<32x64xf32>
    %163 = tpu.matmul %1, %162, %cst_39 {dimension_numbers = #tpu.dot_dimension_numbers<[1], [0], [0], [1], [0, 0, 1, 1], [], []>} : vector<32x32xf32>, vector<32x64xf32>, vector<32x64xf32> -> vector<32x64xf32>
    %164 = vector.broadcast %12 : vector<1x64xf32> to vector<32x64xf32>
    %165 = arith.addf %163, %164 : vector<32x64xf32>
    %166 = vector.extract_strided_slice %165 {offsets = [0, 0], sizes = [32, 32], strides = [1, 1]} : vector<32x64xf32> to vector<32x32xf32>
    %167 = vector.extract_strided_slice %165 {offsets = [0, 32], sizes = [32, 32], strides = [1, 1]} : vector<32x64xf32> to vector<32x32xf32>
    %c0_40 = arith.constant 0 : index
    %c0_41 = arith.constant 0 : index
    %c0_42 = arith.constant 0 : index
    %168 = vector.load %arg6[%c0_40, %c0_41, %c0_42] : memref<8x8x32xf32, #tpu.memory_space<vmem>>, vector<8x8x32xf32>
    %169 = vector.extract_strided_slice %161 {offsets = [0, 0], sizes = [8, 8], strides = [1, 1]} : vector<16x32xf32> to vector<8x8xf32>
    %170 = vector.extract_strided_slice %161 {offsets = [0, 8], sizes = [8, 8], strides = [1, 1]} : vector<16x32xf32> to vector<8x8xf32>
    %171 = vector.extract_strided_slice %161 {offsets = [0, 16], sizes = [8, 8], strides = [1, 1]} : vector<16x32xf32> to vector<8x8xf32>
    %172 = vector.extract_strided_slice %161 {offsets = [0, 24], sizes = [8, 8], strides = [1, 1]} : vector<16x32xf32> to vector<8x8xf32>
    %173 = vector.extract_strided_slice %161 {offsets = [8, 0], sizes = [8, 8], strides = [1, 1]} : vector<16x32xf32> to vector<8x8xf32>
    %174 = vector.extract_strided_slice %161 {offsets = [8, 8], sizes = [8, 8], strides = [1, 1]} : vector<16x32xf32> to vector<8x8xf32>
    %175 = vector.extract_strided_slice %161 {offsets = [8, 16], sizes = [8, 8], strides = [1, 1]} : vector<16x32xf32> to vector<8x8xf32>
    %176 = vector.extract_strided_slice %161 {offsets = [8, 24], sizes = [8, 8], strides = [1, 1]} : vector<16x32xf32> to vector<8x8xf32>
    %177 = vector.shape_cast %169 : vector<8x8xf32> to vector<1x8x8xf32>
    %178 = vector.shape_cast %170 : vector<8x8xf32> to vector<1x8x8xf32>
    %179 = vector.shape_cast %171 : vector<8x8xf32> to vector<1x8x8xf32>
    %180 = vector.shape_cast %172 : vector<8x8xf32> to vector<1x8x8xf32>
    %181 = vector.shape_cast %173 : vector<8x8xf32> to vector<1x8x8xf32>
    %182 = vector.shape_cast %174 : vector<8x8xf32> to vector<1x8x8xf32>
    %183 = vector.shape_cast %175 : vector<8x8xf32> to vector<1x8x8xf32>
    %184 = vector.shape_cast %176 : vector<8x8xf32> to vector<1x8x8xf32>
    %185 = tpu.concatenate %177, %178, %179, %180, %181, %182, %183, %184 in 0 : vector<1x8x8xf32>, vector<1x8x8xf32>, vector<1x8x8xf32>, vector<1x8x8xf32>, vector<1x8x8xf32>, vector<1x8x8xf32>, vector<1x8x8xf32>, vector<1x8x8xf32> -> vector<8x8x8xf32>
    %186 = vector.extract_strided_slice %166 {offsets = [0, 0], sizes = [16, 8], strides = [1, 1]} : vector<32x32xf32> to vector<16x8xf32>
    %187 = vector.extract_strided_slice %166 {offsets = [0, 8], sizes = [16, 8], strides = [1, 1]} : vector<32x32xf32> to vector<16x8xf32>
    %188 = vector.extract_strided_slice %166 {offsets = [0, 16], sizes = [16, 8], strides = [1, 1]} : vector<32x32xf32> to vector<16x8xf32>
    %189 = vector.extract_strided_slice %166 {offsets = [0, 24], sizes = [16, 8], strides = [1, 1]} : vector<32x32xf32> to vector<16x8xf32>
    %190 = vector.extract_strided_slice %166 {offsets = [16, 0], sizes = [16, 8], strides = [1, 1]} : vector<32x32xf32> to vector<16x8xf32>
    %191 = vector.extract_strided_slice %166 {offsets = [16, 8], sizes = [16, 8], strides = [1, 1]} : vector<32x32xf32> to vector<16x8xf32>
    %192 = vector.extract_strided_slice %166 {offsets = [16, 16], sizes = [16, 8], strides = [1, 1]} : vector<32x32xf32> to vector<16x8xf32>
    %193 = vector.extract_strided_slice %166 {offsets = [16, 24], sizes = [16, 8], strides = [1, 1]} : vector<32x32xf32> to vector<16x8xf32>
    %194 = vector.shape_cast %186 : vector<16x8xf32> to vector<1x16x8xf32>
    %195 = vector.shape_cast %187 : vector<16x8xf32> to vector<1x16x8xf32>
    %196 = vector.shape_cast %188 : vector<16x8xf32> to vector<1x16x8xf32>
    %197 = vector.shape_cast %189 : vector<16x8xf32> to vector<1x16x8xf32>
    %198 = vector.shape_cast %190 : vector<16x8xf32> to vector<1x16x8xf32>
    %199 = vector.shape_cast %191 : vector<16x8xf32> to vector<1x16x8xf32>
    %200 = vector.shape_cast %192 : vector<16x8xf32> to vector<1x16x8xf32>
    %201 = vector.shape_cast %193 : vector<16x8xf32> to vector<1x16x8xf32>
    %202 = tpu.concatenate %194, %195, %196, %197, %198, %199, %200, %201 in 0 : vector<1x16x8xf32>, vector<1x16x8xf32>, vector<1x16x8xf32>, vector<1x16x8xf32>, vector<1x16x8xf32>, vector<1x16x8xf32>, vector<1x16x8xf32>, vector<1x16x8xf32> -> vector<8x16x8xf32>
    %203 = vector.extract_strided_slice %167 {offsets = [0, 0], sizes = [16, 8], strides = [1, 1]} : vector<32x32xf32> to vector<16x8xf32>
    %204 = vector.extract_strided_slice %167 {offsets = [0, 8], sizes = [16, 8], strides = [1, 1]} : vector<32x32xf32> to vector<16x8xf32>
    %205 = vector.extract_strided_slice %167 {offsets = [0, 16], sizes = [16, 8], strides = [1, 1]} : vector<32x32xf32> to vector<16x8xf32>
    %206 = vector.extract_strided_slice %167 {offsets = [0, 24], sizes = [16, 8], strides = [1, 1]} : vector<32x32xf32> to vector<16x8xf32>
    %207 = vector.extract_strided_slice %167 {offsets = [16, 0], sizes = [16, 8], strides = [1, 1]} : vector<32x32xf32> to vector<16x8xf32>
    %208 = vector.extract_strided_slice %167 {offsets = [16, 8], sizes = [16, 8], strides = [1, 1]} : vector<32x32xf32> to vector<16x8xf32>
    %209 = vector.extract_strided_slice %167 {offsets = [16, 16], sizes = [16, 8], strides = [1, 1]} : vector<32x32xf32> to vector<16x8xf32>
    %210 = vector.extract_strided_slice %167 {offsets = [16, 24], sizes = [16, 8], strides = [1, 1]} : vector<32x32xf32> to vector<16x8xf32>
    %211 = vector.shape_cast %203 : vector<16x8xf32> to vector<1x16x8xf32>
    %212 = vector.shape_cast %204 : vector<16x8xf32> to vector<1x16x8xf32>
    %213 = vector.shape_cast %205 : vector<16x8xf32> to vector<1x16x8xf32>
    %214 = vector.shape_cast %206 : vector<16x8xf32> to vector<1x16x8xf32>
    %215 = vector.shape_cast %207 : vector<16x8xf32> to vector<1x16x8xf32>
    %216 = vector.shape_cast %208 : vector<16x8xf32> to vector<1x16x8xf32>
    %217 = vector.shape_cast %209 : vector<16x8xf32> to vector<1x16x8xf32>
    %218 = vector.shape_cast %210 : vector<16x8xf32> to vector<1x16x8xf32>
    %219 = tpu.concatenate %211, %212, %213, %214, %215, %216, %217, %218 in 0 : vector<1x16x8xf32>, vector<1x16x8xf32>, vector<1x16x8xf32>, vector<1x16x8xf32>, vector<1x16x8xf32>, vector<1x16x8xf32>, vector<1x16x8xf32>, vector<1x16x8xf32> -> vector<8x16x8xf32>
    %220 = vector.extract_strided_slice %3 {offsets = [0, 0, 0], sizes = [1, 8, 16], strides = [1, 1, 1]} : vector<2x8x16xi32> to vector<1x8x16xi32>
    %221 = vector.extract_strided_slice %3 {offsets = [0, 0, 0], sizes = [1, 8, 16], strides = [1, 1, 1]} : vector<2x8x16xi32> to vector<1x8x16xi32>
    %222 = vector.extract_strided_slice %3 {offsets = [0, 0, 0], sizes = [1, 8, 16], strides = [1, 1, 1]} : vector<2x8x16xi32> to vector<1x8x16xi32>
    %223 = vector.extract_strided_slice %3 {offsets = [0, 0, 0], sizes = [1, 8, 16], strides = [1, 1, 1]} : vector<2x8x16xi32> to vector<1x8x16xi32>
    %224 = vector.extract_strided_slice %3 {offsets = [1, 0, 0], sizes = [1, 8, 16], strides = [1, 1, 1]} : vector<2x8x16xi32> to vector<1x8x16xi32>
    %225 = vector.extract_strided_slice %3 {offsets = [1, 0, 0], sizes = [1, 8, 16], strides = [1, 1, 1]} : vector<2x8x16xi32> to vector<1x8x16xi32>
    %226 = vector.extract_strided_slice %3 {offsets = [1, 0, 0], sizes = [1, 8, 16], strides = [1, 1, 1]} : vector<2x8x16xi32> to vector<1x8x16xi32>
    %227 = vector.extract_strided_slice %3 {offsets = [1, 0, 0], sizes = [1, 8, 16], strides = [1, 1, 1]} : vector<2x8x16xi32> to vector<1x8x16xi32>
    %228 = tpu.concatenate %220, %221, %222, %223, %224, %225, %226, %227 in 0 : vector<1x8x16xi32>, vector<1x8x16xi32>, vector<1x8x16xi32>, vector<1x8x16xi32>, vector<1x8x16xi32>, vector<1x8x16xi32>, vector<1x8x16xi32>, vector<1x8x16xi32> -> vector<8x8x16xi32>
    "tpu.trace_start"() <{level = 10 : i32, message = "gqd,gkd->gqk"}> : () -> ()
    %cst_43 = arith.constant dense<0.000000e+00> : vector<8x8x16xf32>
    %229 = tpu.matmul %185, %202, %cst_43 {dimension_numbers = #tpu.dot_dimension_numbers<[2], [2], [1], [1], [0, 0, 0, 1, 1, 1], [0], [0]>} : vector<8x8x8xf32>, vector<8x16x8xf32>, vector<8x8x16xf32> -> vector<8x8x16xf32>
    "tpu.trace_stop"() : () -> ()
    %cst_44 = arith.constant 0.353553385 : f32
    %230 = vector.broadcast %cst_44 : f32 to vector<8x8x16xf32>
    %231 = arith.mulf %229, %230 : vector<8x8x16xf32>
    %c0_i32_45 = arith.constant 0 : i32
    %232 = vector.broadcast %c0_i32_45 : i32 to vector<8x8x16xi32>
    %233 = arith.cmpi eq, %228, %232 : vector<8x8x16xi32>
    %cst_46 = arith.constant -1.000000e+09 : f32
    %234 = vector.broadcast %cst_46 : f32 to vector<8x8x16xf32>
    %235 = arith.select %233, %234, %231 : vector<8x8x16xi1>, vector<8x8x16xf32>
    %cst_47 = arith.constant dense<0xFF800000> : vector<8x8xf32>
    %236 = vector.multi_reduction <maximumf>, %235, %cst_47 [2] : vector<8x8x16xf32> to vector<8x8xf32>
    %237 = vector.shape_cast %236 : vector<8x8xf32> to vector<8x8x1xf32>
    %238 = vector.broadcast %237 : vector<8x8x1xf32> to vector<8x8x16xf32>
    %239 = arith.subf %235, %238 : vector<8x8x16xf32>
    %240 = math.exp %239 : vector<8x8x16xf32>
    %cst_48 = arith.constant dense<0.000000e+00> : vector<8x8xf32>
    %241 = vector.multi_reduction <add>, %240, %cst_48 [2] : vector<8x8x16xf32> to vector<8x8xf32>
    %242 = vector.shape_cast %241 : vector<8x8xf32> to vector<8x8x1xf32>
    %243 = tpu.reciprocal %242 {approx = true} : vector<8x8x1xf32> -> vector<8x8x1xf32>
    %244 = vector.broadcast %243 : vector<8x8x1xf32> to vector<8x8x16xf32>
    %245 = arith.mulf %240, %244 : vector<8x8x16xf32>
    "tpu.trace_start"() <{level = 10 : i32, message = "gqk,gkd->gqd"}> : () -> ()
    %cst_49 = arith.constant dense<0.000000e+00> : vector<8x8x8xf32>
    %246 = tpu.matmul %245, %219, %cst_49 {dimension_numbers = #tpu.dot_dimension_numbers<[2], [1], [1], [2], [0, 0, 0, 1, 1, 2], [0], [0]>} : vector<8x8x16xf32>, vector<8x16x8xf32>, vector<8x8x8xf32> -> vector<8x8x8xf32>
    "tpu.trace_stop"() : () -> ()
    "tpu.trace_start"() <{level = 10 : i32, message = "gqd,gdm->gqm"}> : () -> ()
    %cst_50 = arith.constant dense<0.000000e+00> : vector<8x8x32xf32>
    %247 = tpu.matmul %246, %168, %cst_50 {dimension_numbers = #tpu.dot_dimension_numbers<[2], [1], [1], [2], [0, 0, 0, 1, 1, 2], [0], [0]>} : vector<8x8x8xf32>, vector<8x8x32xf32>, vector<8x8x32xf32> -> vector<8x8x32xf32>
    "tpu.trace_stop"() : () -> ()
    %248 = vector.extract_strided_slice %247 {offsets = [0, 0, 0], sizes = [4, 8, 32], strides = [1, 1, 1]} : vector<8x8x32xf32> to vector<4x8x32xf32>
    %cst_51 = arith.constant dense<0.000000e+00> : vector<8x32xf32>
    %249 = vector.multi_reduction <add>, %248, %cst_51 [0] : vector<4x8x32xf32> to vector<8x32xf32>
    %250 = vector.extract_strided_slice %247 {offsets = [4, 0, 0], sizes = [4, 8, 32], strides = [1, 1, 1]} : vector<8x8x32xf32> to vector<4x8x32xf32>
    %cst_52 = arith.constant dense<0.000000e+00> : vector<8x32xf32>
    %251 = vector.multi_reduction <add>, %250, %cst_52 [0] : vector<4x8x32xf32> to vector<8x32xf32>
    %252 = tpu.concatenate %249, %251 in 0 : vector<8x32xf32>, vector<8x32xf32> -> vector<16x32xf32>
    %253 = vector.broadcast %13 : vector<1x32xf32> to vector<16x32xf32>
    %254 = arith.addf %252, %253 : vector<16x32xf32>
    %255 = arith.addf %133, %254 : vector<16x32xf32>
    %cst_53 = arith.constant dense<0.000000e+00> : vector<16xf32>
    %256 = vector.multi_reduction <add>, %255, %cst_53 [1] : vector<16x32xf32> to vector<16xf32>
    %257 = vector.shape_cast %256 : vector<16xf32> to vector<16x1xf32>
    %cst_54 = arith.constant 3.200000e+01 : f32
    %258 = vector.broadcast %cst_54 : f32 to vector<16x1xf32>
    %259 = arith.divf %257, %258 : vector<16x1xf32>
    %260 = vector.broadcast %259 : vector<16x1xf32> to vector<16x32xf32>
    %261 = arith.subf %255, %260 : vector<16x32xf32>
    %262 = arith.mulf %261, %261 : vector<16x32xf32>
    %cst_55 = arith.constant dense<0.000000e+00> : vector<16xf32>
    %263 = vector.multi_reduction <add>, %262, %cst_55 [1] : vector<16x32xf32> to vector<16xf32>
    %264 = vector.shape_cast %263 : vector<16xf32> to vector<16x1xf32>
    %cst_56 = arith.constant 3.200000e+01 : f32
    %265 = vector.broadcast %cst_56 : f32 to vector<16x1xf32>
    %266 = arith.divf %264, %265 : vector<16x1xf32>
    %267 = vector.broadcast %259 : vector<16x1xf32> to vector<16x32xf32>
    %268 = arith.subf %255, %267 : vector<16x32xf32>
    %cst_57 = arith.constant 9.99999974E-6 : f32
    %269 = vector.broadcast %cst_57 : f32 to vector<16x1xf32>
    %270 = arith.addf %266, %269 : vector<16x1xf32>
    %271 = math.rsqrt %270 : vector<16x1xf32>
    %272 = vector.broadcast %271 : vector<16x1xf32> to vector<16x32xf32>
    %273 = arith.mulf %268, %272 : vector<16x32xf32>
    %274 = vector.broadcast %7 : vector<1x32xf32> to vector<16x32xf32>
    %275 = arith.mulf %273, %274 : vector<16x32xf32>
    %276 = vector.broadcast %8 : vector<1x32xf32> to vector<16x32xf32>
    %277 = arith.addf %275, %276 : vector<16x32xf32>
    %c0_58 = arith.constant 0 : index
    %c0_59 = arith.constant 0 : index
    %278 = vector.load %arg7[%c0_58, %c0_59] : memref<32x64xf32, #tpu.memory_space<vmem>>, vector<32x64xf32>
    %cst_60 = arith.constant dense<0.000000e+00> : vector<16x64xf32>
    %279 = tpu.matmul %277, %278, %cst_60 {dimension_numbers = #tpu.dot_dimension_numbers<[1], [0], [0], [1], [0, 0, 1, 1], [], []>} : vector<16x32xf32>, vector<32x64xf32>, vector<16x64xf32> -> vector<16x64xf32>
    %280 = vector.broadcast %14 : vector<1x64xf32> to vector<16x64xf32>
    %281 = arith.addf %279, %280 : vector<16x64xf32>
    %cst_61 = arith.constant 0.000000e+00 : f32
    %282 = vector.broadcast %cst_61 : f32 to vector<16x64xf32>
    %283 = arith.maximumf %281, %282 : vector<16x64xf32>
    %c0_62 = arith.constant 0 : index
    %c0_63 = arith.constant 0 : index
    %284 = vector.load %arg8[%c0_62, %c0_63] : memref<64x32xf32, #tpu.memory_space<vmem>>, vector<64x32xf32>
    %cst_64 = arith.constant dense<0.000000e+00> : vector<16x32xf32>
    %285 = tpu.matmul %283, %284, %cst_64 {dimension_numbers = #tpu.dot_dimension_numbers<[1], [0], [0], [1], [0, 0, 1, 1], [], []>} : vector<16x64xf32>, vector<64x32xf32>, vector<16x32xf32> -> vector<16x32xf32>
    %286 = arith.addf %255, %285 : vector<16x32xf32>
    %287 = vector.broadcast %15 : vector<1x32xf32> to vector<16x32xf32>
    %288 = arith.addf %286, %287 : vector<16x32xf32>
    %c0_65 = arith.constant 0 : index
    %c0_66 = arith.constant 0 : index
    %289 = vector.load %arg10[%c0_65, %c0_66] : memref<16x32xf32, #tpu.memory_space<vmem>>, vector<16x32xf32>
    tpu.vector_store %arg10[%c0_65, %c0_66], %288 {strides = array<i32>} : memref<16x32xf32, #tpu.memory_space<vmem>>, vector<16x32xf32>,
    return
  }
}

</mosaic_0001>

<llo_original>
// kernel: tpu_custom_call.1
$region0: #{tpu_custom_call.1}
  #allocation0 [shape = 'u32[]', space=smem, size = 0x4, offset = 0x4, fixed_abs, tag = 'smem constant byte address 0x4 - core index']
  #allocation1 [shape = 'u32[144,128]{1,0:T(1,128)}', space=vmem, size = 0x12000, scoped, tag = 'internal scratch']
  %s0 = inlined_call_operand.hbm [shape: f32[16,32], index: 0, kind: input, shape index: {}]
  %s1 = inlined_call_operand.vmem [shape: f32[32,32], index: 1, kind: input, shape index: {}]
  %s2 = inlined_call_operand.hbm [shape: s32[2,8,8], index: 2, kind: input, shape index: {}]
  %s3 = inlined_call_operand.hbm [shape: s32[2,8,16], index: 3, kind: input, shape index: {}]
  %s4 = inlined_call_operand.vmem [shape: f32[2,32,96], index: 4, kind: input, shape index: {}]
  %s5 = inlined_call_operand.hbm [shape: f32[8,8,32], index: 5, kind: input, shape index: {}]
  %s6 = inlined_call_operand.hbm [shape: f32[8,8,32], index: 6, kind: input, shape index: {}]
  %s7 = inlined_call_operand.hbm [shape: f32[32,64], index: 7, kind: input, shape index: {}]
  %s8 = inlined_call_operand.vmem [shape: f32[64,32], index: 8, kind: input, shape index: {}]
  %s9 = inlined_call_operand.vmem [shape: f32[11,96], index: 9, kind: input, shape index: {}]
  %s10 = inlined_call_operand.hbm [shape: f32[16,32], index: 10, kind: output, shape index: {}]
  %s11 = sld [smem:[#allocation0]]
  $region74: #{tpu_custom_call.1} parent=0
    _
  %s13 = ssub.s32 1, %s11
  %s14 = scalar_select 0, %s13, %s11
  $region1: #{tpu_custom_call.1} parent=0
    #allocation2 [shape = 'u8[8192]{0}', space=vmem, size = 0x2000, scoped, tag = 'input window, operand 0, single buffered']
    #allocation3 [shape = 's32[1]{0}', space=sflag, size = 0x4, scoped, tag = 'scoped memory for tpu_custom_call.1']
    #allocation4 [shape = 's32[1]{0}', space=sflag, size = 0x4, scoped, tag = 'scoped memory for tpu_custom_call.1']
    #allocation5 [shape = 'u8[8192]{0}', space=vmem, size = 0x2000, scoped, tag = 'input window, operand 2, single buffered']
    #allocation6 [shape = 's32[1]{0}', space=sflag, size = 0x4, scoped, tag = 'scoped memory for tpu_custom_call.1']
    #allocation7 [shape = 'u8[8192]{0}', space=vmem, size = 0x2000, scoped, tag = 'input window, operand 3, single buffered']
    #allocation8 [shape = 'u8[32768]{0}', space=vmem, size = 0x8000, scoped, tag = 'input window, operand 5, single buffered']
    #allocation9 [shape = 's32[1]{0}', space=sflag, size = 0x4, scoped, tag = 'scoped memory for tpu_custom_call.1']
    #allocation10 [shape = 'u8[32768]{0}', space=vmem, size = 0x8000, scoped, tag = 'input window, operand 6, single buffered']
    #allocation11 [shape = 'u8[16384]{0}', space=vmem, size = 0x4000, scoped, tag = 'input window, operand 7, single buffered']
    #allocation12 [shape = 's32[1]{0}', space=sflag, size = 0x4, scoped, tag = 'scoped memory for tpu_custom_call.1']
    #allocation13 [shape = 'u8[8192]{0}', space=vmem, size = 0x2000, scoped, tag = 'output window, operand 0, single buffered']
    %15 = vsyncpa [#allocation3], 0
    %16 = vsyncpa [#allocation6], 0
    %17 = vsyncpa [#allocation9], 0
    %18 = vsyncpa [#allocation12], 0
    %19 = vsyncpa [#allocation4], 0
    // Predicated region
    $region2: #{tpu_custom_call.1} parent=1 // pred_check
      _
    $region3: #{tpu_custom_call.1} parent=1 // pred_check_branch
      %21 = sbr.rel (0) target = $region5
    $region4: #{tpu_custom_call.1} parent=1 // pred_region
      %s23 = ssub.s32 256, 256
      %24 = vsyncadd [#allocation3], %s23
      %s25 = sshll.u32 [#allocation2], 4
      %s26 = int_to_ptr.vmem [resolvable:$true] %s25
      %31 = dma.hbm_to_vmem [thread:$0]  %s0, 256, %s26, [#allocation3], 128, 128, 8
    $region5: #{tpu_custom_call.1} parent=1 // pred_fallthru
      _
    // Predicated region
    $region6: #{tpu_custom_call.1} parent=1 // pred_check
      _
    $region7: #{tpu_custom_call.1} parent=1 // pred_check_branch
      %33 = sbr.rel (0) target = $region9
    $region8: #{tpu_custom_call.1} parent=1 // pred_region
      _
    $region9: #{tpu_custom_call.1} parent=1 // pred_fallthru
      _
    // Predicated region
    $region10: #{tpu_custom_call.1} parent=1 // pred_check
      _
    $region11: #{tpu_custom_call.1} parent=1 // pred_check_branch
      %35 = sbr.rel (0) target = $region13
    $region12: #{tpu_custom_call.1} parent=1 // pred_region
      %s37 = ssub.s32 256, 256
      %38 = vsyncadd [#allocation6], %s37
      %s39 = sshll.u32 [#allocation5], 4
      %s40 = int_to_ptr.vmem [resolvable:$true] %s39
      %45 = dma.hbm_to_vmem [thread:$0]  %s2, 256, %s40, [#allocation6], 128, 128, 8
    $region13: #{tpu_custom_call.1} parent=1 // pred_fallthru
      _
    // Predicated region
    $region14: #{tpu_custom_call.1} parent=1 // pred_check
      _
    $region15: #{tpu_custom_call.1} parent=1 // pred_check_branch
      %47 = sbr.rel (0) target = $region17
    $region16: #{tpu_custom_call.1} parent=1 // pred_region
      %s49 = ssub.s32 256, 256
      %50 = vsyncadd [#allocation6], %s49
      %s51 = sshll.u32 [#allocation7], 4
      %s52 = int_to_ptr.vmem [resolvable:$true] %s51
      %57 = dma.hbm_to_vmem [thread:$0]  %s3, 256, %s52, [#allocation6], 128, 128, 8
    $region17: #{tpu_custom_call.1} parent=1 // pred_fallthru
      _
    // Predicated region
    $region18: #{tpu_custom_call.1} parent=1 // pred_check
      _
    $region19: #{tpu_custom_call.1} parent=1 // pred_check_branch
      %59 = sbr.rel (0) target = $region21
    $region20: #{tpu_custom_call.1} parent=1 // pred_region
      _
    $region21: #{tpu_custom_call.1} parent=1 // pred_fallthru
      _
    // Predicated region
    $region22: #{tpu_custom_call.1} parent=1 // pred_check
      _
    $region23: #{tpu_custom_call.1} parent=1 // pred_check_branch
      %61 = sbr.rel (0) target = $region25
    $region24: #{tpu_custom_call.1} parent=1 // pred_region
      %s63 = ssub.s32 1024, 1024
      %64 = vsyncadd [#allocation9], %s63
      %s65 = sshll.u32 [#allocation8], 4
      %s66 = int_to_ptr.vmem [resolvable:$true] %s65
      %71 = dma.hbm_to_vmem [thread:$0]  %s5, 1024, %s66, [#allocation9], 128, 128, 8
    $region25: #{tpu_custom_call.1} parent=1 // pred_fallthru
      _
    // Predicated region
    $region26: #{tpu_custom_call.1} parent=1 // pred_check
      _
    $region27: #{tpu_custom_call.1} parent=1 // pred_check_branch
      %73 = sbr.rel (0) target = $region29
    $region28: #{tpu_custom_call.1} parent=1 // pred_region
      %s75 = ssub.s32 1024, 1024
      %76 = vsyncadd [#allocation9], %s75
      %s77 = sshll.u32 [#allocation10], 4
      %s78 = int_to_ptr.vmem [resolvable:$true] %s77
      %83 = dma.hbm_to_vmem [thread:$0]  %s6, 1024, %s78, [#allocation9], 128, 128, 8
    $region29: #{tpu_custom_call.1} parent=1 // pred_fallthru
      _
    // Predicated region
    $region30: #{tpu_custom_call.1} parent=1 // pred_check
      _
    $region31: #{tpu_custom_call.1} parent=1 // pred_check_branch
      %85 = sbr.rel (0) target = $region33
    $region32: #{tpu_custom_call.1} parent=1 // pred_region
      %s87 = ssub.s32 512, 512
      %88 = vsyncadd [#allocation12], %s87
      %s89 = sshll.u32 [#allocation11], 4
      %s90 = int_to_ptr.vmem [resolvable:$true] %s89
      %95 = dma.hbm_to_vmem [thread:$0]  %s7, 512, %s90, [#allocation12], 128, 128, 8
    $region33: #{tpu_custom_call.1} parent=1 // pred_fallthru
      _
    // Predicated region
    $region34: #{tpu_custom_call.1} parent=1 // pred_check
      _
    $region35: #{tpu_custom_call.1} parent=1 // pred_check_branch
      %97 = sbr.rel (0) target = $region37
    $region36: #{tpu_custom_call.1} parent=1 // pred_region
      _
    $region37: #{tpu_custom_call.1} parent=1 // pred_fallthru
      _
    // Predicated region
    $region38: #{tpu_custom_call.1} parent=1 // pred_check
      _
    $region39: #{tpu_custom_call.1} parent=1 // pred_check_branch
      %99 = sbr.rel (0) target = $region41
    $region40: #{tpu_custom_call.1} parent=1 // pred_region
      _
    $region41: #{tpu_custom_call.1} parent=1 // pred_fallthru
      _
    // Predicated region
    $region42: #{tpu_custom_call.1} parent=1 // pred_check
      _
    $region43: #{tpu_custom_call.1} parent=1 // pred_check_branch
      %101 = sbr.rel (0) target = $region45
    $region44: #{tpu_custom_call.1} parent=1 // pred_region
      %102 = dma.done [#allocation3], 256
    $region45: #{tpu_custom_call.1} parent=1 // pred_fallthru
      _
    // Predicated region
    $region46: #{tpu_custom_call.1} parent=1 // pred_check
      _
    $region47: #{tpu_custom_call.1} parent=1 // pred_check_branch
      %104 = sbr.rel (0) target = $region49
    $region48: #{tpu_custom_call.1} parent=1 // pred_region
      %105 = dma.done [#allocation6], 256
    $region49: #{tpu_custom_call.1} parent=1 // pred_fallthru
      _
    // Predicated region
    $region50: #{tpu_custom_call.1} parent=1 // pred_check
      _
    $region51: #{tpu_custom_call.1} parent=1 // pred_check_branch
      %107 = sbr.rel (0) target = $region53
    $region52: #{tpu_custom_call.1} parent=1 // pred_region
      %108 = dma.done [#allocation6], 256
    $region53: #{tpu_custom_call.1} parent=1 // pred_fallthru
      _
    // Predicated region
    $region54: #{tpu_custom_call.1} parent=1 // pred_check
      _
    $region55: #{tpu_custom_call.1} parent=1 // pred_check_branch
      %110 = sbr.rel (0) target = $region57
    $region56: #{tpu_custom_call.1} parent=1 // pred_region
      %111 = dma.done [#allocation9], 1024
    $region57: #{tpu_custom_call.1} parent=1 // pred_fallthru
      _
    // Predicated region
    $region58: #{tpu_custom_call.1} parent=1 // pred_check
      _
    $region59: #{tpu_custom_call.1} parent=1 // pred_check_branch
      %113 = sbr.rel (0) target = $region61
    $region60: #{tpu_custom_call.1} parent=1 // pred_region
      %114 = dma.done [#allocation9], 1024
    $region61: #{tpu_custom_call.1} parent=1 // pred_fallthru
      _
    // Predicated region
    $region62: #{tpu_custom_call.1} parent=1 // pred_check
      _
    $region63: #{tpu_custom_call.1} parent=1 // pred_check_branch
      %116 = sbr.rel (0) target = $region65
    $region64: #{tpu_custom_call.1} parent=1 // pred_region
      %117 = dma.done [#allocation12], 512
    $region65: #{tpu_custom_call.1} parent=1 // pred_fallthru
      _
    %v118 = vld [vmem:[#allocation2] sm:$0xff]
    %v119 = vld [vmem:[#allocation2 + $0x8] sm:$0xff]
    %v120 = vld [vmem:[%s1] sm:$0xff]
    %v121 = vld [vmem:[%s1 + $0x8] sm:$0xff]
    %v122 = vld [vmem:[%s1 + $0x10] sm:$0xff]
    %v123 = vld [vmem:[%s1 + $0x18] sm:$0xff]
    %v124 = vld [vmem:[#allocation5] sm:$0xff]
    %v125 = vld [vmem:[#allocation5 + $0x8] sm:$0xff]
    %v126 = vld [vmem:[#allocation7] sm:$0xff]
    %v127 = vld [vmem:[#allocation7 + $0x8] sm:$0xff]
    %v128 = vld [vmem:[%s9] sm:$0xff]
    %v129 = vld [vmem:[%s9 + $0x8] sm:$0x7]
    %vm130 = vcmask 261120
    %v131 = vsel %vm130, %v118, 0.0
    %132 = vadd.xlane.f32.xlu0 %v131
    %v133 = vpop.xlane.xlu0 %132
    %v134 = vsel %vm130, %v119, 0.0
    %135 = vadd.xlane.f32.xlu0 %v134
    %v136 = vpop.xlane.xlu0 %135
    %v137 = vrcp.pop 32.0
    %v138 = vmul.f32 %v133, %v137
    %v139 = vmul.f32 %v136, %v137
    %v140 = vsub.f32 %v118, %v138
    %v141 = vsub.f32 %v119, %v139
    %v142 = vmul.f32 %v140, %v140
    %v143 = vmul.f32 %v141, %v141
    %v144 = vsel %vm130, %v142, 0.0
    %145 = vadd.xlane.f32.xlu0 %v144
    %v146 = vpop.xlane.xlu0 %145
    %v147 = vsel %vm130, %v143, 0.0
    %148 = vadd.xlane.f32.xlu0 %v147
    %v149 = vpop.xlane.xlu0 %148
    %v150 = vmul.f32 %v146, %v137
    %v151 = vmul.f32 %v149, %v137
    %v152 = vadd.f32 %v150, 1e-05
    %v153 = vadd.f32 %v151, 1e-05
    %v154 = vrsqrt.pop %v152
    %v155 = vrsqrt.pop %v153
    %v156 = vmul.f32 %v140, %v154
    %v157 = vmul.f32 %v141, %v155
    %v158 = vlaneseq
    %v159 = vshrl.u32 %v158, 7
    %v160 = vsub.s32 0, %v159
    %v161 = vrot.slane %v128, %v160
    %v162 = vmul.f32 %v156, %v161
    %v163 = vmul.f32 %v157, %v161
    %v164 = vlaneseq
    %v165 = vshrl.u32 %v164, 7
    %v166 = vsub.s32 1, %v165
    %v167 = vrot.slane %v128, %v166
    %v168 = vadd.f32 %v162, %v167
    %v169 = vadd.f32 %v163, %v167
    %v170 = vld [vmem:[%s4] sm:$0xff]
    %v171 = vld [vmem:[%s4 + $0x8] sm:$0xff]
    %v172 = vld [vmem:[%s4 + $0x10] sm:$0xff]
    %v173 = vld [vmem:[%s4 + $0x18] sm:$0xff]
    %v174 = vlaneseq
    %v175 = vshrl.u32 %v174, 7
    %v176 = vsub.s32 4, %v175
    %v177 = vrot.slane %v128, %v176
    %v179 = vsel %vm130, %v168, 0
    %v182 = vsel %vm130, %v169, 0
    %184 = vmatprep.subr.mxu0 0.0
    %185 = vmatpush1.msra.mxu0 0.0
    %186 = vmatprep.subr.mxu0 0.0
    %187 = vmatpush1.msra.mxu0 0.0
    %188 = vmatprep.subr.mxu0 0.0
    %189 = vmatpush1.msra.mxu0 0.0
    %190 = vmatprep.subr.mxu0 0.0
    %191 = vmatpush1.msra.mxu0 0.0
    %192 = vmatprep.subr.mxu0 0.0
    %193 = vmatpush1.msra.mxu0 0.0
    %194 = vmatprep.subr.mxu0 0.0
    %195 = vmatpush1.msra.mxu0 0.0
    %196 = vmatprep.subr.mxu0 0.0
    %197 = vmatpush1.msra.mxu0 0.0
    %198 = vmatprep.subr.mxu0 0.0
    %199 = vmatpush1.msra.mxu0 0.0
    %200 = vmatprep.subr.mxu0 0.0
    %201 = vmatpush1.msra.mxu0 0.0
    %202 = vmatprep.subr.mxu0 0.0
    %203 = vmatpush1.msra.mxu0 0.0
    %204 = vmatprep.subr.mxu0 0.0
    %205 = vmatpush1.msra.mxu0 0.0
    %206 = vmatprep.subr.mxu0 0.0
    %207 = vmatpush1.msra.mxu0 0.0
    %208 = vmatprep.subr.mxu0 0.0
    %209 = vmatpush1.msra.mxu0 %v173
    %210 = vmatprep.subr.mxu0 0.0
    %211 = vmatpush1.msra.mxu0 %v172
    %212 = vmatprep.subr.mxu0 0.0
    %213 = vmatpush1.msra.mxu0 %v171
    %214 = vmatprep.subr.mxu0 0.0
    %215 = vmatpush1.msra.mxu0 %v170
    %216 = vmatprep.subr.mxu0 0.0
    %217 = vmatpush2.msra.mxu0 0.0
    %218 = vmatprep.subr.mxu0 0.0
    %219 = vmatpush2.msra.mxu0 0.0
    %220 = vmatprep.subr.mxu0 0.0
    %221 = vmatpush2.msra.mxu0 0.0
    %222 = vmatprep.subr.mxu0 0.0
    %223 = vmatpush2.msra.mxu0 0.0
    %224 = vmatprep.subr.mxu0 0.0
    %225 = vmatpush2.msra.mxu0 0.0
    %226 = vmatprep.subr.mxu0 0.0
    %227 = vmatpush2.msra.mxu0 0.0
    %228 = vmatprep.subr.mxu0 0.0
    %229 = vmatpush2.msra.mxu0 0.0
    %230 = vmatprep.subr.mxu0 0.0
    %231 = vmatpush2.msra.mxu0 0.0
    %232 = vmatprep.subr.mxu0 0.0
    %233 = vmatpush2.msra.mxu0 0.0
    %234 = vmatprep.subr.mxu0 0.0
    %235 = vmatpush2.msra.mxu0 0.0
    %236 = vmatprep.subr.mxu0 0.0
    %237 = vmatpush2.msra.mxu0 0.0
    %238 = vmatprep.subr.mxu0 0.0
    %239 = vmatpush2.msra.mxu0 0.0
    %240 = vmatprep.subr.mxu0 0.0
    %241 = vmatpush2.msra.mxu0 0.0
    %242 = vmatprep.subr.mxu0 0.0
    %243 = vmatpush2.msra.mxu0 0.0
    %244 = vmatprep.subr.mxu0 0.0
    %245 = vmatpush2.msra.mxu0 0.0
    %246 = vmatprep.subr.mxu0 0.0
    %247 = vmatpush2.msra.mxu0 0.0
    %248 = vmatprep.mubr.f32.mxu0 0.0
    %249 = vmatmul.mubr.f32.gmra.mxu0 %v179
    %v250 = vpop.f32.mrf.mxu0
    %v251 = vadd.f32 %v177, %v250
    %v252 = vpop.f32.mrf.mxu0
    %253 = vmatprep.mubr.f32.mxu0 0.0
    %254 = vmatmul.mubr.f32.gmra.mxu0 %v182
    %v255 = vpop.f32.mrf.mxu0
    %v256 = vadd.f32 %v177, %v255
    %v257 = vpop.f32.mrf.mxu0
    %258 = vdwg.mxu0
    %v259 = vld [vmem:[#allocation8] sm:$0xff]
    %v260 = vld [vmem:[#allocation8 + $0x8] sm:$0xff]
    %v261 = vld [vmem:[#allocation8 + $0x10] sm:$0xff]
    %v262 = vld [vmem:[#allocation8 + $0x18] sm:$0xff]
    %v263 = vld [vmem:[#allocation8 + $0x20] sm:$0xff]
    %v264 = vld [vmem:[#allocation8 + $0x28] sm:$0xff]
    %v265 = vld [vmem:[#allocation8 + $0x30] sm:$0xff]
    %v266 = vld [vmem:[#allocation8 + $0x38] sm:$0xff]
    %268 = vrot.lane.b32.xlu0 %v251, 120
    %v269 = vpop.permute.xlu0 %268
    %270 = vrot.lane.b32.xlu0 %v251, 112
    %v271 = vpop.permute.xlu0 %270
    %272 = vrot.lane.b32.xlu0 %v251, 104
    %v273 = vpop.permute.xlu0 %272
    %275 = vrot.lane.b32.xlu0 %v256, 120
    %v276 = vpop.permute.xlu0 %275
    %277 = vrot.lane.b32.xlu0 %v256, 112
    %v278 = vpop.permute.xlu0 %277
    %279 = vrot.lane.b32.xlu0 %v256, 104
    %v280 = vpop.permute.xlu0 %279
    %281 = vrot.lane.b32.xlu0 %v251, 96
    %v282 = vpop.permute.xlu0 %281
    %vm283 = vcmask 64512
    %v284 = vsel %vm283, %v251, 0
    %v286 = vsel %vm283, %v282, 0
    %288 = vmatprep.subr.mxu0 0.0
    %289 = vmatpush1.xpose.msra.mxu0 0.0
    %290 = vmatprep.subr.mxu0 0.0
    %291 = vmatpush1.xpose.msra.mxu0 0.0
    %292 = vmatprep.subr.mxu0 0.0
    %293 = vmatpush1.xpose.msra.mxu0 0.0
    %294 = vmatprep.subr.mxu0 0.0
    %295 = vmatpush1.xpose.msra.mxu0 0.0
    %296 = vmatprep.subr.mxu0 0.0
    %297 = vmatpush1.xpose.msra.mxu0 0.0
    %298 = vmatprep.subr.mxu0 0.0
    %299 = vmatpush1.xpose.msra.mxu0 0.0
    %300 = vmatprep.subr.mxu0 0.0
    %301 = vmatpush1.xpose.msra.mxu0 0.0
    %302 = vmatprep.subr.mxu0 0.0
    %303 = vmatpush1.xpose.msra.mxu0 0.0
    %304 = vmatprep.subr.mxu0 0.0
    %305 = vmatpush1.xpose.msra.mxu0 0.0
    %306 = vmatprep.subr.mxu0 0.0
    %307 = vmatpush1.xpose.msra.mxu0 0.0
    %308 = vmatprep.subr.mxu0 0.0
    %309 = vmatpush1.xpose.msra.mxu0 0.0
    %310 = vmatprep.subr.mxu0 0.0
    %311 = vmatpush1.xpose.msra.mxu0 0.0
    %312 = vmatprep.subr.mxu0 0.0
    %313 = vmatpush1.xpose.msra.mxu0 0.0
    %314 = vmatprep.subr.mxu0 0.0
    %315 = vmatpush1.xpose.msra.mxu0 0.0
    %316 = vmatprep.subr.mxu0 0.0
    %317 = vmatpush1.xpose.msra.mxu0 0.0
    %318 = vmatprep.subr.mxu0 0.0
    %319 = vmatpush1.xpose.msra.mxu0 %v286
    %320 = vmatprep.subr.mxu0 0.0
    %321 = vmatpush2.xpose.msra.mxu0 0.0
    %322 = vmatprep.subr.mxu0 0.0
    %323 = vmatpush2.xpose.msra.mxu0 0.0
    %324 = vmatprep.subr.mxu0 0.0
    %325 = vmatpush2.xpose.msra.mxu0 0.0
    %326 = vmatprep.subr.mxu0 0.0
    %327 = vmatpush2.xpose.msra.mxu0 0.0
    %328 = vmatprep.subr.mxu0 0.0
    %329 = vmatpush2.xpose.msra.mxu0 0.0
    %330 = vmatprep.subr.mxu0 0.0
    %331 = vmatpush2.xpose.msra.mxu0 0.0
    %332 = vmatprep.subr.mxu0 0.0
    %333 = vmatpush2.xpose.msra.mxu0 0.0
    %334 = vmatprep.subr.mxu0 0.0
    %335 = vmatpush2.xpose.msra.mxu0 0.0
    %336 = vmatprep.subr.mxu0 0.0
    %337 = vmatpush2.xpose.msra.mxu0 0.0
    %338 = vmatprep.subr.mxu0 0.0
    %339 = vmatpush2.xpose.msra.mxu0 0.0
    %340 = vmatprep.subr.mxu0 0.0
    %341 = vmatpush2.xpose.msra.mxu0 0.0
    %342 = vmatprep.subr.mxu0 0.0
    %343 = vmatpush2.xpose.msra.mxu0 0.0
    %344 = vmatprep.subr.mxu0 0.0
    %345 = vmatpush2.xpose.msra.mxu0 0.0
    %346 = vmatprep.subr.mxu0 0.0
    %347 = vmatpush2.xpose.msra.mxu0 0.0
    %348 = vmatprep.subr.mxu0 0.0
    %349 = vmatpush2.xpose.msra.mxu0 0.0
    %350 = vmatprep.subr.mxu0 0.0
    %351 = vmatpush2.xpose.msra.mxu0 0.0
    %352 = vmatprep.mubr.f32.mxu0 0.0
    %353 = vmatmul.mubr.f32.gmra.mxu0 %v284
    %v354 = vpop.f32.mrf.mxu0
    %v355 = vadd.f32 0.0, %v354
    %v356 = vpop.f32.mrf.mxu0
    %357 = vdwg.mxu0
    %358 = vrot.lane.b32.xlu0 %v269, 96
    %v359 = vpop.permute.xlu0 %358
    %v360 = vsel %vm283, %v269, 0
    %v362 = vsel %vm283, %v359, 0
    %364 = vmatprep.subr.mxu0 0.0
    %365 = vmatpush1.xpose.msra.mxu0 0.0
    %366 = vmatprep.subr.mxu0 0.0
    %367 = vmatpush1.xpose.msra.mxu0 0.0
    %368 = vmatprep.subr.mxu0 0.0
    %369 = vmatpush1.xpose.msra.mxu0 0.0
    %370 = vmatprep.subr.mxu0 0.0
    %371 = vmatpush1.xpose.msra.mxu0 0.0
    %372 = vmatprep.subr.mxu0 0.0
    %373 = vmatpush1.xpose.msra.mxu0 0.0
    %374 = vmatprep.subr.mxu0 0.0
    %375 = vmatpush1.xpose.msra.mxu0 0.0
    %376 = vmatprep.subr.mxu0 0.0
    %377 = vmatpush1.xpose.msra.mxu0 0.0
    %378 = vmatprep.subr.mxu0 0.0
    %379 = vmatpush1.xpose.msra.mxu0 0.0
    %380 = vmatprep.subr.mxu0 0.0
    %381 = vmatpush1.xpose.msra.mxu0 0.0
    %382 = vmatprep.subr.mxu0 0.0
    %383 = vmatpush1.xpose.msra.mxu0 0.0
    %384 = vmatprep.subr.mxu0 0.0
    %385 = vmatpush1.xpose.msra.mxu0 0.0
    %386 = vmatprep.subr.mxu0 0.0
    %387 = vmatpush1.xpose.msra.mxu0 0.0
    %388 = vmatprep.subr.mxu0 0.0
    %389 = vmatpush1.xpose.msra.mxu0 0.0
    %390 = vmatprep.subr.mxu0 0.0
    %391 = vmatpush1.xpose.msra.mxu0 0.0
    %392 = vmatprep.subr.mxu0 0.0
    %393 = vmatpush1.xpose.msra.mxu0 0.0
    %394 = vmatprep.subr.mxu0 0.0
    %395 = vmatpush1.xpose.msra.mxu0 %v362
    %396 = vmatprep.subr.mxu0 0.0
    %397 = vmatpush2.xpose.msra.mxu0 0.0
    %398 = vmatprep.subr.mxu0 0.0
    %399 = vmatpush2.xpose.msra.mxu0 0.0
    %400 = vmatprep.subr.mxu0 0.0
    %401 = vmatpush2.xpose.msra.mxu0 0.0
    %402 = vmatprep.subr.mxu0 0.0
    %403 = vmatpush2.xpose.msra.mxu0 0.0
    %404 = vmatprep.subr.mxu0 0.0
    %405 = vmatpush2.xpose.msra.mxu0 0.0
    %406 = vmatprep.subr.mxu0 0.0
    %407 = vmatpush2.xpose.msra.mxu0 0.0
    %408 = vmatprep.subr.mxu0 0.0
    %409 = vmatpush2.xpose.msra.mxu0 0.0
    %410 = vmatprep.subr.mxu0 0.0
    %411 = vmatpush2.xpose.msra.mxu0 0.0
    %412 = vmatprep.subr.mxu0 0.0
    %413 = vmatpush2.xpose.msra.mxu0 0.0
    %414 = vmatprep.subr.mxu0 0.0
    %415 = vmatpush2.xpose.msra.mxu0 0.0
    %416 = vmatprep.subr.mxu0 0.0
    %417 = vmatpush2.xpose.msra.mxu0 0.0
    %418 = vmatprep.subr.mxu0 0.0
    %419 = vmatpush2.xpose.msra.mxu0 0.0
    %420 = vmatprep.subr.mxu0 0.0
    %421 = vmatpush2.xpose.msra.mxu0 0.0
    %422 = vmatprep.subr.mxu0 0.0
    %423 = vmatpush2.xpose.msra.mxu0 0.0
    %424 = vmatprep.subr.mxu0 0.0
    %425 = vmatpush2.xpose.msra.mxu0 0.0
    %426 = vmatprep.subr.mxu0 0.0
    %427 = vmatpush2.xpose.msra.mxu0 0.0
    %428 = vmatprep.mubr.f32.mxu0 0.0
    %429 = vmatmul.mubr.f32.gmra.mxu0 %v360
    %v430 = vpop.f32.mrf.mxu0
    %v431 = vadd.f32 0.0, %v430
    %v432 = vpop.f32.mrf.mxu0
    %433 = vdwg.mxu0
    %434 = vrot.lane.b32.xlu0 %v271, 96
    %v435 = vpop.permute.xlu0 %434
    %v436 = vsel %vm283, %v271, 0
    %v438 = vsel %vm283, %v435, 0
    %440 = vmatprep.subr.mxu0 0.0
    %441 = vmatpush1.xpose.msra.mxu0 0.0
    %442 = vmatprep.subr.mxu0 0.0
    %443 = vmatpush1.xpose.msra.mxu0 0.0
    %444 = vmatprep.subr.mxu0 0.0
    %445 = vmatpush1.xpose.msra.mxu0 0.0
    %446 = vmatprep.subr.mxu0 0.0
    %447 = vmatpush1.xpose.msra.mxu0 0.0
    %448 = vmatprep.subr.mxu0 0.0
    %449 = vmatpush1.xpose.msra.mxu0 0.0
    %450 = vmatprep.subr.mxu0 0.0
    %451 = vmatpush1.xpose.msra.mxu0 0.0
    %452 = vmatprep.subr.mxu0 0.0
    %453 = vmatpush1.xpose.msra.mxu0 0.0
    %454 = vmatprep.subr.mxu0 0.0
    %455 = vmatpush1.xpose.msra.mxu0 0.0
    %456 = vmatprep.subr.mxu0 0.0
    %457 = vmatpush1.xpose.msra.mxu0 0.0
    %458 = vmatprep.subr.mxu0 0.0
    %459 = vmatpush1.xpose.msra.mxu0 0.0
    %460 = vmatprep.subr.mxu0 0.0
    %461 = vmatpush1.xpose.msra.mxu0 0.0
    %462 = vmatprep.subr.mxu0 0.0
    %463 = vmatpush1.xpose.msra.mxu0 0.0
    %464 = vmatprep.subr.mxu0 0.0
    %465 = vmatpush1.xpose.msra.mxu0 0.0
    %466 = vmatprep.subr.mxu0 0.0
    %467 = vmatpush1.xpose.msra.mxu0 0.0
    %468 = vmatprep.subr.mxu0 0.0
    %469 = vmatpush1.xpose.msra.mxu0 0.0
    %470 = vmatprep.subr.mxu0 0.0
    %471 = vmatpush1.xpose.msra.mxu0 %v438
    %472 = vmatprep.subr.mxu0 0.0
    %473 = vmatpush2.xpose.msra.mxu0 0.0
    %474 = vmatprep.subr.mxu0 0.0
    %475 = vmatpush2.xpose.msra.mxu0 0.0
    %476 = vmatprep.subr.mxu0 0.0
    %477 = vmatpush2.xpose.msra.mxu0 0.0
    %478 = vmatprep.subr.mxu0 0.0
    %479 = vmatpush2.xpose.msra.mxu0 0.0
    %480 = vmatprep.subr.mxu0 0.0
    %481 = vmatpush2.xpose.msra.mxu0 0.0
    %482 = vmatprep.subr.mxu0 0.0
    %483 = vmatpush2.xpose.msra.mxu0 0.0
    %484 = vmatprep.subr.mxu0 0.0
    %485 = vmatpush2.xpose.msra.mxu0 0.0
    %486 = vmatprep.subr.mxu0 0.0
    %487 = vmatpush2.xpose.msra.mxu0 0.0
    %488 = vmatprep.subr.mxu0 0.0
    %489 = vmatpush2.xpose.msra.mxu0 0.0
    %490 = vmatprep.subr.mxu0 0.0
    %491 = vmatpush2.xpose.msra.mxu0 0.0
    %492 = vmatprep.subr.mxu0 0.0
    %493 = vmatpush2.xpose.msra.mxu0 0.0
    %494 = vmatprep.subr.mxu0 0.0
    %495 = vmatpush2.xpose.msra.mxu0 0.0
    %496 = vmatprep.subr.mxu0 0.0
    %497 = vmatpush2.xpose.msra.mxu0 0.0
    %498 = vmatprep.subr.mxu0 0.0
    %499 = vmatpush2.xpose.msra.mxu0 0.0
    %500 = vmatprep.subr.mxu0 0.0
    %501 = vmatpush2.xpose.msra.mxu0 0.0
    %502 = vmatprep.subr.mxu0 0.0
    %503 = vmatpush2.xpose.msra.mxu0 0.0
    %504 = vmatprep.mubr.f32.mxu0 0.0
    %505 = vmatmul.mubr.f32.gmra.mxu0 %v436
    %v506 = vpop.f32.mrf.mxu0
    %v507 = vadd.f32 0.0, %v506
    %v508 = vpop.f32.mrf.mxu0
    %509 = vdwg.mxu0
    %510 = vrot.lane.b32.xlu0 %v273, 96
    %v511 = vpop.permute.xlu0 %510
    %v512 = vsel %vm283, %v273, 0
    %v514 = vsel %vm283, %v511, 0
    %516 = vmatprep.subr.mxu0 0.0
    %517 = vmatpush1.xpose.msra.mxu0 0.0
    %518 = vmatprep.subr.mxu0 0.0
    %519 = vmatpush1.xpose.msra.mxu0 0.0
    %520 = vmatprep.subr.mxu0 0.0
    %521 = vmatpush1.xpose.msra.mxu0 0.0
    %522 = vmatprep.subr.mxu0 0.0
    %523 = vmatpush1.xpose.msra.mxu0 0.0
    %524 = vmatprep.subr.mxu0 0.0
    %525 = vmatpush1.xpose.msra.mxu0 0.0
    %526 = vmatprep.subr.mxu0 0.0
    %527 = vmatpush1.xpose.msra.mxu0 0.0
    %528 = vmatprep.subr.mxu0 0.0
    %529 = vmatpush1.xpose.msra.mxu0 0.0
    %530 = vmatprep.subr.mxu0 0.0
    %531 = vmatpush1.xpose.msra.mxu0 0.0
    %532 = vmatprep.subr.mxu0 0.0
    %533 = vmatpush1.xpose.msra.mxu0 0.0
    %534 = vmatprep.subr.mxu0 0.0
    %535 = vmatpush1.xpose.msra.mxu0 0.0
    %536 = vmatprep.subr.mxu0 0.0
    %537 = vmatpush1.xpose.msra.mxu0 0.0
    %538 = vmatprep.subr.mxu0 0.0
    %539 = vmatpush1.xpose.msra.mxu0 0.0
    %540 = vmatprep.subr.mxu0 0.0
    %541 = vmatpush1.xpose.msra.mxu0 0.0
    %542 = vmatprep.subr.mxu0 0.0
    %543 = vmatpush1.xpose.msra.mxu0 0.0
    %544 = vmatprep.subr.mxu0 0.0
    %545 = vmatpush1.xpose.msra.mxu0 0.0
    %546 = vmatprep.subr.mxu0 0.0
    %547 = vmatpush1.xpose.msra.mxu0 %v514
    %548 = vmatprep.subr.mxu0 0.0
    %549 = vmatpush2.xpose.msra.mxu0 0.0
    %550 = vmatprep.subr.mxu0 0.0
    %551 = vmatpush2.xpose.msra.mxu0 0.0
    %552 = vmatprep.subr.mxu0 0.0
    %553 = vmatpush2.xpose.msra.mxu0 0.0
    %554 = vmatprep.subr.mxu0 0.0
    %555 = vmatpush2.xpose.msra.mxu0 0.0
    %556 = vmatprep.subr.mxu0 0.0
    %557 = vmatpush2.xpose.msra.mxu0 0.0
    %558 = vmatprep.subr.mxu0 0.0
    %559 = vmatpush2.xpose.msra.mxu0 0.0
    %560 = vmatprep.subr.mxu0 0.0
    %561 = vmatpush2.xpose.msra.mxu0 0.0
    %562 = vmatprep.subr.mxu0 0.0
    %563 = vmatpush2.xpose.msra.mxu0 0.0
    %564 = vmatprep.subr.mxu0 0.0
    %565 = vmatpush2.xpose.msra.mxu0 0.0
    %566 = vmatprep.subr.mxu0 0.0
    %567 = vmatpush2.xpose.msra.mxu0 0.0
    %568 = vmatprep.subr.mxu0 0.0
    %569 = vmatpush2.xpose.msra.mxu0 0.0
    %570 = vmatprep.subr.mxu0 0.0
    %571 = vmatpush2.xpose.msra.mxu0 0.0
    %572 = vmatprep.subr.mxu0 0.0
    %573 = vmatpush2.xpose.msra.mxu0 0.0
    %574 = vmatprep.subr.mxu0 0.0
    %575 = vmatpush2.xpose.msra.mxu0 0.0
    %576 = vmatprep.subr.mxu0 0.0
    %577 = vmatpush2.xpose.msra.mxu0 0.0
    %578 = vmatprep.subr.mxu0 0.0
    %579 = vmatpush2.xpose.msra.mxu0 0.0
    %580 = vmatprep.mubr.f32.mxu0 0.0
    %581 = vmatmul.mubr.f32.gmra.mxu0 %v512
    %v582 = vpop.f32.mrf.mxu0
    %v583 = vadd.f32 0.0, %v582
    %v584 = vpop.f32.mrf.mxu0
    %585 = vdwg.mxu0
    %586 = vrot.lane.b32.xlu0 %v256, 96
    %v587 = vpop.permute.xlu0 %586
    %v588 = vsel %vm283, %v256, 0
    %v590 = vsel %vm283, %v587, 0
    %592 = vmatprep.subr.mxu0 0.0
    %593 = vmatpush1.xpose.msra.mxu0 0.0
    %594 = vmatprep.subr.mxu0 0.0
    %595 = vmatpush1.xpose.msra.mxu0 0.0
    %596 = vmatprep.subr.mxu0 0.0
    %597 = vmatpush1.xpose.msra.mxu0 0.0
    %598 = vmatprep.subr.mxu0 0.0
    %599 = vmatpush1.xpose.msra.mxu0 0.0
    %600 = vmatprep.subr.mxu0 0.0
    %601 = vmatpush1.xpose.msra.mxu0 0.0
    %602 = vmatprep.subr.mxu0 0.0
    %603 = vmatpush1.xpose.msra.mxu0 0.0
    %604 = vmatprep.subr.mxu0 0.0
    %605 = vmatpush1.xpose.msra.mxu0 0.0
    %606 = vmatprep.subr.mxu0 0.0
    %607 = vmatpush1.xpose.msra.mxu0 0.0
    %608 = vmatprep.subr.mxu0 0.0
    %609 = vmatpush1.xpose.msra.mxu0 0.0
    %610 = vmatprep.subr.mxu0 0.0
    %611 = vmatpush1.xpose.msra.mxu0 0.0
    %612 = vmatprep.subr.mxu0 0.0
    %613 = vmatpush1.xpose.msra.mxu0 0.0
    %614 = vmatprep.subr.mxu0 0.0
    %615 = vmatpush1.xpose.msra.mxu0 0.0
    %616 = vmatprep.subr.mxu0 0.0
    %617 = vmatpush1.xpose.msra.mxu0 0.0
    %618 = vmatprep.subr.mxu0 0.0
    %619 = vmatpush1.xpose.msra.mxu0 0.0
    %620 = vmatprep.subr.mxu0 0.0
    %621 = vmatpush1.xpose.msra.mxu0 0.0
    %622 = vmatprep.subr.mxu0 0.0
    %623 = vmatpush1.xpose.msra.mxu0 %v590
    %624 = vmatprep.subr.mxu0 0.0
    %625 = vmatpush2.xpose.msra.mxu0 0.0
    %626 = vmatprep.subr.mxu0 0.0
    %627 = vmatpush2.xpose.msra.mxu0 0.0
    %628 = vmatprep.subr.mxu0 0.0
    %629 = vmatpush2.xpose.msra.mxu0 0.0
    %630 = vmatprep.subr.mxu0 0.0
    %631 = vmatpush2.xpose.msra.mxu0 0.0
    %632 = vmatprep.subr.mxu0 0.0
    %633 = vmatpush2.xpose.msra.mxu0 0.0
    %634 = vmatprep.subr.mxu0 0.0
    %635 = vmatpush2.xpose.msra.mxu0 0.0
    %636 = vmatprep.subr.mxu0 0.0
    %637 = vmatpush2.xpose.msra.mxu0 0.0
    %638 = vmatprep.subr.mxu0 0.0
    %639 = vmatpush2.xpose.msra.mxu0 0.0
    %640 = vmatprep.subr.mxu0 0.0
    %641 = vmatpush2.xpose.msra.mxu0 0.0
    %642 = vmatprep.subr.mxu0 0.0
    %643 = vmatpush2.xpose.msra.mxu0 0.0
    %644 = vmatprep.subr.mxu0 0.0
    %645 = vmatpush2.xpose.msra.mxu0 0.0
    %646 = vmatprep.subr.mxu0 0.0
    %647 = vmatpush2.xpose.msra.mxu0 0.0
    %648 = vmatprep.subr.mxu0 0.0
    %649 = vmatpush2.xpose.msra.mxu0 0.0
    %650 = vmatprep.subr.mxu0 0.0
    %651 = vmatpush2.xpose.msra.mxu0 0.0
    %652 = vmatprep.subr.mxu0 0.0
    %653 = vmatpush2.xpose.msra.mxu0 0.0
    %654 = vmatprep.subr.mxu0 0.0
    %655 = vmatpush2.xpose.msra.mxu0 0.0
    %656 = vmatprep.mubr.f32.mxu0 0.0
    %657 = vmatmul.mubr.f32.gmra.mxu0 %v588
    %v658 = vpop.f32.mrf.mxu0
    %v659 = vadd.f32 0.0, %v658
    %v660 = vpop.f32.mrf.mxu0
    %661 = vdwg.mxu0
    %662 = vrot.lane.b32.xlu0 %v276, 96
    %v663 = vpop.permute.xlu0 %662
    %v664 = vsel %vm283, %v276, 0
    %v666 = vsel %vm283, %v663, 0
    %668 = vmatprep.subr.mxu0 0.0
    %669 = vmatpush1.xpose.msra.mxu0 0.0
    %670 = vmatprep.subr.mxu0 0.0
    %671 = vmatpush1.xpose.msra.mxu0 0.0
    %672 = vmatprep.subr.mxu0 0.0
    %673 = vmatpush1.xpose.msra.mxu0 0.0
    %674 = vmatprep.subr.mxu0 0.0
    %675 = vmatpush1.xpose.msra.mxu0 0.0
    %676 = vmatprep.subr.mxu0 0.0
    %677 = vmatpush1.xpose.msra.mxu0 0.0
    %678 = vmatprep.subr.mxu0 0.0
    %679 = vmatpush1.xpose.msra.mxu0 0.0
    %680 = vmatprep.subr.mxu0 0.0
    %681 = vmatpush1.xpose.msra.mxu0 0.0
    %682 = vmatprep.subr.mxu0 0.0
    %683 = vmatpush1.xpose.msra.mxu0 0.0
    %684 = vmatprep.subr.mxu0 0.0
    %685 = vmatpush1.xpose.msra.mxu0 0.0
    %686 = vmatprep.subr.mxu0 0.0
    %687 = vmatpush1.xpose.msra.mxu0 0.0
    %688 = vmatprep.subr.mxu0 0.0
    %689 = vmatpush1.xpose.msra.mxu0 0.0
    %690 = vmatprep.subr.mxu0 0.0
    %691 = vmatpush1.xpose.msra.mxu0 0.0
    %692 = vmatprep.subr.mxu0 0.0
    %693 = vmatpush1.xpose.msra.mxu0 0.0
    %694 = vmatprep.subr.mxu0 0.0
    %695 = vmatpush1.xpose.msra.mxu0 0.0
    %696 = vmatprep.subr.mxu0 0.0
    %697 = vmatpush1.xpose.msra.mxu0 0.0
    %698 = vmatprep.subr.mxu0 0.0
    %699 = vmatpush1.xpose.msra.mxu0 %v666
    %700 = vmatprep.subr.mxu0 0.0
    %701 = vmatpush2.xpose.msra.mxu0 0.0
    %702 = vmatprep.subr.mxu0 0.0
    %703 = vmatpush2.xpose.msra.mxu0 0.0
    %704 = vmatprep.subr.mxu0 0.0
    %705 = vmatpush2.xpose.msra.mxu0 0.0
    %706 = vmatprep.subr.mxu0 0.0
    %707 = vmatpush2.xpose.msra.mxu0 0.0
    %708 = vmatprep.subr.mxu0 0.0
    %709 = vmatpush2.xpose.msra.mxu0 0.0
    %710 = vmatprep.subr.mxu0 0.0
    %711 = vmatpush2.xpose.msra.mxu0 0.0
    %712 = vmatprep.subr.mxu0 0.0
    %713 = vmatpush2.xpose.msra.mxu0 0.0
    %714 = vmatprep.subr.mxu0 0.0
    %715 = vmatpush2.xpose.msra.mxu0 0.0
    %716 = vmatprep.subr.mxu0 0.0
    %717 = vmatpush2.xpose.msra.mxu0 0.0
    %718 = vmatprep.subr.mxu0 0.0
    %719 = vmatpush2.xpose.msra.mxu0 0.0
    %720 = vmatprep.subr.mxu0 0.0
    %721 = vmatpush2.xpose.msra.mxu0 0.0
    %722 = vmatprep.subr.mxu0 0.0
    %723 = vmatpush2.xpose.msra.mxu0 0.0
    %724 = vmatprep.subr.mxu0 0.0
    %725 = vmatpush2.xpose.msra.mxu0 0.0
    %726 = vmatprep.subr.mxu0 0.0
    %727 = vmatpush2.xpose.msra.mxu0 0.0
    %728 = vmatprep.subr.mxu0 0.0
    %729 = vmatpush2.xpose.msra.mxu0 0.0
    %730 = vmatprep.subr.mxu0 0.0
    %731 = vmatpush2.xpose.msra.mxu0 0.0
    %732 = vmatprep.mubr.f32.mxu0 0.0
    %733 = vmatmul.mubr.f32.gmra.mxu0 %v664
    %v734 = vpop.f32.mrf.mxu0
    %v735 = vadd.f32 0.0, %v734
    %v736 = vpop.f32.mrf.mxu0
    %737 = vdwg.mxu0
    %738 = vrot.lane.b32.xlu0 %v278, 96
    %v739 = vpop.permute.xlu0 %738
    %v740 = vsel %vm283, %v278, 0
    %v742 = vsel %vm283, %v739, 0
    %744 = vmatprep.subr.mxu0 0.0
    %745 = vmatpush1.xpose.msra.mxu0 0.0
    %746 = vmatprep.subr.mxu0 0.0
    %747 = vmatpush1.xpose.msra.mxu0 0.0
    %748 = vmatprep.subr.mxu0 0.0
    %749 = vmatpush1.xpose.msra.mxu0 0.0
    %750 = vmatprep.subr.mxu0 0.0
    %751 = vmatpush1.xpose.msra.mxu0 0.0
    %752 = vmatprep.subr.mxu0 0.0
    %753 = vmatpush1.xpose.msra.mxu0 0.0
    %754 = vmatprep.subr.mxu0 0.0
    %755 = vmatpush1.xpose.msra.mxu0 0.0
    %756 = vmatprep.subr.mxu0 0.0
    %757 = vmatpush1.xpose.msra.mxu0 0.0
    %758 = vmatprep.subr.mxu0 0.0
    %759 = vmatpush1.xpose.msra.mxu0 0.0
    %760 = vmatprep.subr.mxu0 0.0
    %761 = vmatpush1.xpose.msra.mxu0 0.0
    %762 = vmatprep.subr.mxu0 0.0
    %763 = vmatpush1.xpose.msra.mxu0 0.0
    %764 = vmatprep.subr.mxu0 0.0
    %765 = vmatpush1.xpose.msra.mxu0 0.0
    %766 = vmatprep.subr.mxu0 0.0
    %767 = vmatpush1.xpose.msra.mxu0 0.0
    %768 = vmatprep.subr.mxu0 0.0
    %769 = vmatpush1.xpose.msra.mxu0 0.0
    %770 = vmatprep.subr.mxu0 0.0
    %771 = vmatpush1.xpose.msra.mxu0 0.0
    %772 = vmatprep.subr.mxu0 0.0
    %773 = vmatpush1.xpose.msra.mxu0 0.0
    %774 = vmatprep.subr.mxu0 0.0
    %775 = vmatpush1.xpose.msra.mxu0 %v742
    %776 = vmatprep.subr.mxu0 0.0
    %777 = vmatpush2.xpose.msra.mxu0 0.0
    %778 = vmatprep.subr.mxu0 0.0
    %779 = vmatpush2.xpose.msra.mxu0 0.0
    %780 = vmatprep.subr.mxu0 0.0
    %781 = vmatpush2.xpose.msra.mxu0 0.0
    %782 = vmatprep.subr.mxu0 0.0
    %783 = vmatpush2.xpose.msra.mxu0 0.0
    %784 = vmatprep.subr.mxu0 0.0
    %785 = vmatpush2.xpose.msra.mxu0 0.0
    %786 = vmatprep.subr.mxu0 0.0
    %787 = vmatpush2.xpose.msra.mxu0 0.0
    %788 = vmatprep.subr.mxu0 0.0
    %789 = vmatpush2.xpose.msra.mxu0 0.0
    %790 = vmatprep.subr.mxu0 0.0
    %791 = vmatpush2.xpose.msra.mxu0 0.0
    %792 = vmatprep.subr.mxu0 0.0
    %793 = vmatpush2.xpose.msra.mxu0 0.0
    %794 = vmatprep.subr.mxu0 0.0
    %795 = vmatpush2.xpose.msra.mxu0 0.0
    %796 = vmatprep.subr.mxu0 0.0
    %797 = vmatpush2.xpose.msra.mxu0 0.0
    %798 = vmatprep.subr.mxu0 0.0
    %799 = vmatpush2.xpose.msra.mxu0 0.0
    %800 = vmatprep.subr.mxu0 0.0
    %801 = vmatpush2.xpose.msra.mxu0 0.0
    %802 = vmatprep.subr.mxu0 0.0
    %803 = vmatpush2.xpose.msra.mxu0 0.0
    %804 = vmatprep.subr.mxu0 0.0
    %805 = vmatpush2.xpose.msra.mxu0 0.0
    %806 = vmatprep.subr.mxu0 0.0
    %807 = vmatpush2.xpose.msra.mxu0 0.0
    %808 = vmatprep.mubr.f32.mxu0 0.0
    %809 = vmatmul.mubr.f32.gmra.mxu0 %v740
    %v810 = vpop.f32.mrf.mxu0
    %v811 = vadd.f32 0.0, %v810
    %v812 = vpop.f32.mrf.mxu0
    %813 = vdwg.mxu0
    %814 = vrot.lane.b32.xlu0 %v280, 96
    %v815 = vpop.permute.xlu0 %814
    %v816 = vsel %vm283, %v280, 0
    %v818 = vsel %vm283, %v815, 0
    %820 = vmatprep.subr.mxu0 0.0
    %821 = vmatpush1.xpose.msra.mxu0 0.0
    %822 = vmatprep.subr.mxu0 0.0
    %823 = vmatpush1.xpose.msra.mxu0 0.0
    %824 = vmatprep.subr.mxu0 0.0
    %825 = vmatpush1.xpose.msra.mxu0 0.0
    %826 = vmatprep.subr.mxu0 0.0
    %827 = vmatpush1.xpose.msra.mxu0 0.0
    %828 = vmatprep.subr.mxu0 0.0
    %829 = vmatpush1.xpose.msra.mxu0 0.0
    %830 = vmatprep.subr.mxu0 0.0
    %831 = vmatpush1.xpose.msra.mxu0 0.0
    %832 = vmatprep.subr.mxu0 0.0
    %833 = vmatpush1.xpose.msra.mxu0 0.0
    %834 = vmatprep.subr.mxu0 0.0
    %835 = vmatpush1.xpose.msra.mxu0 0.0
    %836 = vmatprep.subr.mxu0 0.0
    %837 = vmatpush1.xpose.msra.mxu0 0.0
    %838 = vmatprep.subr.mxu0 0.0
    %839 = vmatpush1.xpose.msra.mxu0 0.0
    %840 = vmatprep.subr.mxu0 0.0
    %841 = vmatpush1.xpose.msra.mxu0 0.0
    %842 = vmatprep.subr.mxu0 0.0
    %843 = vmatpush1.xpose.msra.mxu0 0.0
    %844 = vmatprep.subr.mxu0 0.0
    %845 = vmatpush1.xpose.msra.mxu0 0.0
    %846 = vmatprep.subr.mxu0 0.0
    %847 = vmatpush1.xpose.msra.mxu0 0.0
    %848 = vmatprep.subr.mxu0 0.0
    %849 = vmatpush1.xpose.msra.mxu0 0.0
    %850 = vmatprep.subr.mxu0 0.0
    %851 = vmatpush1.xpose.msra.mxu0 %v818
    %852 = vmatprep.subr.mxu0 0.0
    %853 = vmatpush2.xpose.msra.mxu0 0.0
    %854 = vmatprep.subr.mxu0 0.0
    %855 = vmatpush2.xpose.msra.mxu0 0.0
    %856 = vmatprep.subr.mxu0 0.0
    %857 = vmatpush2.xpose.msra.mxu0 0.0
    %858 = vmatprep.subr.mxu0 0.0
    %859 = vmatpush2.xpose.msra.mxu0 0.0
    %860 = vmatprep.subr.mxu0 0.0
    %861 = vmatpush2.xpose.msra.mxu0 0.0
    %862 = vmatprep.subr.mxu0 0.0
    %863 = vmatpush2.xpose.msra.mxu0 0.0
    %864 = vmatprep.subr.mxu0 0.0
    %865 = vmatpush2.xpose.msra.mxu0 0.0
    %866 = vmatprep.subr.mxu0 0.0
    %867 = vmatpush2.xpose.msra.mxu0 0.0
    %868 = vmatprep.subr.mxu0 0.0
    %869 = vmatpush2.xpose.msra.mxu0 0.0
    %870 = vmatprep.subr.mxu0 0.0
    %871 = vmatpush2.xpose.msra.mxu0 0.0
    %872 = vmatprep.subr.mxu0 0.0
    %873 = vmatpush2.xpose.msra.mxu0 0.0
    %874 = vmatprep.subr.mxu0 0.0
    %875 = vmatpush2.xpose.msra.mxu0 0.0
    %876 = vmatprep.subr.mxu0 0.0
    %877 = vmatpush2.xpose.msra.mxu0 0.0
    %878 = vmatprep.subr.mxu0 0.0
    %879 = vmatpush2.xpose.msra.mxu0 0.0
    %880 = vmatprep.subr.mxu0 0.0
    %881 = vmatpush2.xpose.msra.mxu0 0.0
    %882 = vmatprep.subr.mxu0 0.0
    %883 = vmatpush2.xpose.msra.mxu0 0.0
    %884 = vmatprep.mubr.f32.mxu0 0.0
    %885 = vmatmul.mubr.f32.gmra.mxu0 %v816
    %v886 = vpop.f32.mrf.mxu0
    %v887 = vadd.f32 0.0, %v886
    %v888 = vpop.f32.mrf.mxu0
    %889 = vdwg.mxu0
    %v890 = vmul.f32 %v355, 0.35355338
    %v891 = vmul.f32 %v431, 0.35355338
    %v892 = vmul.f32 %v507, 0.35355338
    %v893 = vmul.f32 %v583, 0.35355338
    %v894 = vmul.f32 %v659, 0.35355338
    %v895 = vmul.f32 %v735, 0.35355338
    %v896 = vmul.f32 %v811, 0.35355338
    %v897 = vmul.f32 %v887, 0.35355338
    %vm898 = vcmp.eq.s32.totalorder %v124, 0
    %vm899 = vcmp.eq.s32.totalorder %v125, 0
    %v900 = vsel %vm898, -1e+09, %v890
    %v901 = vsel %vm898, -1e+09, %v891
    %v902 = vsel %vm898, -1e+09, %v892
    %v903 = vsel %vm898, -1e+09, %v893
    %v904 = vsel %vm899, -1e+09, %v894
    %v905 = vsel %vm899, -1e+09, %v895
    %v906 = vsel %vm899, -1e+09, %v896
    %v907 = vsel %vm899, -1e+09, %v897
    %v908 = vsel %vm283, %v900, -inf
    %909 = vmax.xlane.f32.xlu0 %v908
    %v910 = vpop.xlane.xlu0 %909
    %v911 = vsel %vm283, %v901, -inf
    %912 = vmax.xlane.f32.xlu0 %v911
    %v913 = vpop.xlane.xlu0 %912
    %v914 = vsel %vm283, %v902, -inf
    %915 = vmax.xlane.f32.xlu0 %v914
    %v916 = vpop.xlane.xlu0 %915
    %v917 = vsel %vm283, %v903, -inf
    %918 = vmax.xlane.f32.xlu0 %v917
    %v919 = vpop.xlane.xlu0 %918
    %v920 = vsel %vm283, %v904, -inf
    %921 = vmax.xlane.f32.xlu0 %v920
    %v922 = vpop.xlane.xlu0 %921
    %v923 = vsel %vm283, %v905, -inf
    %924 = vmax.xlane.f32.xlu0 %v923
    %v925 = vpop.xlane.xlu0 %924
    %v926 = vsel %vm283, %v906, -inf
    %927 = vmax.xlane.f32.xlu0 %v926
    %v928 = vpop.xlane.xlu0 %927
    %v929 = vsel %vm283, %v907, -inf
    %930 = vmax.xlane.f32.xlu0 %v929
    %v931 = vpop.xlane.xlu0 %930
    %v932 = vsub.f32 %v900, %v910
    %v933 = vsub.f32 %v901, %v913
    %v934 = vsub.f32 %v902, %v916
    %v935 = vsub.f32 %v903, %v919
    %v936 = vsub.f32 %v904, %v922
    %v937 = vsub.f32 %v905, %v925
    %v938 = vsub.f32 %v906, %v928
    %v939 = vsub.f32 %v907, %v931
    %v940 = vmul.f32 %v932, 1.442695
    %v941 = vpow.pop %v940
    %v942 = vmul.f32 %v933, 1.442695
    %v943 = vpow.pop %v942
    %v944 = vmul.f32 %v934, 1.442695
    %v945 = vpow.pop %v944
    %v946 = vmul.f32 %v935, 1.442695
    %v947 = vpow.pop %v946
    %v948 = vmul.f32 %v936, 1.442695
    %v949 = vpow.pop %v948
    %v950 = vmul.f32 %v937, 1.442695
    %v951 = vpow.pop %v950
    %v952 = vmul.f32 %v938, 1.442695
    %v953 = vpow.pop %v952
    %v954 = vmul.f32 %v939, 1.442695
    %v955 = vpow.pop %v954
    %v956 = vsel %vm283, %v941, 0.0
    %957 = vadd.xlane.f32.xlu0 %v956
    %v958 = vpop.xlane.xlu0 %957
    %v959 = vsel %vm283, %v943, 0.0
    %960 = vadd.xlane.f32.xlu0 %v959
    %v961 = vpop.xlane.xlu0 %960
    %v962 = vsel %vm283, %v945, 0.0
    %963 = vadd.xlane.f32.xlu0 %v962
    %v964 = vpop.xlane.xlu0 %963
    %v965 = vsel %vm283, %v947, 0.0
    %966 = vadd.xlane.f32.xlu0 %v965
    %v967 = vpop.xlane.xlu0 %966
    %v968 = vsel %vm283, %v949, 0.0
    %969 = vadd.xlane.f32.xlu0 %v968
    %v970 = vpop.xlane.xlu0 %969
    %v971 = vsel %vm283, %v951, 0.0
    %972 = vadd.xlane.f32.xlu0 %v971
    %v973 = vpop.xlane.xlu0 %972
    %v974 = vsel %vm283, %v953, 0.0
    %975 = vadd.xlane.f32.xlu0 %v974
    %v976 = vpop.xlane.xlu0 %975
    %v977 = vsel %vm283, %v955, 0.0
    %978 = vadd.xlane.f32.xlu0 %v977
    %v979 = vpop.xlane.xlu0 %978
    %v980 = vrcp.pop %v958
    %v981 = vrcp.pop %v961
    %v982 = vrcp.pop %v964
    %v983 = vrcp.pop %v967
    %v984 = vrcp.pop %v970
    %v985 = vrcp.pop %v973
    %v986 = vrcp.pop %v976
    %v987 = vrcp.pop %v979
    %v988 = vmul.f32 %v941, %v980
    %v989 = vmul.f32 %v943, %v981
    %v990 = vmul.f32 %v945, %v982
    %v991 = vmul.f32 %v947, %v983
    %v992 = vmul.f32 %v949, %v984
    %v993 = vmul.f32 %v951, %v985
    %v994 = vmul.f32 %v953, %v986
    %v995 = vmul.f32 %v955, %v987
    %996 = vrot.lane.b32.xlu0 %v251, 64
    %v997 = vpop.permute.xlu0 %996
    %v1000 = vsel %vm283, %v988, 0
    %1002 = vmatprep.subr.mxu0 0.0
    %1003 = vmatpush1.msra.mxu0 0.0
    %1004 = vmatprep.subr.mxu0 0.0
    %1005 = vmatpush1.msra.mxu0 0.0
    %1006 = vmatprep.subr.mxu0 0.0
    %1007 = vmatpush1.msra.mxu0 0.0
    %1008 = vmatprep.subr.mxu0 0.0
    %1009 = vmatpush1.msra.mxu0 0.0
    %1010 = vmatprep.subr.mxu0 0.0
    %1011 = vmatpush1.msra.mxu0 0.0
    %1012 = vmatprep.subr.mxu0 0.0
    %1013 = vmatpush1.msra.mxu0 0.0
    %1014 = vmatprep.subr.mxu0 0.0
    %1015 = vmatpush1.msra.mxu0 0.0
    %1016 = vmatprep.subr.mxu0 0.0
    %1017 = vmatpush1.msra.mxu0 0.0
    %1018 = vmatprep.subr.mxu0 0.0
    %1019 = vmatpush1.msra.mxu0 0.0
    %1020 = vmatprep.subr.mxu0 0.0
    %1021 = vmatpush1.msra.mxu0 0.0
    %1022 = vmatprep.subr.mxu0 0.0
    %1023 = vmatpush1.msra.mxu0 0.0
    %1024 = vmatprep.subr.mxu0 0.0
    %1025 = vmatpush1.msra.mxu0 0.0
    %1026 = vmatprep.subr.mxu0 0.0
    %1027 = vmatpush1.msra.mxu0 0.0
    %1028 = vmatprep.subr.mxu0 0.0
    %1029 = vmatpush1.msra.mxu0 0.0
    %1030 = vmatprep.subr.mxu0 0.0
    %1031 = vmatpush1.msra.mxu0 0.0
    %1032 = vmatprep.subr.mxu0 0.0
    %1033 = vmatpush1.msra.mxu0 %v997
    %1034 = vmatprep.subr.mxu0 0.0
    %1035 = vmatpush2.msra.mxu0 0.0
    %1036 = vmatprep.subr.mxu0 0.0
    %1037 = vmatpush2.msra.mxu0 0.0
    %1038 = vmatprep.subr.mxu0 0.0
    %1039 = vmatpush2.msra.mxu0 0.0
    %1040 = vmatprep.subr.mxu0 0.0
    %1041 = vmatpush2.msra.mxu0 0.0
    %1042 = vmatprep.subr.mxu0 0.0
    %1043 = vmatpush2.msra.mxu0 0.0
    %1044 = vmatprep.subr.mxu0 0.0
    %1045 = vmatpush2.msra.mxu0 0.0
    %1046 = vmatprep.subr.mxu0 0.0
    %1047 = vmatpush2.msra.mxu0 0.0
    %1048 = vmatprep.subr.mxu0 0.0
    %1049 = vmatpush2.msra.mxu0 0.0
    %1050 = vmatprep.subr.mxu0 0.0
    %1051 = vmatpush2.msra.mxu0 0.0
    %1052 = vmatprep.subr.mxu0 0.0
    %1053 = vmatpush2.msra.mxu0 0.0
    %1054 = vmatprep.subr.mxu0 0.0
    %1055 = vmatpush2.msra.mxu0 0.0
    %1056 = vmatprep.subr.mxu0 0.0
    %1057 = vmatpush2.msra.mxu0 0.0
    %1058 = vmatprep.subr.mxu0 0.0
    %1059 = vmatpush2.msra.mxu0 0.0
    %1060 = vmatprep.subr.mxu0 0.0
    %1061 = vmatpush2.msra.mxu0 0.0
    %1062 = vmatprep.subr.mxu0 0.0
    %1063 = vmatpush2.msra.mxu0 0.0
    %1064 = vmatprep.subr.mxu0 0.0
    %1065 = vmatpush2.msra.mxu0 0.0
    %1066 = vmatprep.mubr.f32.mxu0 0.0
    %1067 = vmatmul.mubr.f32.gmra.mxu0 %v1000
    %v1068 = vpop.f32.mrf.mxu0
    %v1069 = vadd.f32 0.0, %v1068
    %v1070 = vpop.f32.mrf.mxu0
    %1071 = vdwg.mxu0
    %1072 = vrot.lane.b32.xlu0 %v269, 64
    %v1073 = vpop.permute.xlu0 %1072
    %v1076 = vsel %vm283, %v989, 0
    %1078 = vmatprep.subr.mxu0 0.0
    %1079 = vmatpush1.msra.mxu0 0.0
    %1080 = vmatprep.subr.mxu0 0.0
    %1081 = vmatpush1.msra.mxu0 0.0
    %1082 = vmatprep.subr.mxu0 0.0
    %1083 = vmatpush1.msra.mxu0 0.0
    %1084 = vmatprep.subr.mxu0 0.0
    %1085 = vmatpush1.msra.mxu0 0.0
    %1086 = vmatprep.subr.mxu0 0.0
    %1087 = vmatpush1.msra.mxu0 0.0
    %1088 = vmatprep.subr.mxu0 0.0
    %1089 = vmatpush1.msra.mxu0 0.0
    %1090 = vmatprep.subr.mxu0 0.0
    %1091 = vmatpush1.msra.mxu0 0.0
    %1092 = vmatprep.subr.mxu0 0.0
    %1093 = vmatpush1.msra.mxu0 0.0
    %1094 = vmatprep.subr.mxu0 0.0
    %1095 = vmatpush1.msra.mxu0 0.0
    %1096 = vmatprep.subr.mxu0 0.0
    %1097 = vmatpush1.msra.mxu0 0.0
    %1098 = vmatprep.subr.mxu0 0.0
    %1099 = vmatpush1.msra.mxu0 0.0
    %1100 = vmatprep.subr.mxu0 0.0
    %1101 = vmatpush1.msra.mxu0 0.0
    %1102 = vmatprep.subr.mxu0 0.0
    %1103 = vmatpush1.msra.mxu0 0.0
    %1104 = vmatprep.subr.mxu0 0.0
    %1105 = vmatpush1.msra.mxu0 0.0
    %1106 = vmatprep.subr.mxu0 0.0
    %1107 = vmatpush1.msra.mxu0 0.0
    %1108 = vmatprep.subr.mxu0 0.0
    %1109 = vmatpush1.msra.mxu0 %v1073
    %1110 = vmatprep.subr.mxu0 0.0
    %1111 = vmatpush2.msra.mxu0 0.0
    %1112 = vmatprep.subr.mxu0 0.0
    %1113 = vmatpush2.msra.mxu0 0.0
    %1114 = vmatprep.subr.mxu0 0.0
    %1115 = vmatpush2.msra.mxu0 0.0
    %1116 = vmatprep.subr.mxu0 0.0
    %1117 = vmatpush2.msra.mxu0 0.0
    %1118 = vmatprep.subr.mxu0 0.0
    %1119 = vmatpush2.msra.mxu0 0.0
    %1120 = vmatprep.subr.mxu0 0.0
    %1121 = vmatpush2.msra.mxu0 0.0
    %1122 = vmatprep.subr.mxu0 0.0
    %1123 = vmatpush2.msra.mxu0 0.0
    %1124 = vmatprep.subr.mxu0 0.0
    %1125 = vmatpush2.msra.mxu0 0.0
    %1126 = vmatprep.subr.mxu0 0.0
    %1127 = vmatpush2.msra.mxu0 0.0
    %1128 = vmatprep.subr.mxu0 0.0
    %1129 = vmatpush2.msra.mxu0 0.0
    %1130 = vmatprep.subr.mxu0 0.0
    %1131 = vmatpush2.msra.mxu0 0.0
    %1132 = vmatprep.subr.mxu0 0.0
    %1133 = vmatpush2.msra.mxu0 0.0
    %1134 = vmatprep.subr.mxu0 0.0
    %1135 = vmatpush2.msra.mxu0 0.0
    %1136 = vmatprep.subr.mxu0 0.0
    %1137 = vmatpush2.msra.mxu0 0.0
    %1138 = vmatprep.subr.mxu0 0.0
    %1139 = vmatpush2.msra.mxu0 0.0
    %1140 = vmatprep.subr.mxu0 0.0
    %1141 = vmatpush2.msra.mxu0 0.0
    %1142 = vmatprep.mubr.f32.mxu0 0.0
    %1143 = vmatmul.mubr.f32.gmra.mxu0 %v1076
    %v1144 = vpop.f32.mrf.mxu0
    %v1145 = vadd.f32 0.0, %v1144
    %v1146 = vpop.f32.mrf.mxu0
    %1147 = vdwg.mxu0
    %1148 = vrot.lane.b32.xlu0 %v271, 64
    %v1149 = vpop.permute.xlu0 %1148
    %v1152 = vsel %vm283, %v990, 0
    %1154 = vmatprep.subr.mxu0 0.0
    %1155 = vmatpush1.msra.mxu0 0.0
    %1156 = vmatprep.subr.mxu0 0.0
    %1157 = vmatpush1.msra.mxu0 0.0
    %1158 = vmatprep.subr.mxu0 0.0
    %1159 = vmatpush1.msra.mxu0 0.0
    %1160 = vmatprep.subr.mxu0 0.0
    %1161 = vmatpush1.msra.mxu0 0.0
    %1162 = vmatprep.subr.mxu0 0.0
    %1163 = vmatpush1.msra.mxu0 0.0
    %1164 = vmatprep.subr.mxu0 0.0
    %1165 = vmatpush1.msra.mxu0 0.0
    %1166 = vmatprep.subr.mxu0 0.0
    %1167 = vmatpush1.msra.mxu0 0.0
    %1168 = vmatprep.subr.mxu0 0.0
    %1169 = vmatpush1.msra.mxu0 0.0
    %1170 = vmatprep.subr.mxu0 0.0
    %1171 = vmatpush1.msra.mxu0 0.0
    %1172 = vmatprep.subr.mxu0 0.0
    %1173 = vmatpush1.msra.mxu0 0.0
    %1174 = vmatprep.subr.mxu0 0.0
    %1175 = vmatpush1.msra.mxu0 0.0
    %1176 = vmatprep.subr.mxu0 0.0
    %1177 = vmatpush1.msra.mxu0 0.0
    %1178 = vmatprep.subr.mxu0 0.0
    %1179 = vmatpush1.msra.mxu0 0.0
    %1180 = vmatprep.subr.mxu0 0.0
    %1181 = vmatpush1.msra.mxu0 0.0
    %1182 = vmatprep.subr.mxu0 0.0
    %1183 = vmatpush1.msra.mxu0 0.0
    %1184 = vmatprep.subr.mxu0 0.0
    %1185 = vmatpush1.msra.mxu0 %v1149
    %1186 = vmatprep.subr.mxu0 0.0
    %1187 = vmatpush2.msra.mxu0 0.0
    %1188 = vmatprep.subr.mxu0 0.0
    %1189 = vmatpush2.msra.mxu0 0.0
    %1190 = vmatprep.subr.mxu0 0.0
    %1191 = vmatpush2.msra.mxu0 0.0
    %1192 = vmatprep.subr.mxu0 0.0
    %1193 = vmatpush2.msra.mxu0 0.0
    %1194 = vmatprep.subr.mxu0 0.0
    %1195 = vmatpush2.msra.mxu0 0.0
    %1196 = vmatprep.subr.mxu0 0.0
    %1197 = vmatpush2.msra.mxu0 0.0
    %1198 = vmatprep.subr.mxu0 0.0
    %1199 = vmatpush2.msra.mxu0 0.0
    %1200 = vmatprep.subr.mxu0 0.0
    %1201 = vmatpush2.msra.mxu0 0.0
    %1202 = vmatprep.subr.mxu0 0.0
    %1203 = vmatpush2.msra.mxu0 0.0
    %1204 = vmatprep.subr.mxu0 0.0
    %1205 = vmatpush2.msra.mxu0 0.0
    %1206 = vmatprep.subr.mxu0 0.0
    %1207 = vmatpush2.msra.mxu0 0.0
    %1208 = vmatprep.subr.mxu0 0.0
    %1209 = vmatpush2.msra.mxu0 0.0
    %1210 = vmatprep.subr.mxu0 0.0
    %1211 = vmatpush2.msra.mxu0 0.0
    %1212 = vmatprep.subr.mxu0 0.0
    %1213 = vmatpush2.msra.mxu0 0.0
    %1214 = vmatprep.subr.mxu0 0.0
    %1215 = vmatpush2.msra.mxu0 0.0
    %1216 = vmatprep.subr.mxu0 0.0
    %1217 = vmatpush2.msra.mxu0 0.0
    %1218 = vmatprep.mubr.f32.mxu0 0.0
    %1219 = vmatmul.mubr.f32.gmra.mxu0 %v1152
    %v1220 = vpop.f32.mrf.mxu0
    %v1221 = vadd.f32 0.0, %v1220
    %v1222 = vpop.f32.mrf.mxu0
    %1223 = vdwg.mxu0
    %1224 = vrot.lane.b32.xlu0 %v273, 64
    %v1225 = vpop.permute.xlu0 %1224
    %v1228 = vsel %vm283, %v991, 0
    %1230 = vmatprep.subr.mxu0 0.0
    %1231 = vmatpush1.msra.mxu0 0.0
    %1232 = vmatprep.subr.mxu0 0.0
    %1233 = vmatpush1.msra.mxu0 0.0
    %1234 = vmatprep.subr.mxu0 0.0
    %1235 = vmatpush1.msra.mxu0 0.0
    %1236 = vmatprep.subr.mxu0 0.0
    %1237 = vmatpush1.msra.mxu0 0.0
    %1238 = vmatprep.subr.mxu0 0.0
    %1239 = vmatpush1.msra.mxu0 0.0
    %1240 = vmatprep.subr.mxu0 0.0
    %1241 = vmatpush1.msra.mxu0 0.0
    %1242 = vmatprep.subr.mxu0 0.0
    %1243 = vmatpush1.msra.mxu0 0.0
    %1244 = vmatprep.subr.mxu0 0.0
    %1245 = vmatpush1.msra.mxu0 0.0
    %1246 = vmatprep.subr.mxu0 0.0
    %1247 = vmatpush1.msra.mxu0 0.0
    %1248 = vmatprep.subr.mxu0 0.0
    %1249 = vmatpush1.msra.mxu0 0.0
    %1250 = vmatprep.subr.mxu0 0.0
    %1251 = vmatpush1.msra.mxu0 0.0
    %1252 = vmatprep.subr.mxu0 0.0
    %1253 = vmatpush1.msra.mxu0 0.0
    %1254 = vmatprep.subr.mxu0 0.0
    %1255 = vmatpush1.msra.mxu0 0.0
    %1256 = vmatprep.subr.mxu0 0.0
    %1257 = vmatpush1.msra.mxu0 0.0
    %1258 = vmatprep.subr.mxu0 0.0
    %1259 = vmatpush1.msra.mxu0 0.0
    %1260 = vmatprep.subr.mxu0 0.0
    %1261 = vmatpush1.msra.mxu0 %v1225
    %1262 = vmatprep.subr.mxu0 0.0
    %1263 = vmatpush2.msra.mxu0 0.0
    %1264 = vmatprep.subr.mxu0 0.0
    %1265 = vmatpush2.msra.mxu0 0.0
    %1266 = vmatprep.subr.mxu0 0.0
    %1267 = vmatpush2.msra.mxu0 0.0
    %1268 = vmatprep.subr.mxu0 0.0
    %1269 = vmatpush2.msra.mxu0 0.0
    %1270 = vmatprep.subr.mxu0 0.0
    %1271 = vmatpush2.msra.mxu0 0.0
    %1272 = vmatprep.subr.mxu0 0.0
    %1273 = vmatpush2.msra.mxu0 0.0
    %1274 = vmatprep.subr.mxu0 0.0
    %1275 = vmatpush2.msra.mxu0 0.0
    %1276 = vmatprep.subr.mxu0 0.0
    %1277 = vmatpush2.msra.mxu0 0.0
    %1278 = vmatprep.subr.mxu0 0.0
    %1279 = vmatpush2.msra.mxu0 0.0
    %1280 = vmatprep.subr.mxu0 0.0
    %1281 = vmatpush2.msra.mxu0 0.0
    %1282 = vmatprep.subr.mxu0 0.0
    %1283 = vmatpush2.msra.mxu0 0.0
    %1284 = vmatprep.subr.mxu0 0.0
    %1285 = vmatpush2.msra.mxu0 0.0
    %1286 = vmatprep.subr.mxu0 0.0
    %1287 = vmatpush2.msra.mxu0 0.0
    %1288 = vmatprep.subr.mxu0 0.0
    %1289 = vmatpush2.msra.mxu0 0.0
    %1290 = vmatprep.subr.mxu0 0.0
    %1291 = vmatpush2.msra.mxu0 0.0
    %1292 = vmatprep.subr.mxu0 0.0
    %1293 = vmatpush2.msra.mxu0 0.0
    %1294 = vmatprep.mubr.f32.mxu0 0.0
    %1295 = vmatmul.mubr.f32.gmra.mxu0 %v1228
    %v1296 = vpop.f32.mrf.mxu0
    %v1297 = vadd.f32 0.0, %v1296
    %v1298 = vpop.f32.mrf.mxu0
    %1299 = vdwg.mxu0
    %1300 = vrot.lane.b32.xlu0 %v256, 64
    %v1301 = vpop.permute.xlu0 %1300
    %v1304 = vsel %vm283, %v992, 0
    %1306 = vmatprep.subr.mxu0 0.0
    %1307 = vmatpush1.msra.mxu0 0.0
    %1308 = vmatprep.subr.mxu0 0.0
    %1309 = vmatpush1.msra.mxu0 0.0
    %1310 = vmatprep.subr.mxu0 0.0
    %1311 = vmatpush1.msra.mxu0 0.0
    %1312 = vmatprep.subr.mxu0 0.0
    %1313 = vmatpush1.msra.mxu0 0.0
    %1314 = vmatprep.subr.mxu0 0.0
    %1315 = vmatpush1.msra.mxu0 0.0
    %1316 = vmatprep.subr.mxu0 0.0
    %1317 = vmatpush1.msra.mxu0 0.0
    %1318 = vmatprep.subr.mxu0 0.0
    %1319 = vmatpush1.msra.mxu0 0.0
    %1320 = vmatprep.subr.mxu0 0.0
    %1321 = vmatpush1.msra.mxu0 0.0
    %1322 = vmatprep.subr.mxu0 0.0
    %1323 = vmatpush1.msra.mxu0 0.0
    %1324 = vmatprep.subr.mxu0 0.0
    %1325 = vmatpush1.msra.mxu0 0.0
    %1326 = vmatprep.subr.mxu0 0.0
    %1327 = vmatpush1.msra.mxu0 0.0
    %1328 = vmatprep.subr.mxu0 0.0
    %1329 = vmatpush1.msra.mxu0 0.0
    %1330 = vmatprep.subr.mxu0 0.0
    %1331 = vmatpush1.msra.mxu0 0.0
    %1332 = vmatprep.subr.mxu0 0.0
    %1333 = vmatpush1.msra.mxu0 0.0
    %1334 = vmatprep.subr.mxu0 0.0
    %1335 = vmatpush1.msra.mxu0 0.0
    %1336 = vmatprep.subr.mxu0 0.0
    %1337 = vmatpush1.msra.mxu0 %v1301
    %1338 = vmatprep.subr.mxu0 0.0
    %1339 = vmatpush2.msra.mxu0 0.0
    %1340 = vmatprep.subr.mxu0 0.0
    %1341 = vmatpush2.msra.mxu0 0.0
    %1342 = vmatprep.subr.mxu0 0.0
    %1343 = vmatpush2.msra.mxu0 0.0
    %1344 = vmatprep.subr.mxu0 0.0
    %1345 = vmatpush2.msra.mxu0 0.0
    %1346 = vmatprep.subr.mxu0 0.0
    %1347 = vmatpush2.msra.mxu0 0.0
    %1348 = vmatprep.subr.mxu0 0.0
    %1349 = vmatpush2.msra.mxu0 0.0
    %1350 = vmatprep.subr.mxu0 0.0
    %1351 = vmatpush2.msra.mxu0 0.0
    %1352 = vmatprep.subr.mxu0 0.0
    %1353 = vmatpush2.msra.mxu0 0.0
    %1354 = vmatprep.subr.mxu0 0.0
    %1355 = vmatpush2.msra.mxu0 0.0
    %1356 = vmatprep.subr.mxu0 0.0
    %1357 = vmatpush2.msra.mxu0 0.0
    %1358 = vmatprep.subr.mxu0 0.0
    %1359 = vmatpush2.msra.mxu0 0.0
    %1360 = vmatprep.subr.mxu0 0.0
    %1361 = vmatpush2.msra.mxu0 0.0
    %1362 = vmatprep.subr.mxu0 0.0
    %1363 = vmatpush2.msra.mxu0 0.0
    %1364 = vmatprep.subr.mxu0 0.0
    %1365 = vmatpush2.msra.mxu0 0.0
    %1366 = vmatprep.subr.mxu0 0.0
    %1367 = vmatpush2.msra.mxu0 0.0
    %1368 = vmatprep.subr.mxu0 0.0
    %1369 = vmatpush2.msra.mxu0 0.0
    %1370 = vmatprep.mubr.f32.mxu0 0.0
    %1371 = vmatmul.mubr.f32.gmra.mxu0 %v1304
    %v1372 = vpop.f32.mrf.mxu0
    %v1373 = vadd.f32 0.0, %v1372
    %v1374 = vpop.f32.mrf.mxu0
    %1375 = vdwg.mxu0
    %1376 = vrot.lane.b32.xlu0 %v276, 64
    %v1377 = vpop.permute.xlu0 %1376
    %v1380 = vsel %vm283, %v993, 0
    %1382 = vmatprep.subr.mxu0 0.0
    %1383 = vmatpush1.msra.mxu0 0.0
    %1384 = vmatprep.subr.mxu0 0.0
    %1385 = vmatpush1.msra.mxu0 0.0
    %1386 = vmatprep.subr.mxu0 0.0
    %1387 = vmatpush1.msra.mxu0 0.0
    %1388 = vmatprep.subr.mxu0 0.0
    %1389 = vmatpush1.msra.mxu0 0.0
    %1390 = vmatprep.subr.mxu0 0.0
    %1391 = vmatpush1.msra.mxu0 0.0
    %1392 = vmatprep.subr.mxu0 0.0
    %1393 = vmatpush1.msra.mxu0 0.0
    %1394 = vmatprep.subr.mxu0 0.0
    %1395 = vmatpush1.msra.mxu0 0.0
    %1396 = vmatprep.subr.mxu0 0.0
    %1397 = vmatpush1.msra.mxu0 0.0
    %1398 = vmatprep.subr.mxu0 0.0
    %1399 = vmatpush1.msra.mxu0 0.0
    %1400 = vmatprep.subr.mxu0 0.0
    %1401 = vmatpush1.msra.mxu0 0.0
    %1402 = vmatprep.subr.mxu0 0.0
    %1403 = vmatpush1.msra.mxu0 0.0
    %1404 = vmatprep.subr.mxu0 0.0
    %1405 = vmatpush1.msra.mxu0 0.0
    %1406 = vmatprep.subr.mxu0 0.0
    %1407 = vmatpush1.msra.mxu0 0.0
    %1408 = vmatprep.subr.mxu0 0.0
    %1409 = vmatpush1.msra.mxu0 0.0
    %1410 = vmatprep.subr.mxu0 0.0
    %1411 = vmatpush1.msra.mxu0 0.0
    %1412 = vmatprep.subr.mxu0 0.0
    %1413 = vmatpush1.msra.mxu0 %v1377
    %1414 = vmatprep.subr.mxu0 0.0
    %1415 = vmatpush2.msra.mxu0 0.0
    %1416 = vmatprep.subr.mxu0 0.0
    %1417 = vmatpush2.msra.mxu0 0.0
    %1418 = vmatprep.subr.mxu0 0.0
    %1419 = vmatpush2.msra.mxu0 0.0
    %1420 = vmatprep.subr.mxu0 0.0
    %1421 = vmatpush2.msra.mxu0 0.0
    %1422 = vmatprep.subr.mxu0 0.0
    %1423 = vmatpush2.msra.mxu0 0.0
    %1424 = vmatprep.subr.mxu0 0.0
    %1425 = vmatpush2.msra.mxu0 0.0
    %1426 = vmatprep.subr.mxu0 0.0
    %1427 = vmatpush2.msra.mxu0 0.0
    %1428 = vmatprep.subr.mxu0 0.0
    %1429 = vmatpush2.msra.mxu0 0.0
    %1430 = vmatprep.subr.mxu0 0.0
    %1431 = vmatpush2.msra.mxu0 0.0
    %1432 = vmatprep.subr.mxu0 0.0
    %1433 = vmatpush2.msra.mxu0 0.0
    %1434 = vmatprep.subr.mxu0 0.0
    %1435 = vmatpush2.msra.mxu0 0.0
    %1436 = vmatprep.subr.mxu0 0.0
    %1437 = vmatpush2.msra.mxu0 0.0
    %1438 = vmatprep.subr.mxu0 0.0
    %1439 = vmatpush2.msra.mxu0 0.0
    %1440 = vmatprep.subr.mxu0 0.0
    %1441 = vmatpush2.msra.mxu0 0.0
    %1442 = vmatprep.subr.mxu0 0.0
    %1443 = vmatpush2.msra.mxu0 0.0
    %1444 = vmatprep.subr.mxu0 0.0
    %1445 = vmatpush2.msra.mxu0 0.0
    %1446 = vmatprep.mubr.f32.mxu0 0.0
    %1447 = vmatmul.mubr.f32.gmra.mxu0 %v1380
    %v1448 = vpop.f32.mrf.mxu0
    %v1449 = vadd.f32 0.0, %v1448
    %v1450 = vpop.f32.mrf.mxu0
    %1451 = vdwg.mxu0
    %1452 = vrot.lane.b32.xlu0 %v278, 64
    %v1453 = vpop.permute.xlu0 %1452
    %v1456 = vsel %vm283, %v994, 0
    %1458 = vmatprep.subr.mxu0 0.0
    %1459 = vmatpush1.msra.mxu0 0.0
    %1460 = vmatprep.subr.mxu0 0.0
    %1461 = vmatpush1.msra.mxu0 0.0
    %1462 = vmatprep.subr.mxu0 0.0
    %1463 = vmatpush1.msra.mxu0 0.0
    %1464 = vmatprep.subr.mxu0 0.0
    %1465 = vmatpush1.msra.mxu0 0.0
    %1466 = vmatprep.subr.mxu0 0.0
    %1467 = vmatpush1.msra.mxu0 0.0
    %1468 = vmatprep.subr.mxu0 0.0
    %1469 = vmatpush1.msra.mxu0 0.0
    %1470 = vmatprep.subr.mxu0 0.0
    %1471 = vmatpush1.msra.mxu0 0.0
    %1472 = vmatprep.subr.mxu0 0.0
    %1473 = vmatpush1.msra.mxu0 0.0
    %1474 = vmatprep.subr.mxu0 0.0
    %1475 = vmatpush1.msra.mxu0 0.0
    %1476 = vmatprep.subr.mxu0 0.0
    %1477 = vmatpush1.msra.mxu0 0.0
    %1478 = vmatprep.subr.mxu0 0.0
    %1479 = vmatpush1.msra.mxu0 0.0
    %1480 = vmatprep.subr.mxu0 0.0
    %1481 = vmatpush1.msra.mxu0 0.0
    %1482 = vmatprep.subr.mxu0 0.0
    %1483 = vmatpush1.msra.mxu0 0.0
    %1484 = vmatprep.subr.mxu0 0.0
    %1485 = vmatpush1.msra.mxu0 0.0
    %1486 = vmatprep.subr.mxu0 0.0
    %1487 = vmatpush1.msra.mxu0 0.0
    %1488 = vmatprep.subr.mxu0 0.0
    %1489 = vmatpush1.msra.mxu0 %v1453
    %1490 = vmatprep.subr.mxu0 0.0
    %1491 = vmatpush2.msra.mxu0 0.0
    %1492 = vmatprep.subr.mxu0 0.0
    %1493 = vmatpush2.msra.mxu0 0.0
    %1494 = vmatprep.subr.mxu0 0.0
    %1495 = vmatpush2.msra.mxu0 0.0
    %1496 = vmatprep.subr.mxu0 0.0
    %1497 = vmatpush2.msra.mxu0 0.0
    %1498 = vmatprep.subr.mxu0 0.0
    %1499 = vmatpush2.msra.mxu0 0.0
    %1500 = vmatprep.subr.mxu0 0.0
    %1501 = vmatpush2.msra.mxu0 0.0
    %1502 = vmatprep.subr.mxu0 0.0
    %1503 = vmatpush2.msra.mxu0 0.0
    %1504 = vmatprep.subr.mxu0 0.0
    %1505 = vmatpush2.msra.mxu0 0.0
    %1506 = vmatprep.subr.mxu0 0.0
    %1507 = vmatpush2.msra.mxu0 0.0
    %1508 = vmatprep.subr.mxu0 0.0
    %1509 = vmatpush2.msra.mxu0 0.0
    %1510 = vmatprep.subr.mxu0 0.0
    %1511 = vmatpush2.msra.mxu0 0.0
    %1512 = vmatprep.subr.mxu0 0.0
    %1513 = vmatpush2.msra.mxu0 0.0
    %1514 = vmatprep.subr.mxu0 0.0
    %1515 = vmatpush2.msra.mxu0 0.0
    %1516 = vmatprep.subr.mxu0 0.0
    %1517 = vmatpush2.msra.mxu0 0.0
    %1518 = vmatprep.subr.mxu0 0.0
    %1519 = vmatpush2.msra.mxu0 0.0
    %1520 = vmatprep.subr.mxu0 0.0
    %1521 = vmatpush2.msra.mxu0 0.0
    %1522 = vmatprep.mubr.f32.mxu0 0.0
    %1523 = vmatmul.mubr.f32.gmra.mxu0 %v1456
    %v1524 = vpop.f32.mrf.mxu0
    %v1525 = vadd.f32 0.0, %v1524
    %v1526 = vpop.f32.mrf.mxu0
    %1527 = vdwg.mxu0
    %1528 = vrot.lane.b32.xlu0 %v280, 64
    %v1529 = vpop.permute.xlu0 %1528
    %v1532 = vsel %vm283, %v995, 0
    %1534 = vmatprep.subr.mxu0 0.0
    %1535 = vmatpush1.msra.mxu0 0.0
    %1536 = vmatprep.subr.mxu0 0.0
    %1537 = vmatpush1.msra.mxu0 0.0
    %1538 = vmatprep.subr.mxu0 0.0
    %1539 = vmatpush1.msra.mxu0 0.0
    %1540 = vmatprep.subr.mxu0 0.0
    %1541 = vmatpush1.msra.mxu0 0.0
    %1542 = vmatprep.subr.mxu0 0.0
    %1543 = vmatpush1.msra.mxu0 0.0
    %1544 = vmatprep.subr.mxu0 0.0
    %1545 = vmatpush1.msra.mxu0 0.0
    %1546 = vmatprep.subr.mxu0 0.0
    %1547 = vmatpush1.msra.mxu0 0.0
    %1548 = vmatprep.subr.mxu0 0.0
    %1549 = vmatpush1.msra.mxu0 0.0
    %1550 = vmatprep.subr.mxu0 0.0
    %1551 = vmatpush1.msra.mxu0 0.0
    %1552 = vmatprep.subr.mxu0 0.0
    %1553 = vmatpush1.msra.mxu0 0.0
    %1554 = vmatprep.subr.mxu0 0.0
    %1555 = vmatpush1.msra.mxu0 0.0
    %1556 = vmatprep.subr.mxu0 0.0
    %1557 = vmatpush1.msra.mxu0 0.0
    %1558 = vmatprep.subr.mxu0 0.0
    %1559 = vmatpush1.msra.mxu0 0.0
    %1560 = vmatprep.subr.mxu0 0.0
    %1561 = vmatpush1.msra.mxu0 0.0
    %1562 = vmatprep.subr.mxu0 0.0
    %1563 = vmatpush1.msra.mxu0 0.0
    %1564 = vmatprep.subr.mxu0 0.0
    %1565 = vmatpush1.msra.mxu0 %v1529
    %1566 = vmatprep.subr.mxu0 0.0
    %1567 = vmatpush2.msra.mxu0 0.0
    %1568 = vmatprep.subr.mxu0 0.0
    %1569 = vmatpush2.msra.mxu0 0.0
    %1570 = vmatprep.subr.mxu0 0.0
    %1571 = vmatpush2.msra.mxu0 0.0
    %1572 = vmatprep.subr.mxu0 0.0
    %1573 = vmatpush2.msra.mxu0 0.0
    %1574 = vmatprep.subr.mxu0 0.0
    %1575 = vmatpush2.msra.mxu0 0.0
    %1576 = vmatprep.subr.mxu0 0.0
    %1577 = vmatpush2.msra.mxu0 0.0
    %1578 = vmatprep.subr.mxu0 0.0
    %1579 = vmatpush2.msra.mxu0 0.0
    %1580 = vmatprep.subr.mxu0 0.0
    %1581 = vmatpush2.msra.mxu0 0.0
    %1582 = vmatprep.subr.mxu0 0.0
    %1583 = vmatpush2.msra.mxu0 0.0
    %1584 = vmatprep.subr.mxu0 0.0
    %1585 = vmatpush2.msra.mxu0 0.0
    %1586 = vmatprep.subr.mxu0 0.0
    %1587 = vmatpush2.msra.mxu0 0.0
    %1588 = vmatprep.subr.mxu0 0.0
    %1589 = vmatpush2.msra.mxu0 0.0
    %1590 = vmatprep.subr.mxu0 0.0
    %1591 = vmatpush2.msra.mxu0 0.0
    %1592 = vmatprep.subr.mxu0 0.0
    %1593 = vmatpush2.msra.mxu0 0.0
    %1594 = vmatprep.subr.mxu0 0.0
    %1595 = vmatpush2.msra.mxu0 0.0
    %1596 = vmatprep.subr.mxu0 0.0
    %1597 = vmatpush2.msra.mxu0 0.0
    %1598 = vmatprep.mubr.f32.mxu0 0.0
    %1599 = vmatmul.mubr.f32.gmra.mxu0 %v1532
    %v1600 = vpop.f32.mrf.mxu0
    %v1601 = vadd.f32 0.0, %v1600
    %v1602 = vpop.f32.mrf.mxu0
    %1603 = vdwg.mxu0
    %v1605 = vsel %vm283, %v1069, 0
    %1607 = vmatprep.subr.mxu0 0.0
    %1608 = vmatpush1.msra.mxu0 0.0
    %1609 = vmatprep.subr.mxu0 0.0
    %1610 = vmatpush1.msra.mxu0 0.0
    %1611 = vmatprep.subr.mxu0 0.0
    %1612 = vmatpush1.msra.mxu0 0.0
    %1613 = vmatprep.subr.mxu0 0.0
    %1614 = vmatpush1.msra.mxu0 0.0
    %1615 = vmatprep.subr.mxu0 0.0
    %1616 = vmatpush1.msra.mxu0 0.0
    %1617 = vmatprep.subr.mxu0 0.0
    %1618 = vmatpush1.msra.mxu0 0.0
    %1619 = vmatprep.subr.mxu0 0.0
    %1620 = vmatpush1.msra.mxu0 0.0
    %1621 = vmatprep.subr.mxu0 0.0
    %1622 = vmatpush1.msra.mxu0 0.0
    %1623 = vmatprep.subr.mxu0 0.0
    %1624 = vmatpush1.msra.mxu0 0.0
    %1625 = vmatprep.subr.mxu0 0.0
    %1626 = vmatpush1.msra.mxu0 0.0
    %1627 = vmatprep.subr.mxu0 0.0
    %1628 = vmatpush1.msra.mxu0 0.0
    %1629 = vmatprep.subr.mxu0 0.0
    %1630 = vmatpush1.msra.mxu0 0.0
    %1631 = vmatprep.subr.mxu0 0.0
    %1632 = vmatpush1.msra.mxu0 0.0
    %1633 = vmatprep.subr.mxu0 0.0
    %1634 = vmatpush1.msra.mxu0 0.0
    %1635 = vmatprep.subr.mxu0 0.0
    %1636 = vmatpush1.msra.mxu0 0.0
    %1637 = vmatprep.subr.mxu0 0.0
    %1638 = vmatpush1.msra.mxu0 %v259
    %1639 = vmatprep.subr.mxu0 0.0
    %1640 = vmatpush2.msra.mxu0 0.0
    %1641 = vmatprep.subr.mxu0 0.0
    %1642 = vmatpush2.msra.mxu0 0.0
    %1643 = vmatprep.subr.mxu0 0.0
    %1644 = vmatpush2.msra.mxu0 0.0
    %1645 = vmatprep.subr.mxu0 0.0
    %1646 = vmatpush2.msra.mxu0 0.0
    %1647 = vmatprep.subr.mxu0 0.0
    %1648 = vmatpush2.msra.mxu0 0.0
    %1649 = vmatprep.subr.mxu0 0.0
    %1650 = vmatpush2.msra.mxu0 0.0
    %1651 = vmatprep.subr.mxu0 0.0
    %1652 = vmatpush2.msra.mxu0 0.0
    %1653 = vmatprep.subr.mxu0 0.0
    %1654 = vmatpush2.msra.mxu0 0.0
    %1655 = vmatprep.subr.mxu0 0.0
    %1656 = vmatpush2.msra.mxu0 0.0
    %1657 = vmatprep.subr.mxu0 0.0
    %1658 = vmatpush2.msra.mxu0 0.0
    %1659 = vmatprep.subr.mxu0 0.0
    %1660 = vmatpush2.msra.mxu0 0.0
    %1661 = vmatprep.subr.mxu0 0.0
    %1662 = vmatpush2.msra.mxu0 0.0
    %1663 = vmatprep.subr.mxu0 0.0
    %1664 = vmatpush2.msra.mxu0 0.0
    %1665 = vmatprep.subr.mxu0 0.0
    %1666 = vmatpush2.msra.mxu0 0.0
    %1667 = vmatprep.subr.mxu0 0.0
    %1668 = vmatpush2.msra.mxu0 0.0
    %1669 = vmatprep.subr.mxu0 0.0
    %1670 = vmatpush2.msra.mxu0 0.0
    %1671 = vmatprep.mubr.f32.mxu0 0.0
    %1672 = vmatmul.mubr.f32.gmra.mxu0 %v1605
    %v1673 = vpop.f32.mrf.mxu0
    %v1674 = vadd.f32 0.0, %v1673
    %v1675 = vpop.f32.mrf.mxu0
    %1676 = vdwg.mxu0
    %v1678 = vsel %vm283, %v1145, 0
    %1680 = vmatprep.subr.mxu0 0.0
    %1681 = vmatpush1.msra.mxu0 0.0
    %1682 = vmatprep.subr.mxu0 0.0
    %1683 = vmatpush1.msra.mxu0 0.0
    %1684 = vmatprep.subr.mxu0 0.0
    %1685 = vmatpush1.msra.mxu0 0.0
    %1686 = vmatprep.subr.mxu0 0.0
    %1687 = vmatpush1.msra.mxu0 0.0
    %1688 = vmatprep.subr.mxu0 0.0
    %1689 = vmatpush1.msra.mxu0 0.0
    %1690 = vmatprep.subr.mxu0 0.0
    %1691 = vmatpush1.msra.mxu0 0.0
    %1692 = vmatprep.subr.mxu0 0.0
    %1693 = vmatpush1.msra.mxu0 0.0
    %1694 = vmatprep.subr.mxu0 0.0
    %1695 = vmatpush1.msra.mxu0 0.0
    %1696 = vmatprep.subr.mxu0 0.0
    %1697 = vmatpush1.msra.mxu0 0.0
    %1698 = vmatprep.subr.mxu0 0.0
    %1699 = vmatpush1.msra.mxu0 0.0
    %1700 = vmatprep.subr.mxu0 0.0
    %1701 = vmatpush1.msra.mxu0 0.0
    %1702 = vmatprep.subr.mxu0 0.0
    %1703 = vmatpush1.msra.mxu0 0.0
    %1704 = vmatprep.subr.mxu0 0.0
    %1705 = vmatpush1.msra.mxu0 0.0
    %1706 = vmatprep.subr.mxu0 0.0
    %1707 = vmatpush1.msra.mxu0 0.0
    %1708 = vmatprep.subr.mxu0 0.0
    %1709 = vmatpush1.msra.mxu0 0.0
    %1710 = vmatprep.subr.mxu0 0.0
    %1711 = vmatpush1.msra.mxu0 %v260
    %1712 = vmatprep.subr.mxu0 0.0
    %1713 = vmatpush2.msra.mxu0 0.0
    %1714 = vmatprep.subr.mxu0 0.0
    %1715 = vmatpush2.msra.mxu0 0.0
    %1716 = vmatprep.subr.mxu0 0.0
    %1717 = vmatpush2.msra.mxu0 0.0
    %1718 = vmatprep.subr.mxu0 0.0
    %1719 = vmatpush2.msra.mxu0 0.0
    %1720 = vmatprep.subr.mxu0 0.0
    %1721 = vmatpush2.msra.mxu0 0.0
    %1722 = vmatprep.subr.mxu0 0.0
    %1723 = vmatpush2.msra.mxu0 0.0
    %1724 = vmatprep.subr.mxu0 0.0
    %1725 = vmatpush2.msra.mxu0 0.0
    %1726 = vmatprep.subr.mxu0 0.0
    %1727 = vmatpush2.msra.mxu0 0.0
    %1728 = vmatprep.subr.mxu0 0.0
    %1729 = vmatpush2.msra.mxu0 0.0
    %1730 = vmatprep.subr.mxu0 0.0
    %1731 = vmatpush2.msra.mxu0 0.0
    %1732 = vmatprep.subr.mxu0 0.0
    %1733 = vmatpush2.msra.mxu0 0.0
    %1734 = vmatprep.subr.mxu0 0.0
    %1735 = vmatpush2.msra.mxu0 0.0
    %1736 = vmatprep.subr.mxu0 0.0
    %1737 = vmatpush2.msra.mxu0 0.0
    %1738 = vmatprep.subr.mxu0 0.0
    %1739 = vmatpush2.msra.mxu0 0.0
    %1740 = vmatprep.subr.mxu0 0.0
    %1741 = vmatpush2.msra.mxu0 0.0
    %1742 = vmatprep.subr.mxu0 0.0
    %1743 = vmatpush2.msra.mxu0 0.0
    %1744 = vmatprep.mubr.f32.mxu0 0.0
    %1745 = vmatmul.mubr.f32.gmra.mxu0 %v1678
    %v1746 = vpop.f32.mrf.mxu0
    %v1747 = vadd.f32 0.0, %v1746
    %v1748 = vpop.f32.mrf.mxu0
    %1749 = vdwg.mxu0
    %v1751 = vsel %vm283, %v1221, 0
    %1753 = vmatprep.subr.mxu0 0.0
    %1754 = vmatpush1.msra.mxu0 0.0
    %1755 = vmatprep.subr.mxu0 0.0
    %1756 = vmatpush1.msra.mxu0 0.0
    %1757 = vmatprep.subr.mxu0 0.0
    %1758 = vmatpush1.msra.mxu0 0.0
    %1759 = vmatprep.subr.mxu0 0.0
    %1760 = vmatpush1.msra.mxu0 0.0
    %1761 = vmatprep.subr.mxu0 0.0
    %1762 = vmatpush1.msra.mxu0 0.0
    %1763 = vmatprep.subr.mxu0 0.0
    %1764 = vmatpush1.msra.mxu0 0.0
    %1765 = vmatprep.subr.mxu0 0.0
    %1766 = vmatpush1.msra.mxu0 0.0
    %1767 = vmatprep.subr.mxu0 0.0
    %1768 = vmatpush1.msra.mxu0 0.0
    %1769 = vmatprep.subr.mxu0 0.0
    %1770 = vmatpush1.msra.mxu0 0.0
    %1771 = vmatprep.subr.mxu0 0.0
    %1772 = vmatpush1.msra.mxu0 0.0
    %1773 = vmatprep.subr.mxu0 0.0
    %1774 = vmatpush1.msra.mxu0 0.0
    %1775 = vmatprep.subr.mxu0 0.0
    %1776 = vmatpush1.msra.mxu0 0.0
    %1777 = vmatprep.subr.mxu0 0.0
    %1778 = vmatpush1.msra.mxu0 0.0
    %1779 = vmatprep.subr.mxu0 0.0
    %1780 = vmatpush1.msra.mxu0 0.0
    %1781 = vmatprep.subr.mxu0 0.0
    %1782 = vmatpush1.msra.mxu0 0.0
    %1783 = vmatprep.subr.mxu0 0.0
    %1784 = vmatpush1.msra.mxu0 %v261
    %1785 = vmatprep.subr.mxu0 0.0
    %1786 = vmatpush2.msra.mxu0 0.0
    %1787 = vmatprep.subr.mxu0 0.0
    %1788 = vmatpush2.msra.mxu0 0.0
    %1789 = vmatprep.subr.mxu0 0.0
    %1790 = vmatpush2.msra.mxu0 0.0
    %1791 = vmatprep.subr.mxu0 0.0
    %1792 = vmatpush2.msra.mxu0 0.0
    %1793 = vmatprep.subr.mxu0 0.0
    %1794 = vmatpush2.msra.mxu0 0.0
    %1795 = vmatprep.subr.mxu0 0.0
    %1796 = vmatpush2.msra.mxu0 0.0
    %1797 = vmatprep.subr.mxu0 0.0
    %1798 = vmatpush2.msra.mxu0 0.0
    %1799 = vmatprep.subr.mxu0 0.0
    %1800 = vmatpush2.msra.mxu0 0.0
    %1801 = vmatprep.subr.mxu0 0.0
    %1802 = vmatpush2.msra.mxu0 0.0
    %1803 = vmatprep.subr.mxu0 0.0
    %1804 = vmatpush2.msra.mxu0 0.0
    %1805 = vmatprep.subr.mxu0 0.0
    %1806 = vmatpush2.msra.mxu0 0.0
    %1807 = vmatprep.subr.mxu0 0.0
    %1808 = vmatpush2.msra.mxu0 0.0
    %1809 = vmatprep.subr.mxu0 0.0
    %1810 = vmatpush2.msra.mxu0 0.0
    %1811 = vmatprep.subr.mxu0 0.0
    %1812 = vmatpush2.msra.mxu0 0.0
    %1813 = vmatprep.subr.mxu0 0.0
    %1814 = vmatpush2.msra.mxu0 0.0
    %1815 = vmatprep.subr.mxu0 0.0
    %1816 = vmatpush2.msra.mxu0 0.0
    %1817 = vmatprep.mubr.f32.mxu0 0.0
    %1818 = vmatmul.mubr.f32.gmra.mxu0 %v1751
    %v1819 = vpop.f32.mrf.mxu0
    %v1820 = vadd.f32 0.0, %v1819
    %v1821 = vpop.f32.mrf.mxu0
    %1822 = vdwg.mxu0
    %v1824 = vsel %vm283, %v1297, 0
    %1826 = vmatprep.subr.mxu0 0.0
    %1827 = vmatpush1.msra.mxu0 0.0
    %1828 = vmatprep.subr.mxu0 0.0
    %1829 = vmatpush1.msra.mxu0 0.0
    %1830 = vmatprep.subr.mxu0 0.0
    %1831 = vmatpush1.msra.mxu0 0.0
    %1832 = vmatprep.subr.mxu0 0.0
    %1833 = vmatpush1.msra.mxu0 0.0
    %1834 = vmatprep.subr.mxu0 0.0
    %1835 = vmatpush1.msra.mxu0 0.0
    %1836 = vmatprep.subr.mxu0 0.0
    %1837 = vmatpush1.msra.mxu0 0.0
    %1838 = vmatprep.subr.mxu0 0.0
    %1839 = vmatpush1.msra.mxu0 0.0
    %1840 = vmatprep.subr.mxu0 0.0
    %1841 = vmatpush1.msra.mxu0 0.0
    %1842 = vmatprep.subr.mxu0 0.0
    %1843 = vmatpush1.msra.mxu0 0.0
    %1844 = vmatprep.subr.mxu0 0.0
    %1845 = vmatpush1.msra.mxu0 0.0
    %1846 = vmatprep.subr.mxu0 0.0
    %1847 = vmatpush1.msra.mxu0 0.0
    %1848 = vmatprep.subr.mxu0 0.0
    %1849 = vmatpush1.msra.mxu0 0.0
    %1850 = vmatprep.subr.mxu0 0.0
    %1851 = vmatpush1.msra.mxu0 0.0
    %1852 = vmatprep.subr.mxu0 0.0
    %1853 = vmatpush1.msra.mxu0 0.0
    %1854 = vmatprep.subr.mxu0 0.0
    %1855 = vmatpush1.msra.mxu0 0.0
    %1856 = vmatprep.subr.mxu0 0.0
    %1857 = vmatpush1.msra.mxu0 %v262
    %1858 = vmatprep.subr.mxu0 0.0
    %1859 = vmatpush2.msra.mxu0 0.0
    %1860 = vmatprep.subr.mxu0 0.0
    %1861 = vmatpush2.msra.mxu0 0.0
    %1862 = vmatprep.subr.mxu0 0.0
    %1863 = vmatpush2.msra.mxu0 0.0
    %1864 = vmatprep.subr.mxu0 0.0
    %1865 = vmatpush2.msra.mxu0 0.0
    %1866 = vmatprep.subr.mxu0 0.0
    %1867 = vmatpush2.msra.mxu0 0.0
    %1868 = vmatprep.subr.mxu0 0.0
    %1869 = vmatpush2.msra.mxu0 0.0
    %1870 = vmatprep.subr.mxu0 0.0
    %1871 = vmatpush2.msra.mxu0 0.0
    %1872 = vmatprep.subr.mxu0 0.0
    %1873 = vmatpush2.msra.mxu0 0.0
    %1874 = vmatprep.subr.mxu0 0.0
    %1875 = vmatpush2.msra.mxu0 0.0
    %1876 = vmatprep.subr.mxu0 0.0
    %1877 = vmatpush2.msra.mxu0 0.0
    %1878 = vmatprep.subr.mxu0 0.0
    %1879 = vmatpush2.msra.mxu0 0.0
    %1880 = vmatprep.subr.mxu0 0.0
    %1881 = vmatpush2.msra.mxu0 0.0
    %1882 = vmatprep.subr.mxu0 0.0
    %1883 = vmatpush2.msra.mxu0 0.0
    %1884 = vmatprep.subr.mxu0 0.0
    %1885 = vmatpush2.msra.mxu0 0.0
    %1886 = vmatprep.subr.mxu0 0.0
    %1887 = vmatpush2.msra.mxu0 0.0
    %1888 = vmatprep.subr.mxu0 0.0
    %1889 = vmatpush2.msra.mxu0 0.0
    %1890 = vmatprep.mubr.f32.mxu0 0.0
    %1891 = vmatmul.mubr.f32.gmra.mxu0 %v1824
    %v1892 = vpop.f32.mrf.mxu0
    %v1893 = vadd.f32 0.0, %v1892
    %v1894 = vpop.f32.mrf.mxu0
    %1895 = vdwg.mxu0
    %v1897 = vsel %vm283, %v1373, 0
    %1899 = vmatprep.subr.mxu0 0.0
    %1900 = vmatpush1.msra.mxu0 0.0
    %1901 = vmatprep.subr.mxu0 0.0
    %1902 = vmatpush1.msra.mxu0 0.0
    %1903 = vmatprep.subr.mxu0 0.0
    %1904 = vmatpush1.msra.mxu0 0.0
    %1905 = vmatprep.subr.mxu0 0.0
    %1906 = vmatpush1.msra.mxu0 0.0
    %1907 = vmatprep.subr.mxu0 0.0
    %1908 = vmatpush1.msra.mxu0 0.0
    %1909 = vmatprep.subr.mxu0 0.0
    %1910 = vmatpush1.msra.mxu0 0.0
    %1911 = vmatprep.subr.mxu0 0.0
    %1912 = vmatpush1.msra.mxu0 0.0
    %1913 = vmatprep.subr.mxu0 0.0
    %1914 = vmatpush1.msra.mxu0 0.0
    %1915 = vmatprep.subr.mxu0 0.0
    %1916 = vmatpush1.msra.mxu0 0.0
    %1917 = vmatprep.subr.mxu0 0.0
    %1918 = vmatpush1.msra.mxu0 0.0
    %1919 = vmatprep.subr.mxu0 0.0
    %1920 = vmatpush1.msra.mxu0 0.0
    %1921 = vmatprep.subr.mxu0 0.0
    %1922 = vmatpush1.msra.mxu0 0.0
    %1923 = vmatprep.subr.mxu0 0.0
    %1924 = vmatpush1.msra.mxu0 0.0
    %1925 = vmatprep.subr.mxu0 0.0
    %1926 = vmatpush1.msra.mxu0 0.0
    %1927 = vmatprep.subr.mxu0 0.0
    %1928 = vmatpush1.msra.mxu0 0.0
    %1929 = vmatprep.subr.mxu0 0.0
    %1930 = vmatpush1.msra.mxu0 %v263
    %1931 = vmatprep.subr.mxu0 0.0
    %1932 = vmatpush2.msra.mxu0 0.0
    %1933 = vmatprep.subr.mxu0 0.0
    %1934 = vmatpush2.msra.mxu0 0.0
    %1935 = vmatprep.subr.mxu0 0.0
    %1936 = vmatpush2.msra.mxu0 0.0
    %1937 = vmatprep.subr.mxu0 0.0
    %1938 = vmatpush2.msra.mxu0 0.0
    %1939 = vmatprep.subr.mxu0 0.0
    %1940 = vmatpush2.msra.mxu0 0.0
    %1941 = vmatprep.subr.mxu0 0.0
    %1942 = vmatpush2.msra.mxu0 0.0
    %1943 = vmatprep.subr.mxu0 0.0
    %1944 = vmatpush2.msra.mxu0 0.0
    %1945 = vmatprep.subr.mxu0 0.0
    %1946 = vmatpush2.msra.mxu0 0.0
    %1947 = vmatprep.subr.mxu0 0.0
    %1948 = vmatpush2.msra.mxu0 0.0
    %1949 = vmatprep.subr.mxu0 0.0
    %1950 = vmatpush2.msra.mxu0 0.0
    %1951 = vmatprep.subr.mxu0 0.0
    %1952 = vmatpush2.msra.mxu0 0.0
    %1953 = vmatprep.subr.mxu0 0.0
    %1954 = vmatpush2.msra.mxu0 0.0
    %1955 = vmatprep.subr.mxu0 0.0
    %1956 = vmatpush2.msra.mxu0 0.0
    %1957 = vmatprep.subr.mxu0 0.0
    %1958 = vmatpush2.msra.mxu0 0.0
    %1959 = vmatprep.subr.mxu0 0.0
    %1960 = vmatpush2.msra.mxu0 0.0
    %1961 = vmatprep.subr.mxu0 0.0
    %1962 = vmatpush2.msra.mxu0 0.0
    %1963 = vmatprep.mubr.f32.mxu0 0.0
    %1964 = vmatmul.mubr.f32.gmra.mxu0 %v1897
    %v1965 = vpop.f32.mrf.mxu0
    %v1966 = vadd.f32 0.0, %v1965
    %v1967 = vpop.f32.mrf.mxu0
    %1968 = vdwg.mxu0
    %v1970 = vsel %vm283, %v1449, 0
    %1972 = vmatprep.subr.mxu0 0.0
    %1973 = vmatpush1.msra.mxu0 0.0
    %1974 = vmatprep.subr.mxu0 0.0
    %1975 = vmatpush1.msra.mxu0 0.0
    %1976 = vmatprep.subr.mxu0 0.0
    %1977 = vmatpush1.msra.mxu0 0.0
    %1978 = vmatprep.subr.mxu0 0.0
    %1979 = vmatpush1.msra.mxu0 0.0
    %1980 = vmatprep.subr.mxu0 0.0
    %1981 = vmatpush1.msra.mxu0 0.0
    %1982 = vmatprep.subr.mxu0 0.0
    %1983 = vmatpush1.msra.mxu0 0.0
    %1984 = vmatprep.subr.mxu0 0.0
    %1985 = vmatpush1.msra.mxu0 0.0
    %1986 = vmatprep.subr.mxu0 0.0
    %1987 = vmatpush1.msra.mxu0 0.0
    %1988 = vmatprep.subr.mxu0 0.0
    %1989 = vmatpush1.msra.mxu0 0.0
    %1990 = vmatprep.subr.mxu0 0.0
    %1991 = vmatpush1.msra.mxu0 0.0
    %1992 = vmatprep.subr.mxu0 0.0
    %1993 = vmatpush1.msra.mxu0 0.0
    %1994 = vmatprep.subr.mxu0 0.0
    %1995 = vmatpush1.msra.mxu0 0.0
    %1996 = vmatprep.subr.mxu0 0.0
    %1997 = vmatpush1.msra.mxu0 0.0
    %1998 = vmatprep.subr.mxu0 0.0
    %1999 = vmatpush1.msra.mxu0 0.0
    %2000 = vmatprep.subr.mxu0 0.0
    %2001 = vmatpush1.msra.mxu0 0.0
    %2002 = vmatprep.subr.mxu0 0.0
    %2003 = vmatpush1.msra.mxu0 %v264
    %2004 = vmatprep.subr.mxu0 0.0
    %2005 = vmatpush2.msra.mxu0 0.0
    %2006 = vmatprep.subr.mxu0 0.0
    %2007 = vmatpush2.msra.mxu0 0.0
    %2008 = vmatprep.subr.mxu0 0.0
    %2009 = vmatpush2.msra.mxu0 0.0
    %2010 = vmatprep.subr.mxu0 0.0
    %2011 = vmatpush2.msra.mxu0 0.0
    %2012 = vmatprep.subr.mxu0 0.0
    %2013 = vmatpush2.msra.mxu0 0.0
    %2014 = vmatprep.subr.mxu0 0.0
    %2015 = vmatpush2.msra.mxu0 0.0
    %2016 = vmatprep.subr.mxu0 0.0
    %2017 = vmatpush2.msra.mxu0 0.0
    %2018 = vmatprep.subr.mxu0 0.0
    %2019 = vmatpush2.msra.mxu0 0.0
    %2020 = vmatprep.subr.mxu0 0.0
    %2021 = vmatpush2.msra.mxu0 0.0
    %2022 = vmatprep.subr.mxu0 0.0
    %2023 = vmatpush2.msra.mxu0 0.0
    %2024 = vmatprep.subr.mxu0 0.0
    %2025 = vmatpush2.msra.mxu0 0.0
    %2026 = vmatprep.subr.mxu0 0.0
    %2027 = vmatpush2.msra.mxu0 0.0
    %2028 = vmatprep.subr.mxu0 0.0
    %2029 = vmatpush2.msra.mxu0 0.0
    %2030 = vmatprep.subr.mxu0 0.0
    %2031 = vmatpush2.msra.mxu0 0.0
    %2032 = vmatprep.subr.mxu0 0.0
    %2033 = vmatpush2.msra.mxu0 0.0
    %2034 = vmatprep.subr.mxu0 0.0
    %2035 = vmatpush2.msra.mxu0 0.0
    %2036 = vmatprep.mubr.f32.mxu0 0.0
    %2037 = vmatmul.mubr.f32.gmra.mxu0 %v1970
    %v2038 = vpop.f32.mrf.mxu0
    %v2039 = vadd.f32 0.0, %v2038
    %v2040 = vpop.f32.mrf.mxu0
    %2041 = vdwg.mxu0
    %v2043 = vsel %vm283, %v1525, 0
    %2045 = vmatprep.subr.mxu0 0.0
    %2046 = vmatpush1.msra.mxu0 0.0
    %2047 = vmatprep.subr.mxu0 0.0
    %2048 = vmatpush1.msra.mxu0 0.0
    %2049 = vmatprep.subr.mxu0 0.0
    %2050 = vmatpush1.msra.mxu0 0.0
    %2051 = vmatprep.subr.mxu0 0.0
    %2052 = vmatpush1.msra.mxu0 0.0
    %2053 = vmatprep.subr.mxu0 0.0
    %2054 = vmatpush1.msra.mxu0 0.0
    %2055 = vmatprep.subr.mxu0 0.0
    %2056 = vmatpush1.msra.mxu0 0.0
    %2057 = vmatprep.subr.mxu0 0.0
    %2058 = vmatpush1.msra.mxu0 0.0
    %2059 = vmatprep.subr.mxu0 0.0
    %2060 = vmatpush1.msra.mxu0 0.0
    %2061 = vmatprep.subr.mxu0 0.0
    %2062 = vmatpush1.msra.mxu0 0.0
    %2063 = vmatprep.subr.mxu0 0.0
    %2064 = vmatpush1.msra.mxu0 0.0
    %2065 = vmatprep.subr.mxu0 0.0
    %2066 = vmatpush1.msra.mxu0 0.0
    %2067 = vmatprep.subr.mxu0 0.0
    %2068 = vmatpush1.msra.mxu0 0.0
    %2069 = vmatprep.subr.mxu0 0.0
    %2070 = vmatpush1.msra.mxu0 0.0
    %2071 = vmatprep.subr.mxu0 0.0
    %2072 = vmatpush1.msra.mxu0 0.0
    %2073 = vmatprep.subr.mxu0 0.0
    %2074 = vmatpush1.msra.mxu0 0.0
    %2075 = vmatprep.subr.mxu0 0.0
    %2076 = vmatpush1.msra.mxu0 %v265
    %2077 = vmatprep.subr.mxu0 0.0
    %2078 = vmatpush2.msra.mxu0 0.0
    %2079 = vmatprep.subr.mxu0 0.0
    %2080 = vmatpush2.msra.mxu0 0.0
    %2081 = vmatprep.subr.mxu0 0.0
    %2082 = vmatpush2.msra.mxu0 0.0
    %2083 = vmatprep.subr.mxu0 0.0
    %2084 = vmatpush2.msra.mxu0 0.0
    %2085 = vmatprep.subr.mxu0 0.0
    %2086 = vmatpush2.msra.mxu0 0.0
    %2087 = vmatprep.subr.mxu0 0.0
    %2088 = vmatpush2.msra.mxu0 0.0
    %2089 = vmatprep.subr.mxu0 0.0
    %2090 = vmatpush2.msra.mxu0 0.0
    %2091 = vmatprep.subr.mxu0 0.0
    %2092 = vmatpush2.msra.mxu0 0.0
    %2093 = vmatprep.subr.mxu0 0.0
    %2094 = vmatpush2.msra.mxu0 0.0
    %2095 = vmatprep.subr.mxu0 0.0
    %2096 = vmatpush2.msra.mxu0 0.0
    %2097 = vmatprep.subr.mxu0 0.0
    %2098 = vmatpush2.msra.mxu0 0.0
    %2099 = vmatprep.subr.mxu0 0.0
    %2100 = vmatpush2.msra.mxu0 0.0
    %2101 = vmatprep.subr.mxu0 0.0
    %2102 = vmatpush2.msra.mxu0 0.0
    %2103 = vmatprep.subr.mxu0 0.0
    %2104 = vmatpush2.msra.mxu0 0.0
    %2105 = vmatprep.subr.mxu0 0.0
    %2106 = vmatpush2.msra.mxu0 0.0
    %2107 = vmatprep.subr.mxu0 0.0
    %2108 = vmatpush2.msra.mxu0 0.0
    %2109 = vmatprep.mubr.f32.mxu0 0.0
    %2110 = vmatmul.mubr.f32.gmra.mxu0 %v2043
    %v2111 = vpop.f32.mrf.mxu0
    %v2112 = vadd.f32 0.0, %v2111
    %v2113 = vpop.f32.mrf.mxu0
    %2114 = vdwg.mxu0
    %v2116 = vsel %vm283, %v1601, 0
    %2118 = vmatprep.subr.mxu0 0.0
    %2119 = vmatpush1.msra.mxu0 0.0
    %2120 = vmatprep.subr.mxu0 0.0
    %2121 = vmatpush1.msra.mxu0 0.0
    %2122 = vmatprep.subr.mxu0 0.0
    %2123 = vmatpush1.msra.mxu0 0.0
    %2124 = vmatprep.subr.mxu0 0.0
    %2125 = vmatpush1.msra.mxu0 0.0
    %2126 = vmatprep.subr.mxu0 0.0
    %2127 = vmatpush1.msra.mxu0 0.0
    %2128 = vmatprep.subr.mxu0 0.0
    %2129 = vmatpush1.msra.mxu0 0.0
    %2130 = vmatprep.subr.mxu0 0.0
    %2131 = vmatpush1.msra.mxu0 0.0
    %2132 = vmatprep.subr.mxu0 0.0
    %2133 = vmatpush1.msra.mxu0 0.0
    %2134 = vmatprep.subr.mxu0 0.0
    %2135 = vmatpush1.msra.mxu0 0.0
    %2136 = vmatprep.subr.mxu0 0.0
    %2137 = vmatpush1.msra.mxu0 0.0
    %2138 = vmatprep.subr.mxu0 0.0
    %2139 = vmatpush1.msra.mxu0 0.0
    %2140 = vmatprep.subr.mxu0 0.0
    %2141 = vmatpush1.msra.mxu0 0.0
    %2142 = vmatprep.subr.mxu0 0.0
    %2143 = vmatpush1.msra.mxu0 0.0
    %2144 = vmatprep.subr.mxu0 0.0
    %2145 = vmatpush1.msra.mxu0 0.0
    %2146 = vmatprep.subr.mxu0 0.0
    %2147 = vmatpush1.msra.mxu0 0.0
    %2148 = vmatprep.subr.mxu0 0.0
    %2149 = vmatpush1.msra.mxu0 %v266
    %2150 = vmatprep.subr.mxu0 0.0
    %2151 = vmatpush2.msra.mxu0 0.0
    %2152 = vmatprep.subr.mxu0 0.0
    %2153 = vmatpush2.msra.mxu0 0.0
    %2154 = vmatprep.subr.mxu0 0.0
    %2155 = vmatpush2.msra.mxu0 0.0
    %2156 = vmatprep.subr.mxu0 0.0
    %2157 = vmatpush2.msra.mxu0 0.0
    %2158 = vmatprep.subr.mxu0 0.0
    %2159 = vmatpush2.msra.mxu0 0.0
    %2160 = vmatprep.subr.mxu0 0.0
    %2161 = vmatpush2.msra.mxu0 0.0
    %2162 = vmatprep.subr.mxu0 0.0
    %2163 = vmatpush2.msra.mxu0 0.0
    %2164 = vmatprep.subr.mxu0 0.0
    %2165 = vmatpush2.msra.mxu0 0.0
    %2166 = vmatprep.subr.mxu0 0.0
    %2167 = vmatpush2.msra.mxu0 0.0
    %2168 = vmatprep.subr.mxu0 0.0
    %2169 = vmatpush2.msra.mxu0 0.0
    %2170 = vmatprep.subr.mxu0 0.0
    %2171 = vmatpush2.msra.mxu0 0.0
    %2172 = vmatprep.subr.mxu0 0.0
    %2173 = vmatpush2.msra.mxu0 0.0
    %2174 = vmatprep.subr.mxu0 0.0
    %2175 = vmatpush2.msra.mxu0 0.0
    %2176 = vmatprep.subr.mxu0 0.0
    %2177 = vmatpush2.msra.mxu0 0.0
    %2178 = vmatprep.subr.mxu0 0.0
    %2179 = vmatpush2.msra.mxu0 0.0
    %2180 = vmatprep.subr.mxu0 0.0
    %2181 = vmatpush2.msra.mxu0 0.0
    %2182 = vmatprep.mubr.f32.mxu0 0.0
    %2183 = vmatmul.mubr.f32.gmra.mxu0 %v2116
    %v2184 = vpop.f32.mrf.mxu0
    %v2185 = vadd.f32 0.0, %v2184
    %v2186 = vpop.f32.mrf.mxu0
    %2187 = vdwg.mxu0
    %v2188 = vsel %vm130, %v1674, 0.0
    %v2189 = vsel %vm130, %v1747, 0.0
    %v2190 = vadd.f32 %v2188, %v2189
    %v2191 = vsel %vm130, %v1820, 0.0
    %v2192 = vadd.f32 %v2190, %v2191
    %v2193 = vsel %vm130, %v1893, 0.0
    %v2194 = vadd.f32 %v2192, %v2193
    %v2195 = vsel %vm130, %v1966, 0.0
    %v2196 = vsel %vm130, %v2039, 0.0
    %v2197 = vadd.f32 %v2195, %v2196
    %v2198 = vsel %vm130, %v2112, 0.0
    %v2199 = vadd.f32 %v2197, %v2198
    %v2200 = vsel %vm130, %v2185, 0.0
    %v2201 = vadd.f32 %v2199, %v2200
    %v2202 = vlaneseq
    %v2203 = vshrl.u32 %v2202, 7
    %v2204 = vsub.s32 5, %v2203
    %v2205 = vrot.slane %v128, %v2204
    %v2206 = vadd.f32 %v2194, %v2205
    %v2207 = vadd.f32 %v2201, %v2205
    %v2208 = vadd.f32 %v118, %v2206
    %v2209 = vadd.f32 %v119, %v2207
    %v2210 = vsel %vm130, %v2208, 0.0
    %2211 = vadd.xlane.f32.xlu0 %v2210
    %v2212 = vpop.xlane.xlu0 %2211
    %v2213 = vsel %vm130, %v2209, 0.0
    %2214 = vadd.xlane.f32.xlu0 %v2213
    %v2215 = vpop.xlane.xlu0 %2214
    %v2216 = vmul.f32 %v2212, %v137
    %v2217 = vmul.f32 %v2215, %v137
    %v2218 = vsub.f32 %v2208, %v2216
    %v2219 = vsub.f32 %v2209, %v2217
    %v2220 = vmul.f32 %v2218, %v2218
    %v2221 = vmul.f32 %v2219, %v2219
    %v2222 = vsel %vm130, %v2220, 0.0
    %2223 = vadd.xlane.f32.xlu0 %v2222
    %v2224 = vpop.xlane.xlu0 %2223
    %v2225 = vsel %vm130, %v2221, 0.0
    %2226 = vadd.xlane.f32.xlu0 %v2225
    %v2227 = vpop.xlane.xlu0 %2226
    %v2228 = vmul.f32 %v2224, %v137
    %v2229 = vmul.f32 %v2227, %v137
    %v2230 = vadd.f32 %v2228, 1e-05
    %v2231 = vadd.f32 %v2229, 1e-05
    %v2232 = vrsqrt.pop %v2230
    %v2233 = vrsqrt.pop %v2231
    %v2234 = vmul.f32 %v2218, %v2232
    %v2235 = vmul.f32 %v2219, %v2233
    %v2236 = vlaneseq
    %v2237 = vshrl.u32 %v2236, 7
    %v2238 = vsub.s32 2, %v2237
    %v2239 = vrot.slane %v128, %v2238
    %v2240 = vmul.f32 %v2234, %v2239
    %v2241 = vmul.f32 %v2235, %v2239
    %v2242 = vlaneseq
    %v2243 = vshrl.u32 %v2242, 7
    %v2244 = vsub.s32 3, %v2243
    %v2245 = vrot.slane %v128, %v2244
    %v2246 = vadd.f32 %v2240, %v2245
    %v2247 = vadd.f32 %v2241, %v2245
    %s2248 = scalar_lea.vmem %s4, 32
    %v2249 = vld [vmem:[%s2248] sm:$0xff]
    %v2250 = vld [vmem:[%s2248 + $0x8] sm:$0xff]
    %v2251 = vld [vmem:[%s2248 + $0x10] sm:$0xff]
    %v2252 = vld [vmem:[%s2248 + $0x18] sm:$0xff]
    %v2253 = vlaneseq
    %v2254 = vshrl.u32 %v2253, 7
    %v2255 = vsub.s32 6, %v2254
    %v2256 = vrot.slane %v128, %v2255
    %v2258 = vsel %vm130, %v2246, 0
    %v2261 = vsel %vm130, %v2247, 0
    %2263 = vmatprep.subr.mxu0 0.0
    %2264 = vmatpush1.msra.mxu0 0.0
    %2265 = vmatprep.subr.mxu0 0.0
    %2266 = vmatpush1.msra.mxu0 0.0
    %2267 = vmatprep.subr.mxu0 0.0
    %2268 = vmatpush1.msra.mxu0 0.0
    %2269 = vmatprep.subr.mxu0 0.0
    %2270 = vmatpush1.msra.mxu0 0.0
    %2271 = vmatprep.subr.mxu0 0.0
    %2272 = vmatpush1.msra.mxu0 0.0
    %2273 = vmatprep.subr.mxu0 0.0
    %2274 = vmatpush1.msra.mxu0 0.0
    %2275 = vmatprep.subr.mxu0 0.0
    %2276 = vmatpush1.msra.mxu0 0.0
    %2277 = vmatprep.subr.mxu0 0.0
    %2278 = vmatpush1.msra.mxu0 0.0
    %2279 = vmatprep.subr.mxu0 0.0
    %2280 = vmatpush1.msra.mxu0 0.0
    %2281 = vmatprep.subr.mxu0 0.0
    %2282 = vmatpush1.msra.mxu0 0.0
    %2283 = vmatprep.subr.mxu0 0.0
    %2284 = vmatpush1.msra.mxu0 0.0
    %2285 = vmatprep.subr.mxu0 0.0
    %2286 = vmatpush1.msra.mxu0 0.0
    %2287 = vmatprep.subr.mxu0 0.0
    %2288 = vmatpush1.msra.mxu0 %v2252
    %2289 = vmatprep.subr.mxu0 0.0
    %2290 = vmatpush1.msra.mxu0 %v2251
    %2291 = vmatprep.subr.mxu0 0.0
    %2292 = vmatpush1.msra.mxu0 %v2250
    %2293 = vmatprep.subr.mxu0 0.0
    %2294 = vmatpush1.msra.mxu0 %v2249
    %2295 = vmatprep.subr.mxu0 0.0
    %2296 = vmatpush2.msra.mxu0 0.0
    %2297 = vmatprep.subr.mxu0 0.0
    %2298 = vmatpush2.msra.mxu0 0.0
    %2299 = vmatprep.subr.mxu0 0.0
    %2300 = vmatpush2.msra.mxu0 0.0
    %2301 = vmatprep.subr.mxu0 0.0
    %2302 = vmatpush2.msra.mxu0 0.0
    %2303 = vmatprep.subr.mxu0 0.0
    %2304 = vmatpush2.msra.mxu0 0.0
    %2305 = vmatprep.subr.mxu0 0.0
    %2306 = vmatpush2.msra.mxu0 0.0
    %2307 = vmatprep.subr.mxu0 0.0
    %2308 = vmatpush2.msra.mxu0 0.0
    %2309 = vmatprep.subr.mxu0 0.0
    %2310 = vmatpush2.msra.mxu0 0.0
    %2311 = vmatprep.subr.mxu0 0.0
    %2312 = vmatpush2.msra.mxu0 0.0
    %2313 = vmatprep.subr.mxu0 0.0
    %2314 = vmatpush2.msra.mxu0 0.0
    %2315 = vmatprep.subr.mxu0 0.0
    %2316 = vmatpush2.msra.mxu0 0.0
    %2317 = vmatprep.subr.mxu0 0.0
    %2318 = vmatpush2.msra.mxu0 0.0
    %2319 = vmatprep.subr.mxu0 0.0
    %2320 = vmatpush2.msra.mxu0 0.0
    %2321 = vmatprep.subr.mxu0 0.0
    %2322 = vmatpush2.msra.mxu0 0.0
    %2323 = vmatprep.subr.mxu0 0.0
    %2324 = vmatpush2.msra.mxu0 0.0
    %2325 = vmatprep.subr.mxu0 0.0
    %2326 = vmatpush2.msra.mxu0 0.0
    %2327 = vmatprep.mubr.f32.mxu0 0.0
    %2328 = vmatmul.mubr.f32.gmra.mxu0 %v2258
    %v2329 = vpop.f32.mrf.mxu0
    %v2330 = vadd.f32 %v2256, %v2329
    %v2331 = vpop.f32.mrf.mxu0
    %2332 = vmatprep.mubr.f32.mxu0 0.0
    %2333 = vmatmul.mubr.f32.gmra.mxu0 %v2261
    %v2334 = vpop.f32.mrf.mxu0
    %v2335 = vadd.f32 %v2256, %v2334
    %v2336 = vpop.f32.mrf.mxu0
    %2337 = vdwg.mxu0
    %v2338 = vlaneseq
    %v2339 = vshrl.u32 %v2338, 7
    %v2340 = vsub.s32 7, %v2339
    %v2341 = vrot.slane %v128, %v2340
    %2346 = vrot.lane.b32.xlu0 %v2249, 96
    %v2347 = vpop.permute.xlu0 %2346
    %2348 = vrot.lane.b32.xlu0 %v2250, 96
    %v2349 = vpop.permute.xlu0 %2348
    %2350 = vrot.lane.b32.xlu0 %v2251, 96
    %v2351 = vpop.permute.xlu0 %2350
    %2352 = vrot.lane.b32.xlu0 %v2252, 96
    %v2353 = vpop.permute.xlu0 %2352
    %v2359 = vsel %vm130, %v120, 0
    %v2362 = vsel %vm130, %v121, 0
    %v2365 = vsel %vm130, %v122, 0
    %v2368 = vsel %vm130, %v123, 0
    %2370 = vmatprep.subr.mxu0 0.0
    %2371 = vmatpush1.msra.mxu0 0.0
    %2372 = vmatprep.subr.mxu0 0.0
    %2373 = vmatpush1.msra.mxu0 0.0
    %2374 = vmatprep.subr.mxu0 0.0
    %2375 = vmatpush1.msra.mxu0 0.0
    %2376 = vmatprep.subr.mxu0 0.0
    %2377 = vmatpush1.msra.mxu0 0.0
    %2378 = vmatprep.subr.mxu0 0.0
    %2379 = vmatpush1.msra.mxu0 0.0
    %2380 = vmatprep.subr.mxu0 0.0
    %2381 = vmatpush1.msra.mxu0 0.0
    %2382 = vmatprep.subr.mxu0 0.0
    %2383 = vmatpush1.msra.mxu0 0.0
    %2384 = vmatprep.subr.mxu0 0.0
    %2385 = vmatpush1.msra.mxu0 0.0
    %2386 = vmatprep.subr.mxu0 0.0
    %2387 = vmatpush1.msra.mxu0 0.0
    %2388 = vmatprep.subr.mxu0 0.0
    %2389 = vmatpush1.msra.mxu0 0.0
    %2390 = vmatprep.subr.mxu0 0.0
    %2391 = vmatpush1.msra.mxu0 0.0
    %2392 = vmatprep.subr.mxu0 0.0
    %2393 = vmatpush1.msra.mxu0 0.0
    %2394 = vmatprep.subr.mxu0 0.0
    %2395 = vmatpush1.msra.mxu0 %v2353
    %2396 = vmatprep.subr.mxu0 0.0
    %2397 = vmatpush1.msra.mxu0 %v2351
    %2398 = vmatprep.subr.mxu0 0.0
    %2399 = vmatpush1.msra.mxu0 %v2349
    %2400 = vmatprep.subr.mxu0 0.0
    %2401 = vmatpush1.msra.mxu0 %v2347
    %2402 = vmatprep.subr.mxu0 0.0
    %2403 = vmatpush2.msra.mxu0 0.0
    %2404 = vmatprep.subr.mxu0 0.0
    %2405 = vmatpush2.msra.mxu0 0.0
    %2406 = vmatprep.subr.mxu0 0.0
    %2407 = vmatpush2.msra.mxu0 0.0
    %2408 = vmatprep.subr.mxu0 0.0
    %2409 = vmatpush2.msra.mxu0 0.0
    %2410 = vmatprep.subr.mxu0 0.0
    %2411 = vmatpush2.msra.mxu0 0.0
    %2412 = vmatprep.subr.mxu0 0.0
    %2413 = vmatpush2.msra.mxu0 0.0
    %2414 = vmatprep.subr.mxu0 0.0
    %2415 = vmatpush2.msra.mxu0 0.0
    %2416 = vmatprep.subr.mxu0 0.0
    %2417 = vmatpush2.msra.mxu0 0.0
    %2418 = vmatprep.subr.mxu0 0.0
    %2419 = vmatpush2.msra.mxu0 0.0
    %2420 = vmatprep.subr.mxu0 0.0
    %2421 = vmatpush2.msra.mxu0 0.0
    %2422 = vmatprep.subr.mxu0 0.0
    %2423 = vmatpush2.msra.mxu0 0.0
    %2424 = vmatprep.subr.mxu0 0.0
    %2425 = vmatpush2.msra.mxu0 0.0
    %2426 = vmatprep.subr.mxu0 0.0
    %2427 = vmatpush2.msra.mxu0 0.0
    %2428 = vmatprep.subr.mxu0 0.0
    %2429 = vmatpush2.msra.mxu0 0.0
    %2430 = vmatprep.subr.mxu0 0.0
    %2431 = vmatpush2.msra.mxu0 0.0
    %2432 = vmatprep.subr.mxu0 0.0
    %2433 = vmatpush2.msra.mxu0 0.0
    %2434 = vmatprep.mubr.f32.mxu0 0.0
    %2435 = vmatmul.mubr.f32.gmra.mxu0 %v2359
    %v2436 = vpop.f32.mrf.mxu0
    %v2437 = vadd.f32 %v2341, %v2436
    %v2438 = vpop.f32.mrf.mxu0
    %2439 = vmatprep.mubr.f32.mxu0 0.0
    %2440 = vmatmul.mubr.f32.gmra.mxu0 %v2362
    %v2441 = vpop.f32.mrf.mxu0
    %v2442 = vadd.f32 %v2341, %v2441
    %v2443 = vpop.f32.mrf.mxu0
    %2444 = vmatprep.mubr.f32.mxu0 0.0
    %2445 = vmatmul.mubr.f32.gmra.mxu0 %v2365
    %v2446 = vpop.f32.mrf.mxu0
    %v2447 = vadd.f32 %v2341, %v2446
    %v2448 = vpop.f32.mrf.mxu0
    %2449 = vmatprep.mubr.f32.mxu0 0.0
    %2450 = vmatmul.mubr.f32.gmra.mxu0 %v2368
    %v2451 = vpop.f32.mrf.mxu0
    %v2452 = vadd.f32 %v2341, %v2451
    %v2453 = vpop.f32.mrf.mxu0
    %2454 = vdwg.mxu0
    %v2455 = vld [vmem:[#allocation10] sm:$0xff]
    %v2456 = vld [vmem:[#allocation10 + $0x8] sm:$0xff]
    %v2457 = vld [vmem:[#allocation10 + $0x10] sm:$0xff]
    %v2458 = vld [vmem:[#allocation10 + $0x18] sm:$0xff]
    %v2459 = vld [vmem:[#allocation10 + $0x20] sm:$0xff]
    %v2460 = vld [vmem:[#allocation10 + $0x28] sm:$0xff]
    %v2461 = vld [vmem:[#allocation10 + $0x30] sm:$0xff]
    %v2462 = vld [vmem:[#allocation10 + $0x38] sm:$0xff]
    %2464 = vrot.lane.b32.xlu0 %v2330, 120
    %v2465 = vpop.permute.xlu0 %2464
    %2466 = vrot.lane.b32.xlu0 %v2330, 112
    %v2467 = vpop.permute.xlu0 %2466
    %2468 = vrot.lane.b32.xlu0 %v2330, 104
    %v2469 = vpop.permute.xlu0 %2468
    %2471 = vrot.lane.b32.xlu0 %v2335, 120
    %v2472 = vpop.permute.xlu0 %2471
    %2473 = vrot.lane.b32.xlu0 %v2335, 112
    %v2474 = vpop.permute.xlu0 %2473
    %2475 = vrot.lane.b32.xlu0 %v2335, 104
    %v2476 = vpop.permute.xlu0 %2475
    %2479 = vrot.lane.b32.xlu0 %v2437, 120
    %v2480 = vpop.permute.xlu0 %2479
    %2481 = vrot.lane.b32.xlu0 %v2442, 120
    %v2482 = vpop.permute.xlu0 %2481
    %2483 = vrot.lane.b32.xlu0 %v2437, 112
    %v2484 = vpop.permute.xlu0 %2483
    %2485 = vrot.lane.b32.xlu0 %v2442, 112
    %v2486 = vpop.permute.xlu0 %2485
    %2487 = vrot.lane.b32.xlu0 %v2437, 104
    %v2488 = vpop.permute.xlu0 %2487
    %2489 = vrot.lane.b32.xlu0 %v2442, 104
    %v2490 = vpop.permute.xlu0 %2489
    %2493 = vrot.lane.b32.xlu0 %v2447, 120
    %v2494 = vpop.permute.xlu0 %2493
    %2495 = vrot.lane.b32.xlu0 %v2452, 120
    %v2496 = vpop.permute.xlu0 %2495
    %2497 = vrot.lane.b32.xlu0 %v2447, 112
    %v2498 = vpop.permute.xlu0 %2497
    %2499 = vrot.lane.b32.xlu0 %v2452, 112
    %v2500 = vpop.permute.xlu0 %2499
    %2501 = vrot.lane.b32.xlu0 %v2447, 104
    %v2502 = vpop.permute.xlu0 %2501
    %2503 = vrot.lane.b32.xlu0 %v2452, 104
    %v2504 = vpop.permute.xlu0 %2503
    %v2505 = vsel %vm283, %v2330, 0
    %v2507 = vsel %vm283, %v2437, 0
    %v2509 = vsel %vm283, %v2442, 0
    %2511 = vmatprep.subr.mxu0 0.0
    %2512 = vmatpush1.xpose.msra.mxu0 0.0
    %2513 = vmatprep.subr.mxu0 0.0
    %2514 = vmatpush1.xpose.msra.mxu0 0.0
    %2515 = vmatprep.subr.mxu0 0.0
    %2516 = vmatpush1.xpose.msra.mxu0 0.0
    %2517 = vmatprep.subr.mxu0 0.0
    %2518 = vmatpush1.xpose.msra.mxu0 0.0
    %2519 = vmatprep.subr.mxu0 0.0
    %2520 = vmatpush1.xpose.msra.mxu0 0.0
    %2521 = vmatprep.subr.mxu0 0.0
    %2522 = vmatpush1.xpose.msra.mxu0 0.0
    %2523 = vmatprep.subr.mxu0 0.0
    %2524 = vmatpush1.xpose.msra.mxu0 0.0
    %2525 = vmatprep.subr.mxu0 0.0
    %2526 = vmatpush1.xpose.msra.mxu0 0.0
    %2527 = vmatprep.subr.mxu0 0.0
    %2528 = vmatpush1.xpose.msra.mxu0 0.0
    %2529 = vmatprep.subr.mxu0 0.0
    %2530 = vmatpush1.xpose.msra.mxu0 0.0
    %2531 = vmatprep.subr.mxu0 0.0
    %2532 = vmatpush1.xpose.msra.mxu0 0.0
    %2533 = vmatprep.subr.mxu0 0.0
    %2534 = vmatpush1.xpose.msra.mxu0 0.0
    %2535 = vmatprep.subr.mxu0 0.0
    %2536 = vmatpush1.xpose.msra.mxu0 0.0
    %2537 = vmatprep.subr.mxu0 0.0
    %2538 = vmatpush1.xpose.msra.mxu0 0.0
    %2539 = vmatprep.subr.mxu0 0.0
    %2540 = vmatpush1.xpose.msra.mxu0 %v2509
    %2541 = vmatprep.subr.mxu0 0.0
    %2542 = vmatpush1.xpose.msra.mxu0 %v2507
    %2543 = vmatprep.subr.mxu0 0.0
    %2544 = vmatpush2.xpose.msra.mxu0 0.0
    %2545 = vmatprep.subr.mxu0 0.0
    %2546 = vmatpush2.xpose.msra.mxu0 0.0
    %2547 = vmatprep.subr.mxu0 0.0
    %2548 = vmatpush2.xpose.msra.mxu0 0.0
    %2549 = vmatprep.subr.mxu0 0.0
    %2550 = vmatpush2.xpose.msra.mxu0 0.0
    %2551 = vmatprep.subr.mxu0 0.0
    %2552 = vmatpush2.xpose.msra.mxu0 0.0
    %2553 = vmatprep.subr.mxu0 0.0
    %2554 = vmatpush2.xpose.msra.mxu0 0.0
    %2555 = vmatprep.subr.mxu0 0.0
    %2556 = vmatpush2.xpose.msra.mxu0 0.0
    %2557 = vmatprep.subr.mxu0 0.0
    %2558 = vmatpush2.xpose.msra.mxu0 0.0
    %2559 = vmatprep.subr.mxu0 0.0
    %2560 = vmatpush2.xpose.msra.mxu0 0.0
    %2561 = vmatprep.subr.mxu0 0.0
    %2562 = vmatpush2.xpose.msra.mxu0 0.0
    %2563 = vmatprep.subr.mxu0 0.0
    %2564 = vmatpush2.xpose.msra.mxu0 0.0
    %2565 = vmatprep.subr.mxu0 0.0
    %2566 = vmatpush2.xpose.msra.mxu0 0.0
    %2567 = vmatprep.subr.mxu0 0.0
    %2568 = vmatpush2.xpose.msra.mxu0 0.0
    %2569 = vmatprep.subr.mxu0 0.0
    %2570 = vmatpush2.xpose.msra.mxu0 0.0
    %2571 = vmatprep.subr.mxu0 0.0
    %2572 = vmatpush2.xpose.msra.mxu0 0.0
    %2573 = vmatprep.subr.mxu0 0.0
    %2574 = vmatpush2.xpose.msra.mxu0 0.0
    %2575 = vmatprep.mubr.f32.mxu0 0.0
    %2576 = vmatmul.mubr.f32.gmra.mxu0 %v2505
    %v2577 = vpop.f32.mrf.mxu0
    %v2578 = vadd.f32 0.0, %v2577
    %v2579 = vpop.f32.mrf.mxu0
    %2580 = vdwg.mxu0
    %v2581 = vsel %vm283, %v2465, 0
    %v2583 = vsel %vm283, %v2480, 0
    %v2585 = vsel %vm283, %v2482, 0
    %2587 = vmatprep.subr.mxu0 0.0
    %2588 = vmatpush1.xpose.msra.mxu0 0.0
    %2589 = vmatprep.subr.mxu0 0.0
    %2590 = vmatpush1.xpose.msra.mxu0 0.0
    %2591 = vmatprep.subr.mxu0 0.0
    %2592 = vmatpush1.xpose.msra.mxu0 0.0
    %2593 = vmatprep.subr.mxu0 0.0
    %2594 = vmatpush1.xpose.msra.mxu0 0.0
    %2595 = vmatprep.subr.mxu0 0.0
    %2596 = vmatpush1.xpose.msra.mxu0 0.0
    %2597 = vmatprep.subr.mxu0 0.0
    %2598 = vmatpush1.xpose.msra.mxu0 0.0
    %2599 = vmatprep.subr.mxu0 0.0
    %2600 = vmatpush1.xpose.msra.mxu0 0.0
    %2601 = vmatprep.subr.mxu0 0.0
    %2602 = vmatpush1.xpose.msra.mxu0 0.0
    %2603 = vmatprep.subr.mxu0 0.0
    %2604 = vmatpush1.xpose.msra.mxu0 0.0
    %2605 = vmatprep.subr.mxu0 0.0
    %2606 = vmatpush1.xpose.msra.mxu0 0.0
    %2607 = vmatprep.subr.mxu0 0.0
    %2608 = vmatpush1.xpose.msra.mxu0 0.0
    %2609 = vmatprep.subr.mxu0 0.0
    %2610 = vmatpush1.xpose.msra.mxu0 0.0
    %2611 = vmatprep.subr.mxu0 0.0
    %2612 = vmatpush1.xpose.msra.mxu0 0.0
    %2613 = vmatprep.subr.mxu0 0.0
    %2614 = vmatpush1.xpose.msra.mxu0 0.0
    %2615 = vmatprep.subr.mxu0 0.0
    %2616 = vmatpush1.xpose.msra.mxu0 %v2585
    %2617 = vmatprep.subr.mxu0 0.0
    %2618 = vmatpush1.xpose.msra.mxu0 %v2583
    %2619 = vmatprep.subr.mxu0 0.0
    %2620 = vmatpush2.xpose.msra.mxu0 0.0
    %2621 = vmatprep.subr.mxu0 0.0
    %2622 = vmatpush2.xpose.msra.mxu0 0.0
    %2623 = vmatprep.subr.mxu0 0.0
    %2624 = vmatpush2.xpose.msra.mxu0 0.0
    %2625 = vmatprep.subr.mxu0 0.0
    %2626 = vmatpush2.xpose.msra.mxu0 0.0
    %2627 = vmatprep.subr.mxu0 0.0
    %2628 = vmatpush2.xpose.msra.mxu0 0.0
    %2629 = vmatprep.subr.mxu0 0.0
    %2630 = vmatpush2.xpose.msra.mxu0 0.0
    %2631 = vmatprep.subr.mxu0 0.0
    %2632 = vmatpush2.xpose.msra.mxu0 0.0
    %2633 = vmatprep.subr.mxu0 0.0
    %2634 = vmatpush2.xpose.msra.mxu0 0.0
    %2635 = vmatprep.subr.mxu0 0.0
    %2636 = vmatpush2.xpose.msra.mxu0 0.0
    %2637 = vmatprep.subr.mxu0 0.0
    %2638 = vmatpush2.xpose.msra.mxu0 0.0
    %2639 = vmatprep.subr.mxu0 0.0
    %2640 = vmatpush2.xpose.msra.mxu0 0.0
    %2641 = vmatprep.subr.mxu0 0.0
    %2642 = vmatpush2.xpose.msra.mxu0 0.0
    %2643 = vmatprep.subr.mxu0 0.0
    %2644 = vmatpush2.xpose.msra.mxu0 0.0
    %2645 = vmatprep.subr.mxu0 0.0
    %2646 = vmatpush2.xpose.msra.mxu0 0.0
    %2647 = vmatprep.subr.mxu0 0.0
    %2648 = vmatpush2.xpose.msra.mxu0 0.0
    %2649 = vmatprep.subr.mxu0 0.0
    %2650 = vmatpush2.xpose.msra.mxu0 0.0
    %2651 = vmatprep.mubr.f32.mxu0 0.0
    %2652 = vmatmul.mubr.f32.gmra.mxu0 %v2581
    %v2653 = vpop.f32.mrf.mxu0
    %v2654 = vadd.f32 0.0, %v2653
    %v2655 = vpop.f32.mrf.mxu0
    %2656 = vdwg.mxu0
    %v2657 = vsel %vm283, %v2467, 0
    %v2659 = vsel %vm283, %v2484, 0
    %v2661 = vsel %vm283, %v2486, 0
    %2663 = vmatprep.subr.mxu0 0.0
    %2664 = vmatpush1.xpose.msra.mxu0 0.0
    %2665 = vmatprep.subr.mxu0 0.0
    %2666 = vmatpush1.xpose.msra.mxu0 0.0
    %2667 = vmatprep.subr.mxu0 0.0
    %2668 = vmatpush1.xpose.msra.mxu0 0.0
    %2669 = vmatprep.subr.mxu0 0.0
    %2670 = vmatpush1.xpose.msra.mxu0 0.0
    %2671 = vmatprep.subr.mxu0 0.0
    %2672 = vmatpush1.xpose.msra.mxu0 0.0
    %2673 = vmatprep.subr.mxu0 0.0
    %2674 = vmatpush1.xpose.msra.mxu0 0.0
    %2675 = vmatprep.subr.mxu0 0.0
    %2676 = vmatpush1.xpose.msra.mxu0 0.0
    %2677 = vmatprep.subr.mxu0 0.0
    %2678 = vmatpush1.xpose.msra.mxu0 0.0
    %2679 = vmatprep.subr.mxu0 0.0
    %2680 = vmatpush1.xpose.msra.mxu0 0.0
    %2681 = vmatprep.subr.mxu0 0.0
    %2682 = vmatpush1.xpose.msra.mxu0 0.0
    %2683 = vmatprep.subr.mxu0 0.0
    %2684 = vmatpush1.xpose.msra.mxu0 0.0
    %2685 = vmatprep.subr.mxu0 0.0
    %2686 = vmatpush1.xpose.msra.mxu0 0.0
    %2687 = vmatprep.subr.mxu0 0.0
    %2688 = vmatpush1.xpose.msra.mxu0 0.0
    %2689 = vmatprep.subr.mxu0 0.0
    %2690 = vmatpush1.xpose.msra.mxu0 0.0
    %2691 = vmatprep.subr.mxu0 0.0
    %2692 = vmatpush1.xpose.msra.mxu0 %v2661
    %2693 = vmatprep.subr.mxu0 0.0
    %2694 = vmatpush1.xpose.msra.mxu0 %v2659
    %2695 = vmatprep.subr.mxu0 0.0
    %2696 = vmatpush2.xpose.msra.mxu0 0.0
    %2697 = vmatprep.subr.mxu0 0.0
    %2698 = vmatpush2.xpose.msra.mxu0 0.0
    %2699 = vmatprep.subr.mxu0 0.0
    %2700 = vmatpush2.xpose.msra.mxu0 0.0
    %2701 = vmatprep.subr.mxu0 0.0
    %2702 = vmatpush2.xpose.msra.mxu0 0.0
    %2703 = vmatprep.subr.mxu0 0.0
    %2704 = vmatpush2.xpose.msra.mxu0 0.0
    %2705 = vmatprep.subr.mxu0 0.0
    %2706 = vmatpush2.xpose.msra.mxu0 0.0
    %2707 = vmatprep.subr.mxu0 0.0
    %2708 = vmatpush2.xpose.msra.mxu0 0.0
    %2709 = vmatprep.subr.mxu0 0.0
    %2710 = vmatpush2.xpose.msra.mxu0 0.0
    %2711 = vmatprep.subr.mxu0 0.0
    %2712 = vmatpush2.xpose.msra.mxu0 0.0
    %2713 = vmatprep.subr.mxu0 0.0
    %2714 = vmatpush2.xpose.msra.mxu0 0.0
    %2715 = vmatprep.subr.mxu0 0.0
    %2716 = vmatpush2.xpose.msra.mxu0 0.0
    %2717 = vmatprep.subr.mxu0 0.0
    %2718 = vmatpush2.xpose.msra.mxu0 0.0
    %2719 = vmatprep.subr.mxu0 0.0
    %2720 = vmatpush2.xpose.msra.mxu0 0.0
    %2721 = vmatprep.subr.mxu0 0.0
    %2722 = vmatpush2.xpose.msra.mxu0 0.0
    %2723 = vmatprep.subr.mxu0 0.0
    %2724 = vmatpush2.xpose.msra.mxu0 0.0
    %2725 = vmatprep.subr.mxu0 0.0
    %2726 = vmatpush2.xpose.msra.mxu0 0.0
    %2727 = vmatprep.mubr.f32.mxu0 0.0
    %2728 = vmatmul.mubr.f32.gmra.mxu0 %v2657
    %v2729 = vpop.f32.mrf.mxu0
    %v2730 = vadd.f32 0.0, %v2729
    %v2731 = vpop.f32.mrf.mxu0
    %2732 = vdwg.mxu0
    %v2733 = vsel %vm283, %v2469, 0
    %v2735 = vsel %vm283, %v2488, 0
    %v2737 = vsel %vm283, %v2490, 0
    %2739 = vmatprep.subr.mxu0 0.0
    %2740 = vmatpush1.xpose.msra.mxu0 0.0
    %2741 = vmatprep.subr.mxu0 0.0
    %2742 = vmatpush1.xpose.msra.mxu0 0.0
    %2743 = vmatprep.subr.mxu0 0.0
    %2744 = vmatpush1.xpose.msra.mxu0 0.0
    %2745 = vmatprep.subr.mxu0 0.0
    %2746 = vmatpush1.xpose.msra.mxu0 0.0
    %2747 = vmatprep.subr.mxu0 0.0
    %2748 = vmatpush1.xpose.msra.mxu0 0.0
    %2749 = vmatprep.subr.mxu0 0.0
    %2750 = vmatpush1.xpose.msra.mxu0 0.0
    %2751 = vmatprep.subr.mxu0 0.0
    %2752 = vmatpush1.xpose.msra.mxu0 0.0
    %2753 = vmatprep.subr.mxu0 0.0
    %2754 = vmatpush1.xpose.msra.mxu0 0.0
    %2755 = vmatprep.subr.mxu0 0.0
    %2756 = vmatpush1.xpose.msra.mxu0 0.0
    %2757 = vmatprep.subr.mxu0 0.0
    %2758 = vmatpush1.xpose.msra.mxu0 0.0
    %2759 = vmatprep.subr.mxu0 0.0
    %2760 = vmatpush1.xpose.msra.mxu0 0.0
    %2761 = vmatprep.subr.mxu0 0.0
    %2762 = vmatpush1.xpose.msra.mxu0 0.0
    %2763 = vmatprep.subr.mxu0 0.0
    %2764 = vmatpush1.xpose.msra.mxu0 0.0
    %2765 = vmatprep.subr.mxu0 0.0
    %2766 = vmatpush1.xpose.msra.mxu0 0.0
    %2767 = vmatprep.subr.mxu0 0.0
    %2768 = vmatpush1.xpose.msra.mxu0 %v2737
    %2769 = vmatprep.subr.mxu0 0.0
    %2770 = vmatpush1.xpose.msra.mxu0 %v2735
    %2771 = vmatprep.subr.mxu0 0.0
    %2772 = vmatpush2.xpose.msra.mxu0 0.0
    %2773 = vmatprep.subr.mxu0 0.0
    %2774 = vmatpush2.xpose.msra.mxu0 0.0
    %2775 = vmatprep.subr.mxu0 0.0
    %2776 = vmatpush2.xpose.msra.mxu0 0.0
    %2777 = vmatprep.subr.mxu0 0.0
    %2778 = vmatpush2.xpose.msra.mxu0 0.0
    %2779 = vmatprep.subr.mxu0 0.0
    %2780 = vmatpush2.xpose.msra.mxu0 0.0
    %2781 = vmatprep.subr.mxu0 0.0
    %2782 = vmatpush2.xpose.msra.mxu0 0.0
    %2783 = vmatprep.subr.mxu0 0.0
    %2784 = vmatpush2.xpose.msra.mxu0 0.0
    %2785 = vmatprep.subr.mxu0 0.0
    %2786 = vmatpush2.xpose.msra.mxu0 0.0
    %2787 = vmatprep.subr.mxu0 0.0
    %2788 = vmatpush2.xpose.msra.mxu0 0.0
    %2789 = vmatprep.subr.mxu0 0.0
    %2790 = vmatpush2.xpose.msra.mxu0 0.0
    %2791 = vmatprep.subr.mxu0 0.0
    %2792 = vmatpush2.xpose.msra.mxu0 0.0
    %2793 = vmatprep.subr.mxu0 0.0
    %2794 = vmatpush2.xpose.msra.mxu0 0.0
    %2795 = vmatprep.subr.mxu0 0.0
    %2796 = vmatpush2.xpose.msra.mxu0 0.0
    %2797 = vmatprep.subr.mxu0 0.0
    %2798 = vmatpush2.xpose.msra.mxu0 0.0
    %2799 = vmatprep.subr.mxu0 0.0
    %2800 = vmatpush2.xpose.msra.mxu0 0.0
    %2801 = vmatprep.subr.mxu0 0.0
    %2802 = vmatpush2.xpose.msra.mxu0 0.0
    %2803 = vmatprep.mubr.f32.mxu0 0.0
    %2804 = vmatmul.mubr.f32.gmra.mxu0 %v2733
    %v2805 = vpop.f32.mrf.mxu0
    %v2806 = vadd.f32 0.0, %v2805
    %v2807 = vpop.f32.mrf.mxu0
    %2808 = vdwg.mxu0
    %v2809 = vsel %vm283, %v2335, 0
    %v2811 = vsel %vm283, %v2447, 0
    %v2813 = vsel %vm283, %v2452, 0
    %2815 = vmatprep.subr.mxu0 0.0
    %2816 = vmatpush1.xpose.msra.mxu0 0.0
    %2817 = vmatprep.subr.mxu0 0.0
    %2818 = vmatpush1.xpose.msra.mxu0 0.0
    %2819 = vmatprep.subr.mxu0 0.0
    %2820 = vmatpush1.xpose.msra.mxu0 0.0
    %2821 = vmatprep.subr.mxu0 0.0
    %2822 = vmatpush1.xpose.msra.mxu0 0.0
    %2823 = vmatprep.subr.mxu0 0.0
    %2824 = vmatpush1.xpose.msra.mxu0 0.0
    %2825 = vmatprep.subr.mxu0 0.0
    %2826 = vmatpush1.xpose.msra.mxu0 0.0
    %2827 = vmatprep.subr.mxu0 0.0
    %2828 = vmatpush1.xpose.msra.mxu0 0.0
    %2829 = vmatprep.subr.mxu0 0.0
    %2830 = vmatpush1.xpose.msra.mxu0 0.0
    %2831 = vmatprep.subr.mxu0 0.0
    %2832 = vmatpush1.xpose.msra.mxu0 0.0
    %2833 = vmatprep.subr.mxu0 0.0
    %2834 = vmatpush1.xpose.msra.mxu0 0.0
    %2835 = vmatprep.subr.mxu0 0.0
    %2836 = vmatpush1.xpose.msra.mxu0 0.0
    %2837 = vmatprep.subr.mxu0 0.0
    %2838 = vmatpush1.xpose.msra.mxu0 0.0
    %2839 = vmatprep.subr.mxu0 0.0
    %2840 = vmatpush1.xpose.msra.mxu0 0.0
    %2841 = vmatprep.subr.mxu0 0.0
    %2842 = vmatpush1.xpose.msra.mxu0 0.0
    %2843 = vmatprep.subr.mxu0 0.0
    %2844 = vmatpush1.xpose.msra.mxu0 %v2813
    %2845 = vmatprep.subr.mxu0 0.0
    %2846 = vmatpush1.xpose.msra.mxu0 %v2811
    %2847 = vmatprep.subr.mxu0 0.0
    %2848 = vmatpush2.xpose.msra.mxu0 0.0
    %2849 = vmatprep.subr.mxu0 0.0
    %2850 = vmatpush2.xpose.msra.mxu0 0.0
    %2851 = vmatprep.subr.mxu0 0.0
    %2852 = vmatpush2.xpose.msra.mxu0 0.0
    %2853 = vmatprep.subr.mxu0 0.0
    %2854 = vmatpush2.xpose.msra.mxu0 0.0
    %2855 = vmatprep.subr.mxu0 0.0
    %2856 = vmatpush2.xpose.msra.mxu0 0.0
    %2857 = vmatprep.subr.mxu0 0.0
    %2858 = vmatpush2.xpose.msra.mxu0 0.0
    %2859 = vmatprep.subr.mxu0 0.0
    %2860 = vmatpush2.xpose.msra.mxu0 0.0
    %2861 = vmatprep.subr.mxu0 0.0
    %2862 = vmatpush2.xpose.msra.mxu0 0.0
    %2863 = vmatprep.subr.mxu0 0.0
    %2864 = vmatpush2.xpose.msra.mxu0 0.0
    %2865 = vmatprep.subr.mxu0 0.0
    %2866 = vmatpush2.xpose.msra.mxu0 0.0
    %2867 = vmatprep.subr.mxu0 0.0
    %2868 = vmatpush2.xpose.msra.mxu0 0.0
    %2869 = vmatprep.subr.mxu0 0.0
    %2870 = vmatpush2.xpose.msra.mxu0 0.0
    %2871 = vmatprep.subr.mxu0 0.0
    %2872 = vmatpush2.xpose.msra.mxu0 0.0
    %2873 = vmatprep.subr.mxu0 0.0
    %2874 = vmatpush2.xpose.msra.mxu0 0.0
    %2875 = vmatprep.subr.mxu0 0.0
    %2876 = vmatpush2.xpose.msra.mxu0 0.0
    %2877 = vmatprep.subr.mxu0 0.0
    %2878 = vmatpush2.xpose.msra.mxu0 0.0
    %2879 = vmatprep.mubr.f32.mxu0 0.0
    %2880 = vmatmul.mubr.f32.gmra.mxu0 %v2809
    %v2881 = vpop.f32.mrf.mxu0
    %v2882 = vadd.f32 0.0, %v2881
    %v2883 = vpop.f32.mrf.mxu0
    %2884 = vdwg.mxu0
    %v2885 = vsel %vm283, %v2472, 0
    %v2887 = vsel %vm283, %v2494, 0
    %v2889 = vsel %vm283, %v2496, 0
    %2891 = vmatprep.subr.mxu0 0.0
    %2892 = vmatpush1.xpose.msra.mxu0 0.0
    %2893 = vmatprep.subr.mxu0 0.0
    %2894 = vmatpush1.xpose.msra.mxu0 0.0
    %2895 = vmatprep.subr.mxu0 0.0
    %2896 = vmatpush1.xpose.msra.mxu0 0.0
    %2897 = vmatprep.subr.mxu0 0.0
    %2898 = vmatpush1.xpose.msra.mxu0 0.0
    %2899 = vmatprep.subr.mxu0 0.0
    %2900 = vmatpush1.xpose.msra.mxu0 0.0
    %2901 = vmatprep.subr.mxu0 0.0
    %2902 = vmatpush1.xpose.msra.mxu0 0.0
    %2903 = vmatprep.subr.mxu0 0.0
    %2904 = vmatpush1.xpose.msra.mxu0 0.0
    %2905 = vmatprep.subr.mxu0 0.0
    %2906 = vmatpush1.xpose.msra.mxu0 0.0
    %2907 = vmatprep.subr.mxu0 0.0
    %2908 = vmatpush1.xpose.msra.mxu0 0.0
    %2909 = vmatprep.subr.mxu0 0.0
    %2910 = vmatpush1.xpose.msra.mxu0 0.0
    %2911 = vmatprep.subr.mxu0 0.0
    %2912 = vmatpush1.xpose.msra.mxu0 0.0
    %2913 = vmatprep.subr.mxu0 0.0
    %2914 = vmatpush1.xpose.msra.mxu0 0.0
    %2915 = vmatprep.subr.mxu0 0.0
    %2916 = vmatpush1.xpose.msra.mxu0 0.0
    %2917 = vmatprep.subr.mxu0 0.0
    %2918 = vmatpush1.xpose.msra.mxu0 0.0
    %2919 = vmatprep.subr.mxu0 0.0
    %2920 = vmatpush1.xpose.msra.mxu0 %v2889
    %2921 = vmatprep.subr.mxu0 0.0
    %2922 = vmatpush1.xpose.msra.mxu0 %v2887
    %2923 = vmatprep.subr.mxu0 0.0
    %2924 = vmatpush2.xpose.msra.mxu0 0.0
    %2925 = vmatprep.subr.mxu0 0.0
    %2926 = vmatpush2.xpose.msra.mxu0 0.0
    %2927 = vmatprep.subr.mxu0 0.0
    %2928 = vmatpush2.xpose.msra.mxu0 0.0
    %2929 = vmatprep.subr.mxu0 0.0
    %2930 = vmatpush2.xpose.msra.mxu0 0.0
    %2931 = vmatprep.subr.mxu0 0.0
    %2932 = vmatpush2.xpose.msra.mxu0 0.0
    %2933 = vmatprep.subr.mxu0 0.0
    %2934 = vmatpush2.xpose.msra.mxu0 0.0
    %2935 = vmatprep.subr.mxu0 0.0
    %2936 = vmatpush2.xpose.msra.mxu0 0.0
    %2937 = vmatprep.subr.mxu0 0.0
    %2938 = vmatpush2.xpose.msra.mxu0 0.0
    %2939 = vmatprep.subr.mxu0 0.0
    %2940 = vmatpush2.xpose.msra.mxu0 0.0
    %2941 = vmatprep.subr.mxu0 0.0
    %2942 = vmatpush2.xpose.msra.mxu0 0.0
    %2943 = vmatprep.subr.mxu0 0.0
    %2944 = vmatpush2.xpose.msra.mxu0 0.0
    %2945 = vmatprep.subr.mxu0 0.0
    %2946 = vmatpush2.xpose.msra.mxu0 0.0
    %2947 = vmatprep.subr.mxu0 0.0
    %2948 = vmatpush2.xpose.msra.mxu0 0.0
    %2949 = vmatprep.subr.mxu0 0.0
    %2950 = vmatpush2.xpose.msra.mxu0 0.0
    %2951 = vmatprep.subr.mxu0 0.0
    %2952 = vmatpush2.xpose.msra.mxu0 0.0
    %2953 = vmatprep.subr.mxu0 0.0
    %2954 = vmatpush2.xpose.msra.mxu0 0.0
    %2955 = vmatprep.mubr.f32.mxu0 0.0
    %2956 = vmatmul.mubr.f32.gmra.mxu0 %v2885
    %v2957 = vpop.f32.mrf.mxu0
    %v2958 = vadd.f32 0.0, %v2957
    %v2959 = vpop.f32.mrf.mxu0
    %2960 = vdwg.mxu0
    %v2961 = vsel %vm283, %v2474, 0
    %v2963 = vsel %vm283, %v2498, 0
    %v2965 = vsel %vm283, %v2500, 0
    %2967 = vmatprep.subr.mxu0 0.0
    %2968 = vmatpush1.xpose.msra.mxu0 0.0
    %2969 = vmatprep.subr.mxu0 0.0
    %2970 = vmatpush1.xpose.msra.mxu0 0.0
    %2971 = vmatprep.subr.mxu0 0.0
    %2972 = vmatpush1.xpose.msra.mxu0 0.0
    %2973 = vmatprep.subr.mxu0 0.0
    %2974 = vmatpush1.xpose.msra.mxu0 0.0
    %2975 = vmatprep.subr.mxu0 0.0
    %2976 = vmatpush1.xpose.msra.mxu0 0.0
    %2977 = vmatprep.subr.mxu0 0.0
    %2978 = vmatpush1.xpose.msra.mxu0 0.0
    %2979 = vmatprep.subr.mxu0 0.0
    %2980 = vmatpush1.xpose.msra.mxu0 0.0
    %2981 = vmatprep.subr.mxu0 0.0
    %2982 = vmatpush1.xpose.msra.mxu0 0.0
    %2983 = vmatprep.subr.mxu0 0.0
    %2984 = vmatpush1.xpose.msra.mxu0 0.0
    %2985 = vmatprep.subr.mxu0 0.0
    %2986 = vmatpush1.xpose.msra.mxu0 0.0
    %2987 = vmatprep.subr.mxu0 0.0
    %2988 = vmatpush1.xpose.msra.mxu0 0.0
    %2989 = vmatprep.subr.mxu0 0.0
    %2990 = vmatpush1.xpose.msra.mxu0 0.0
    %2991 = vmatprep.subr.mxu0 0.0
    %2992 = vmatpush1.xpose.msra.mxu0 0.0
    %2993 = vmatprep.subr.mxu0 0.0
    %2994 = vmatpush1.xpose.msra.mxu0 0.0
    %2995 = vmatprep.subr.mxu0 0.0
    %2996 = vmatpush1.xpose.msra.mxu0 %v2965
    %2997 = vmatprep.subr.mxu0 0.0
    %2998 = vmatpush1.xpose.msra.mxu0 %v2963
    %2999 = vmatprep.subr.mxu0 0.0
    %3000 = vmatpush2.xpose.msra.mxu0 0.0
    %3001 = vmatprep.subr.mxu0 0.0
    %3002 = vmatpush2.xpose.msra.mxu0 0.0
    %3003 = vmatprep.subr.mxu0 0.0
    %3004 = vmatpush2.xpose.msra.mxu0 0.0
    %3005 = vmatprep.subr.mxu0 0.0
    %3006 = vmatpush2.xpose.msra.mxu0 0.0
    %3007 = vmatprep.subr.mxu0 0.0
    %3008 = vmatpush2.xpose.msra.mxu0 0.0
    %3009 = vmatprep.subr.mxu0 0.0
    %3010 = vmatpush2.xpose.msra.mxu0 0.0
    %3011 = vmatprep.subr.mxu0 0.0
    %3012 = vmatpush2.xpose.msra.mxu0 0.0
    %3013 = vmatprep.subr.mxu0 0.0
    %3014 = vmatpush2.xpose.msra.mxu0 0.0
    %3015 = vmatprep.subr.mxu0 0.0
    %3016 = vmatpush2.xpose.msra.mxu0 0.0
    %3017 = vmatprep.subr.mxu0 0.0
    %3018 = vmatpush2.xpose.msra.mxu0 0.0
    %3019 = vmatprep.subr.mxu0 0.0
    %3020 = vmatpush2.xpose.msra.mxu0 0.0
    %3021 = vmatprep.subr.mxu0 0.0
    %3022 = vmatpush2.xpose.msra.mxu0 0.0
    %3023 = vmatprep.subr.mxu0 0.0
    %3024 = vmatpush2.xpose.msra.mxu0 0.0
    %3025 = vmatprep.subr.mxu0 0.0
    %3026 = vmatpush2.xpose.msra.mxu0 0.0
    %3027 = vmatprep.subr.mxu0 0.0
    %3028 = vmatpush2.xpose.msra.mxu0 0.0
    %3029 = vmatprep.subr.mxu0 0.0
    %3030 = vmatpush2.xpose.msra.mxu0 0.0
    %3031 = vmatprep.mubr.f32.mxu0 0.0
    %3032 = vmatmul.mubr.f32.gmra.mxu0 %v2961
    %v3033 = vpop.f32.mrf.mxu0
    %v3034 = vadd.f32 0.0, %v3033
    %v3035 = vpop.f32.mrf.mxu0
    %3036 = vdwg.mxu0
    %v3037 = vsel %vm283, %v2476, 0
    %v3039 = vsel %vm283, %v2502, 0
    %v3041 = vsel %vm283, %v2504, 0
    %3043 = vmatprep.subr.mxu0 0.0
    %3044 = vmatpush1.xpose.msra.mxu0 0.0
    %3045 = vmatprep.subr.mxu0 0.0
    %3046 = vmatpush1.xpose.msra.mxu0 0.0
    %3047 = vmatprep.subr.mxu0 0.0
    %3048 = vmatpush1.xpose.msra.mxu0 0.0
    %3049 = vmatprep.subr.mxu0 0.0
    %3050 = vmatpush1.xpose.msra.mxu0 0.0
    %3051 = vmatprep.subr.mxu0 0.0
    %3052 = vmatpush1.xpose.msra.mxu0 0.0
    %3053 = vmatprep.subr.mxu0 0.0
    %3054 = vmatpush1.xpose.msra.mxu0 0.0
    %3055 = vmatprep.subr.mxu0 0.0
    %3056 = vmatpush1.xpose.msra.mxu0 0.0
    %3057 = vmatprep.subr.mxu0 0.0
    %3058 = vmatpush1.xpose.msra.mxu0 0.0
    %3059 = vmatprep.subr.mxu0 0.0
    %3060 = vmatpush1.xpose.msra.mxu0 0.0
    %3061 = vmatprep.subr.mxu0 0.0
    %3062 = vmatpush1.xpose.msra.mxu0 0.0
    %3063 = vmatprep.subr.mxu0 0.0
    %3064 = vmatpush1.xpose.msra.mxu0 0.0
    %3065 = vmatprep.subr.mxu0 0.0
    %3066 = vmatpush1.xpose.msra.mxu0 0.0
    %3067 = vmatprep.subr.mxu0 0.0
    %3068 = vmatpush1.xpose.msra.mxu0 0.0
    %3069 = vmatprep.subr.mxu0 0.0
    %3070 = vmatpush1.xpose.msra.mxu0 0.0
    %3071 = vmatprep.subr.mxu0 0.0
    %3072 = vmatpush1.xpose.msra.mxu0 %v3041
    %3073 = vmatprep.subr.mxu0 0.0
    %3074 = vmatpush1.xpose.msra.mxu0 %v3039
    %3075 = vmatprep.subr.mxu0 0.0
    %3076 = vmatpush2.xpose.msra.mxu0 0.0
    %3077 = vmatprep.subr.mxu0 0.0
    %3078 = vmatpush2.xpose.msra.mxu0 0.0
    %3079 = vmatprep.subr.mxu0 0.0
    %3080 = vmatpush2.xpose.msra.mxu0 0.0
    %3081 = vmatprep.subr.mxu0 0.0
    %3082 = vmatpush2.xpose.msra.mxu0 0.0
    %3083 = vmatprep.subr.mxu0 0.0
    %3084 = vmatpush2.xpose.msra.mxu0 0.0
    %3085 = vmatprep.subr.mxu0 0.0
    %3086 = vmatpush2.xpose.msra.mxu0 0.0
    %3087 = vmatprep.subr.mxu0 0.0
    %3088 = vmatpush2.xpose.msra.mxu0 0.0
    %3089 = vmatprep.subr.mxu0 0.0
    %3090 = vmatpush2.xpose.msra.mxu0 0.0
    %3091 = vmatprep.subr.mxu0 0.0
    %3092 = vmatpush2.xpose.msra.mxu0 0.0
    %3093 = vmatprep.subr.mxu0 0.0
    %3094 = vmatpush2.xpose.msra.mxu0 0.0
    %3095 = vmatprep.subr.mxu0 0.0
    %3096 = vmatpush2.xpose.msra.mxu0 0.0
    %3097 = vmatprep.subr.mxu0 0.0
    %3098 = vmatpush2.xpose.msra.mxu0 0.0
    %3099 = vmatprep.subr.mxu0 0.0
    %3100 = vmatpush2.xpose.msra.mxu0 0.0
    %3101 = vmatprep.subr.mxu0 0.0
    %3102 = vmatpush2.xpose.msra.mxu0 0.0
    %3103 = vmatprep.subr.mxu0 0.0
    %3104 = vmatpush2.xpose.msra.mxu0 0.0
    %3105 = vmatprep.subr.mxu0 0.0
    %3106 = vmatpush2.xpose.msra.mxu0 0.0
    %3107 = vmatprep.mubr.f32.mxu0 0.0
    %3108 = vmatmul.mubr.f32.gmra.mxu0 %v3037
    %v3109 = vpop.f32.mrf.mxu0
    %v3110 = vadd.f32 0.0, %v3109
    %v3111 = vpop.f32.mrf.mxu0
    %3112 = vdwg.mxu0
    %v3113 = vmul.f32 %v2578, 0.35355338
    %v3114 = vmul.f32 %v2654, 0.35355338
    %v3115 = vmul.f32 %v2730, 0.35355338
    %v3116 = vmul.f32 %v2806, 0.35355338
    %v3117 = vmul.f32 %v2882, 0.35355338
    %v3118 = vmul.f32 %v2958, 0.35355338
    %v3119 = vmul.f32 %v3034, 0.35355338
    %v3120 = vmul.f32 %v3110, 0.35355338
    %vm3121 = vcmp.eq.s32.totalorder %v126, 0
    %vm3122 = vcmp.eq.s32.totalorder %v127, 0
    %v3123 = vsel %vm3121, -1e+09, %v3113
    %v3124 = vsel %vm3121, -1e+09, %v3114
    %v3125 = vsel %vm3121, -1e+09, %v3115
    %v3126 = vsel %vm3121, -1e+09, %v3116
    %v3127 = vsel %vm3122, -1e+09, %v3117
    %v3128 = vsel %vm3122, -1e+09, %v3118
    %v3129 = vsel %vm3122, -1e+09, %v3119
    %v3130 = vsel %vm3122, -1e+09, %v3120
    %vm3131 = vcmask 130048
    %v3132 = vsel %vm3131, %v3123, -inf
    %3133 = vmax.xlane.f32.xlu0 %v3132
    %v3134 = vpop.xlane.xlu0 %3133
    %v3135 = vsel %vm3131, %v3124, -inf
    %3136 = vmax.xlane.f32.xlu0 %v3135
    %v3137 = vpop.xlane.xlu0 %3136
    %v3138 = vsel %vm3131, %v3125, -inf
    %3139 = vmax.xlane.f32.xlu0 %v3138
    %v3140 = vpop.xlane.xlu0 %3139
    %v3141 = vsel %vm3131, %v3126, -inf
    %3142 = vmax.xlane.f32.xlu0 %v3141
    %v3143 = vpop.xlane.xlu0 %3142
    %v3144 = vsel %vm3131, %v3127, -inf
    %3145 = vmax.xlane.f32.xlu0 %v3144
    %v3146 = vpop.xlane.xlu0 %3145
    %v3147 = vsel %vm3131, %v3128, -inf
    %3148 = vmax.xlane.f32.xlu0 %v3147
    %v3149 = vpop.xlane.xlu0 %3148
    %v3150 = vsel %vm3131, %v3129, -inf
    %3151 = vmax.xlane.f32.xlu0 %v3150
    %v3152 = vpop.xlane.xlu0 %3151
    %v3153 = vsel %vm3131, %v3130, -inf
    %3154 = vmax.xlane.f32.xlu0 %v3153
    %v3155 = vpop.xlane.xlu0 %3154
    %v3156 = vsub.f32 %v3123, %v3134
    %v3157 = vsub.f32 %v3124, %v3137
    %v3158 = vsub.f32 %v3125, %v3140
    %v3159 = vsub.f32 %v3126, %v3143
    %v3160 = vsub.f32 %v3127, %v3146
    %v3161 = vsub.f32 %v3128, %v3149
    %v3162 = vsub.f32 %v3129, %v3152
    %v3163 = vsub.f32 %v3130, %v3155
    %v3164 = vmul.f32 %v3156, 1.442695
    %v3165 = vpow.pop %v3164
    %v3166 = vmul.f32 %v3157, 1.442695
    %v3167 = vpow.pop %v3166
    %v3168 = vmul.f32 %v3158, 1.442695
    %v3169 = vpow.pop %v3168
    %v3170 = vmul.f32 %v3159, 1.442695
    %v3171 = vpow.pop %v3170
    %v3172 = vmul.f32 %v3160, 1.442695
    %v3173 = vpow.pop %v3172
    %v3174 = vmul.f32 %v3161, 1.442695
    %v3175 = vpow.pop %v3174
    %v3176 = vmul.f32 %v3162, 1.442695
    %v3177 = vpow.pop %v3176
    %v3178 = vmul.f32 %v3163, 1.442695
    %v3179 = vpow.pop %v3178
    %v3180 = vsel %vm3131, %v3165, 0.0
    %3181 = vadd.xlane.f32.xlu0 %v3180
    %v3182 = vpop.xlane.xlu0 %3181
    %v3183 = vsel %vm3131, %v3167, 0.0
    %3184 = vadd.xlane.f32.xlu0 %v3183
    %v3185 = vpop.xlane.xlu0 %3184
    %v3186 = vsel %vm3131, %v3169, 0.0
    %3187 = vadd.xlane.f32.xlu0 %v3186
    %v3188 = vpop.xlane.xlu0 %3187
    %v3189 = vsel %vm3131, %v3171, 0.0
    %3190 = vadd.xlane.f32.xlu0 %v3189
    %v3191 = vpop.xlane.xlu0 %3190
    %v3192 = vsel %vm3131, %v3173, 0.0
    %3193 = vadd.xlane.f32.xlu0 %v3192
    %v3194 = vpop.xlane.xlu0 %3193
    %v3195 = vsel %vm3131, %v3175, 0.0
    %3196 = vadd.xlane.f32.xlu0 %v3195
    %v3197 = vpop.xlane.xlu0 %3196
    %v3198 = vsel %vm3131, %v3177, 0.0
    %3199 = vadd.xlane.f32.xlu0 %v3198
    %v3200 = vpop.xlane.xlu0 %3199
    %v3201 = vsel %vm3131, %v3179, 0.0
    %3202 = vadd.xlane.f32.xlu0 %v3201
    %v3203 = vpop.xlane.xlu0 %3202
    %v3204 = vrcp.pop %v3182
    %v3205 = vrcp.pop %v3185
    %v3206 = vrcp.pop %v3188
    %v3207 = vrcp.pop %v3191
    %v3208 = vrcp.pop %v3194
    %v3209 = vrcp.pop %v3197
    %v3210 = vrcp.pop %v3200
    %v3211 = vrcp.pop %v3203
    %v3212 = vmul.f32 %v3165, %v3204
    %v3213 = vmul.f32 %v3167, %v3205
    %v3214 = vmul.f32 %v3169, %v3206
    %v3215 = vmul.f32 %v3171, %v3207
    %v3216 = vmul.f32 %v3173, %v3208
    %v3217 = vmul.f32 %v3175, %v3209
    %v3218 = vmul.f32 %v3177, %v3210
    %v3219 = vmul.f32 %v3179, %v3211
    %3220 = vrot.lane.b32.xlu0 %v2437, 96
    %v3221 = vpop.permute.xlu0 %3220
    %3222 = vrot.lane.b32.xlu0 %v2442, 96
    %v3223 = vpop.permute.xlu0 %3222
    %v3227 = vsel %vm3131, %v3212, 0
    %3229 = vmatprep.subr.mxu0 0.0
    %3230 = vmatpush1.msra.mxu0 0.0
    %3231 = vmatprep.subr.mxu0 0.0
    %3232 = vmatpush1.msra.mxu0 0.0
    %3233 = vmatprep.subr.mxu0 0.0
    %3234 = vmatpush1.msra.mxu0 0.0
    %3235 = vmatprep.subr.mxu0 0.0
    %3236 = vmatpush1.msra.mxu0 0.0
    %3237 = vmatprep.subr.mxu0 0.0
    %3238 = vmatpush1.msra.mxu0 0.0
    %3239 = vmatprep.subr.mxu0 0.0
    %3240 = vmatpush1.msra.mxu0 0.0
    %3241 = vmatprep.subr.mxu0 0.0
    %3242 = vmatpush1.msra.mxu0 0.0
    %3243 = vmatprep.subr.mxu0 0.0
    %3244 = vmatpush1.msra.mxu0 0.0
    %3245 = vmatprep.subr.mxu0 0.0
    %3246 = vmatpush1.msra.mxu0 0.0
    %3247 = vmatprep.subr.mxu0 0.0
    %3248 = vmatpush1.msra.mxu0 0.0
    %3249 = vmatprep.subr.mxu0 0.0
    %3250 = vmatpush1.msra.mxu0 0.0
    %3251 = vmatprep.subr.mxu0 0.0
    %3252 = vmatpush1.msra.mxu0 0.0
    %3253 = vmatprep.subr.mxu0 0.0
    %3254 = vmatpush1.msra.mxu0 0.0
    %3255 = vmatprep.subr.mxu0 0.0
    %3256 = vmatpush1.msra.mxu0 0.0
    %3257 = vmatprep.subr.mxu0 0.0
    %3258 = vmatpush1.msra.mxu0 %v3223
    %3259 = vmatprep.subr.mxu0 0.0
    %3260 = vmatpush1.msra.mxu0 %v3221
    %3261 = vmatprep.subr.mxu0 0.0
    %3262 = vmatpush2.msra.mxu0 0.0
    %3263 = vmatprep.subr.mxu0 0.0
    %3264 = vmatpush2.msra.mxu0 0.0
    %3265 = vmatprep.subr.mxu0 0.0
    %3266 = vmatpush2.msra.mxu0 0.0
    %3267 = vmatprep.subr.mxu0 0.0
    %3268 = vmatpush2.msra.mxu0 0.0
    %3269 = vmatprep.subr.mxu0 0.0
    %3270 = vmatpush2.msra.mxu0 0.0
    %3271 = vmatprep.subr.mxu0 0.0
    %3272 = vmatpush2.msra.mxu0 0.0
    %3273 = vmatprep.subr.mxu0 0.0
    %3274 = vmatpush2.msra.mxu0 0.0
    %3275 = vmatprep.subr.mxu0 0.0
    %3276 = vmatpush2.msra.mxu0 0.0
    %3277 = vmatprep.subr.mxu0 0.0
    %3278 = vmatpush2.msra.mxu0 0.0
    %3279 = vmatprep.subr.mxu0 0.0
    %3280 = vmatpush2.msra.mxu0 0.0
    %3281 = vmatprep.subr.mxu0 0.0
    %3282 = vmatpush2.msra.mxu0 0.0
    %3283 = vmatprep.subr.mxu0 0.0
    %3284 = vmatpush2.msra.mxu0 0.0
    %3285 = vmatprep.subr.mxu0 0.0
    %3286 = vmatpush2.msra.mxu0 0.0
    %3287 = vmatprep.subr.mxu0 0.0
    %3288 = vmatpush2.msra.mxu0 0.0
    %3289 = vmatprep.subr.mxu0 0.0
    %3290 = vmatpush2.msra.mxu0 0.0
    %3291 = vmatprep.subr.mxu0 0.0
    %3292 = vmatpush2.msra.mxu0 0.0
    %3293 = vmatprep.mubr.f32.mxu0 0.0
    %3294 = vmatmul.mubr.f32.gmra.mxu0 %v3227
    %v3295 = vpop.f32.mrf.mxu0
    %v3296 = vadd.f32 0.0, %v3295
    %v3297 = vpop.f32.mrf.mxu0
    %3298 = vdwg.mxu0
    %3299 = vrot.lane.b32.xlu0 %v2480, 96
    %v3300 = vpop.permute.xlu0 %3299
    %3301 = vrot.lane.b32.xlu0 %v2482, 96
    %v3302 = vpop.permute.xlu0 %3301
    %v3306 = vsel %vm3131, %v3213, 0
    %3308 = vmatprep.subr.mxu0 0.0
    %3309 = vmatpush1.msra.mxu0 0.0
    %3310 = vmatprep.subr.mxu0 0.0
    %3311 = vmatpush1.msra.mxu0 0.0
    %3312 = vmatprep.subr.mxu0 0.0
    %3313 = vmatpush1.msra.mxu0 0.0
    %3314 = vmatprep.subr.mxu0 0.0
    %3315 = vmatpush1.msra.mxu0 0.0
    %3316 = vmatprep.subr.mxu0 0.0
    %3317 = vmatpush1.msra.mxu0 0.0
    %3318 = vmatprep.subr.mxu0 0.0
    %3319 = vmatpush1.msra.mxu0 0.0
    %3320 = vmatprep.subr.mxu0 0.0
    %3321 = vmatpush1.msra.mxu0 0.0
    %3322 = vmatprep.subr.mxu0 0.0
    %3323 = vmatpush1.msra.mxu0 0.0
    %3324 = vmatprep.subr.mxu0 0.0
    %3325 = vmatpush1.msra.mxu0 0.0
    %3326 = vmatprep.subr.mxu0 0.0
    %3327 = vmatpush1.msra.mxu0 0.0
    %3328 = vmatprep.subr.mxu0 0.0
    %3329 = vmatpush1.msra.mxu0 0.0
    %3330 = vmatprep.subr.mxu0 0.0
    %3331 = vmatpush1.msra.mxu0 0.0
    %3332 = vmatprep.subr.mxu0 0.0
    %3333 = vmatpush1.msra.mxu0 0.0
    %3334 = vmatprep.subr.mxu0 0.0
    %3335 = vmatpush1.msra.mxu0 0.0
    %3336 = vmatprep.subr.mxu0 0.0
    %3337 = vmatpush1.msra.mxu0 %v3302
    %3338 = vmatprep.subr.mxu0 0.0
    %3339 = vmatpush1.msra.mxu0 %v3300
    %3340 = vmatprep.subr.mxu0 0.0
    %3341 = vmatpush2.msra.mxu0 0.0
    %3342 = vmatprep.subr.mxu0 0.0
    %3343 = vmatpush2.msra.mxu0 0.0
    %3344 = vmatprep.subr.mxu0 0.0
    %3345 = vmatpush2.msra.mxu0 0.0
    %3346 = vmatprep.subr.mxu0 0.0
    %3347 = vmatpush2.msra.mxu0 0.0
    %3348 = vmatprep.subr.mxu0 0.0
    %3349 = vmatpush2.msra.mxu0 0.0
    %3350 = vmatprep.subr.mxu0 0.0
    %3351 = vmatpush2.msra.mxu0 0.0
    %3352 = vmatprep.subr.mxu0 0.0
    %3353 = vmatpush2.msra.mxu0 0.0
    %3354 = vmatprep.subr.mxu0 0.0
    %3355 = vmatpush2.msra.mxu0 0.0
    %3356 = vmatprep.subr.mxu0 0.0
    %3357 = vmatpush2.msra.mxu0 0.0
    %3358 = vmatprep.subr.mxu0 0.0
    %3359 = vmatpush2.msra.mxu0 0.0
    %3360 = vmatprep.subr.mxu0 0.0
    %3361 = vmatpush2.msra.mxu0 0.0
    %3362 = vmatprep.subr.mxu0 0.0
    %3363 = vmatpush2.msra.mxu0 0.0
    %3364 = vmatprep.subr.mxu0 0.0
    %3365 = vmatpush2.msra.mxu0 0.0
    %3366 = vmatprep.subr.mxu0 0.0
    %3367 = vmatpush2.msra.mxu0 0.0
    %3368 = vmatprep.subr.mxu0 0.0
    %3369 = vmatpush2.msra.mxu0 0.0
    %3370 = vmatprep.subr.mxu0 0.0
    %3371 = vmatpush2.msra.mxu0 0.0
    %3372 = vmatprep.mubr.f32.mxu0 0.0
    %3373 = vmatmul.mubr.f32.gmra.mxu0 %v3306
    %v3374 = vpop.f32.mrf.mxu0
    %v3375 = vadd.f32 0.0, %v3374
    %v3376 = vpop.f32.mrf.mxu0
    %3377 = vdwg.mxu0
    %3378 = vrot.lane.b32.xlu0 %v2484, 96
    %v3379 = vpop.permute.xlu0 %3378
    %3380 = vrot.lane.b32.xlu0 %v2486, 96
    %v3381 = vpop.permute.xlu0 %3380
    %v3385 = vsel %vm3131, %v3214, 0
    %3387 = vmatprep.subr.mxu0 0.0
    %3388 = vmatpush1.msra.mxu0 0.0
    %3389 = vmatprep.subr.mxu0 0.0
    %3390 = vmatpush1.msra.mxu0 0.0
    %3391 = vmatprep.subr.mxu0 0.0
    %3392 = vmatpush1.msra.mxu0 0.0
    %3393 = vmatprep.subr.mxu0 0.0
    %3394 = vmatpush1.msra.mxu0 0.0
    %3395 = vmatprep.subr.mxu0 0.0
    %3396 = vmatpush1.msra.mxu0 0.0
    %3397 = vmatprep.subr.mxu0 0.0
    %3398 = vmatpush1.msra.mxu0 0.0
    %3399 = vmatprep.subr.mxu0 0.0
    %3400 = vmatpush1.msra.mxu0 0.0
    %3401 = vmatprep.subr.mxu0 0.0
    %3402 = vmatpush1.msra.mxu0 0.0
    %3403 = vmatprep.subr.mxu0 0.0
    %3404 = vmatpush1.msra.mxu0 0.0
    %3405 = vmatprep.subr.mxu0 0.0
    %3406 = vmatpush1.msra.mxu0 0.0
    %3407 = vmatprep.subr.mxu0 0.0
    %3408 = vmatpush1.msra.mxu0 0.0
    %3409 = vmatprep.subr.mxu0 0.0
    %3410 = vmatpush1.msra.mxu0 0.0
    %3411 = vmatprep.subr.mxu0 0.0
    %3412 = vmatpush1.msra.mxu0 0.0
    %3413 = vmatprep.subr.mxu0 0.0
    %3414 = vmatpush1.msra.mxu0 0.0
    %3415 = vmatprep.subr.mxu0 0.0
    %3416 = vmatpush1.msra.mxu0 %v3381
    %3417 = vmatprep.subr.mxu0 0.0
    %3418 = vmatpush1.msra.mxu0 %v3379
    %3419 = vmatprep.subr.mxu0 0.0
    %3420 = vmatpush2.msra.mxu0 0.0
    %3421 = vmatprep.subr.mxu0 0.0
    %3422 = vmatpush2.msra.mxu0 0.0
    %3423 = vmatprep.subr.mxu0 0.0
    %3424 = vmatpush2.msra.mxu0 0.0
    %3425 = vmatprep.subr.mxu0 0.0
    %3426 = vmatpush2.msra.mxu0 0.0
    %3427 = vmatprep.subr.mxu0 0.0
    %3428 = vmatpush2.msra.mxu0 0.0
    %3429 = vmatprep.subr.mxu0 0.0
    %3430 = vmatpush2.msra.mxu0 0.0
    %3431 = vmatprep.subr.mxu0 0.0
    %3432 = vmatpush2.msra.mxu0 0.0
    %3433 = vmatprep.subr.mxu0 0.0
    %3434 = vmatpush2.msra.mxu0 0.0
    %3435 = vmatprep.subr.mxu0 0.0
    %3436 = vmatpush2.msra.mxu0 0.0
    %3437 = vmatprep.subr.mxu0 0.0
    %3438 = vmatpush2.msra.mxu0 0.0
    %3439 = vmatprep.subr.mxu0 0.0
    %3440 = vmatpush2.msra.mxu0 0.0
    %3441 = vmatprep.subr.mxu0 0.0
    %3442 = vmatpush2.msra.mxu0 0.0
    %3443 = vmatprep.subr.mxu0 0.0
    %3444 = vmatpush2.msra.mxu0 0.0
    %3445 = vmatprep.subr.mxu0 0.0
    %3446 = vmatpush2.msra.mxu0 0.0
    %3447 = vmatprep.subr.mxu0 0.0
    %3448 = vmatpush2.msra.mxu0 0.0
    %3449 = vmatprep.subr.mxu0 0.0
    %3450 = vmatpush2.msra.mxu0 0.0
    %3451 = vmatprep.mubr.f32.mxu0 0.0
    %3452 = vmatmul.mubr.f32.gmra.mxu0 %v3385
    %v3453 = vpop.f32.mrf.mxu0
    %v3454 = vadd.f32 0.0, %v3453
    %v3455 = vpop.f32.mrf.mxu0
    %3456 = vdwg.mxu0
    %3457 = vrot.lane.b32.xlu0 %v2488, 96
    %v3458 = vpop.permute.xlu0 %3457
    %3459 = vrot.lane.b32.xlu0 %v2490, 96
    %v3460 = vpop.permute.xlu0 %3459
    %v3464 = vsel %vm3131, %v3215, 0
    %3466 = vmatprep.subr.mxu0 0.0
    %3467 = vmatpush1.msra.mxu0 0.0
    %3468 = vmatprep.subr.mxu0 0.0
    %3469 = vmatpush1.msra.mxu0 0.0
    %3470 = vmatprep.subr.mxu0 0.0
    %3471 = vmatpush1.msra.mxu0 0.0
    %3472 = vmatprep.subr.mxu0 0.0
    %3473 = vmatpush1.msra.mxu0 0.0
    %3474 = vmatprep.subr.mxu0 0.0
    %3475 = vmatpush1.msra.mxu0 0.0
    %3476 = vmatprep.subr.mxu0 0.0
    %3477 = vmatpush1.msra.mxu0 0.0
    %3478 = vmatprep.subr.mxu0 0.0
    %3479 = vmatpush1.msra.mxu0 0.0
    %3480 = vmatprep.subr.mxu0 0.0
    %3481 = vmatpush1.msra.mxu0 0.0
    %3482 = vmatprep.subr.mxu0 0.0
    %3483 = vmatpush1.msra.mxu0 0.0
    %3484 = vmatprep.subr.mxu0 0.0
    %3485 = vmatpush1.msra.mxu0 0.0
    %3486 = vmatprep.subr.mxu0 0.0
    %3487 = vmatpush1.msra.mxu0 0.0
    %3488 = vmatprep.subr.mxu0 0.0
    %3489 = vmatpush1.msra.mxu0 0.0
    %3490 = vmatprep.subr.mxu0 0.0
    %3491 = vmatpush1.msra.mxu0 0.0
    %3492 = vmatprep.subr.mxu0 0.0
    %3493 = vmatpush1.msra.mxu0 0.0
    %3494 = vmatprep.subr.mxu0 0.0
    %3495 = vmatpush1.msra.mxu0 %v3460
    %3496 = vmatprep.subr.mxu0 0.0
    %3497 = vmatpush1.msra.mxu0 %v3458
    %3498 = vmatprep.subr.mxu0 0.0
    %3499 = vmatpush2.msra.mxu0 0.0
    %3500 = vmatprep.subr.mxu0 0.0
    %3501 = vmatpush2.msra.mxu0 0.0
    %3502 = vmatprep.subr.mxu0 0.0
    %3503 = vmatpush2.msra.mxu0 0.0
    %3504 = vmatprep.subr.mxu0 0.0
    %3505 = vmatpush2.msra.mxu0 0.0
    %3506 = vmatprep.subr.mxu0 0.0
    %3507 = vmatpush2.msra.mxu0 0.0
    %3508 = vmatprep.subr.mxu0 0.0
    %3509 = vmatpush2.msra.mxu0 0.0
    %3510 = vmatprep.subr.mxu0 0.0
    %3511 = vmatpush2.msra.mxu0 0.0
    %3512 = vmatprep.subr.mxu0 0.0
    %3513 = vmatpush2.msra.mxu0 0.0
    %3514 = vmatprep.subr.mxu0 0.0
    %3515 = vmatpush2.msra.mxu0 0.0
    %3516 = vmatprep.subr.mxu0 0.0
    %3517 = vmatpush2.msra.mxu0 0.0
    %3518 = vmatprep.subr.mxu0 0.0
    %3519 = vmatpush2.msra.mxu0 0.0
    %3520 = vmatprep.subr.mxu0 0.0
    %3521 = vmatpush2.msra.mxu0 0.0
    %3522 = vmatprep.subr.mxu0 0.0
    %3523 = vmatpush2.msra.mxu0 0.0
    %3524 = vmatprep.subr.mxu0 0.0
    %3525 = vmatpush2.msra.mxu0 0.0
    %3526 = vmatprep.subr.mxu0 0.0
    %3527 = vmatpush2.msra.mxu0 0.0
    %3528 = vmatprep.subr.mxu0 0.0
    %3529 = vmatpush2.msra.mxu0 0.0
    %3530 = vmatprep.mubr.f32.mxu0 0.0
    %3531 = vmatmul.mubr.f32.gmra.mxu0 %v3464
    %v3532 = vpop.f32.mrf.mxu0
    %v3533 = vadd.f32 0.0, %v3532
    %v3534 = vpop.f32.mrf.mxu0
    %3535 = vdwg.mxu0
    %3536 = vrot.lane.b32.xlu0 %v2447, 96
    %v3537 = vpop.permute.xlu0 %3536
    %3538 = vrot.lane.b32.xlu0 %v2452, 96
    %v3539 = vpop.permute.xlu0 %3538
    %v3543 = vsel %vm3131, %v3216, 0
    %3545 = vmatprep.subr.mxu0 0.0
    %3546 = vmatpush1.msra.mxu0 0.0
    %3547 = vmatprep.subr.mxu0 0.0
    %3548 = vmatpush1.msra.mxu0 0.0
    %3549 = vmatprep.subr.mxu0 0.0
    %3550 = vmatpush1.msra.mxu0 0.0
    %3551 = vmatprep.subr.mxu0 0.0
    %3552 = vmatpush1.msra.mxu0 0.0
    %3553 = vmatprep.subr.mxu0 0.0
    %3554 = vmatpush1.msra.mxu0 0.0
    %3555 = vmatprep.subr.mxu0 0.0
    %3556 = vmatpush1.msra.mxu0 0.0
    %3557 = vmatprep.subr.mxu0 0.0
    %3558 = vmatpush1.msra.mxu0 0.0
    %3559 = vmatprep.subr.mxu0 0.0
    %3560 = vmatpush1.msra.mxu0 0.0
    %3561 = vmatprep.subr.mxu0 0.0
    %3562 = vmatpush1.msra.mxu0 0.0
    %3563 = vmatprep.subr.mxu0 0.0
    %3564 = vmatpush1.msra.mxu0 0.0
    %3565 = vmatprep.subr.mxu0 0.0
    %3566 = vmatpush1.msra.mxu0 0.0
    %3567 = vmatprep.subr.mxu0 0.0
    %3568 = vmatpush1.msra.mxu0 0.0
    %3569 = vmatprep.subr.mxu0 0.0
    %3570 = vmatpush1.msra.mxu0 0.0
    %3571 = vmatprep.subr.mxu0 0.0
    %3572 = vmatpush1.msra.mxu0 0.0
    %3573 = vmatprep.subr.mxu0 0.0
    %3574 = vmatpush1.msra.mxu0 %v3539
    %3575 = vmatprep.subr.mxu0 0.0
    %3576 = vmatpush1.msra.mxu0 %v3537
    %3577 = vmatprep.subr.mxu0 0.0
    %3578 = vmatpush2.msra.mxu0 0.0
    %3579 = vmatprep.subr.mxu0 0.0
    %3580 = vmatpush2.msra.mxu0 0.0
    %3581 = vmatprep.subr.mxu0 0.0
    %3582 = vmatpush2.msra.mxu0 0.0
    %3583 = vmatprep.subr.mxu0 0.0
    %3584 = vmatpush2.msra.mxu0 0.0
    %3585 = vmatprep.subr.mxu0 0.0
    %3586 = vmatpush2.msra.mxu0 0.0
    %3587 = vmatprep.subr.mxu0 0.0
    %3588 = vmatpush2.msra.mxu0 0.0
    %3589 = vmatprep.subr.mxu0 0.0
    %3590 = vmatpush2.msra.mxu0 0.0
    %3591 = vmatprep.subr.mxu0 0.0
    %3592 = vmatpush2.msra.mxu0 0.0
    %3593 = vmatprep.subr.mxu0 0.0
    %3594 = vmatpush2.msra.mxu0 0.0
    %3595 = vmatprep.subr.mxu0 0.0
    %3596 = vmatpush2.msra.mxu0 0.0
    %3597 = vmatprep.subr.mxu0 0.0
    %3598 = vmatpush2.msra.mxu0 0.0
    %3599 = vmatprep.subr.mxu0 0.0
    %3600 = vmatpush2.msra.mxu0 0.0
    %3601 = vmatprep.subr.mxu0 0.0
    %3602 = vmatpush2.msra.mxu0 0.0
    %3603 = vmatprep.subr.mxu0 0.0
    %3604 = vmatpush2.msra.mxu0 0.0
    %3605 = vmatprep.subr.mxu0 0.0
    %3606 = vmatpush2.msra.mxu0 0.0
    %3607 = vmatprep.subr.mxu0 0.0
    %3608 = vmatpush2.msra.mxu0 0.0
    %3609 = vmatprep.mubr.f32.mxu0 0.0
    %3610 = vmatmul.mubr.f32.gmra.mxu0 %v3543
    %v3611 = vpop.f32.mrf.mxu0
    %v3612 = vadd.f32 0.0, %v3611
    %v3613 = vpop.f32.mrf.mxu0
    %3614 = vdwg.mxu0
    %3615 = vrot.lane.b32.xlu0 %v2494, 96
    %v3616 = vpop.permute.xlu0 %3615
    %3617 = vrot.lane.b32.xlu0 %v2496, 96
    %v3618 = vpop.permute.xlu0 %3617
    %v3622 = vsel %vm3131, %v3217, 0
    %3624 = vmatprep.subr.mxu0 0.0
    %3625 = vmatpush1.msra.mxu0 0.0
    %3626 = vmatprep.subr.mxu0 0.0
    %3627 = vmatpush1.msra.mxu0 0.0
    %3628 = vmatprep.subr.mxu0 0.0
    %3629 = vmatpush1.msra.mxu0 0.0
    %3630 = vmatprep.subr.mxu0 0.0
    %3631 = vmatpush1.msra.mxu0 0.0
    %3632 = vmatprep.subr.mxu0 0.0
    %3633 = vmatpush1.msra.mxu0 0.0
    %3634 = vmatprep.subr.mxu0 0.0
    %3635 = vmatpush1.msra.mxu0 0.0
    %3636 = vmatprep.subr.mxu0 0.0
    %3637 = vmatpush1.msra.mxu0 0.0
    %3638 = vmatprep.subr.mxu0 0.0
    %3639 = vmatpush1.msra.mxu0 0.0
    %3640 = vmatprep.subr.mxu0 0.0
    %3641 = vmatpush1.msra.mxu0 0.0
    %3642 = vmatprep.subr.mxu0 0.0
    %3643 = vmatpush1.msra.mxu0 0.0
    %3644 = vmatprep.subr.mxu0 0.0
    %3645 = vmatpush1.msra.mxu0 0.0
    %3646 = vmatprep.subr.mxu0 0.0
    %3647 = vmatpush1.msra.mxu0 0.0
    %3648 = vmatprep.subr.mxu0 0.0
    %3649 = vmatpush1.msra.mxu0 0.0
    %3650 = vmatprep.subr.mxu0 0.0
    %3651 = vmatpush1.msra.mxu0 0.0
    %3652 = vmatprep.subr.mxu0 0.0
    %3653 = vmatpush1.msra.mxu0 %v3618
    %3654 = vmatprep.subr.mxu0 0.0
    %3655 = vmatpush1.msra.mxu0 %v3616
    %3656 = vmatprep.subr.mxu0 0.0
    %3657 = vmatpush2.msra.mxu0 0.0
    %3658 = vmatprep.subr.mxu0 0.0
    %3659 = vmatpush2.msra.mxu0 0.0
    %3660 = vmatprep.subr.mxu0 0.0
    %3661 = vmatpush2.msra.mxu0 0.0
    %3662 = vmatprep.subr.mxu0 0.0
    %3663 = vmatpush2.msra.mxu0 0.0
    %3664 = vmatprep.subr.mxu0 0.0
    %3665 = vmatpush2.msra.mxu0 0.0
    %3666 = vmatprep.subr.mxu0 0.0
    %3667 = vmatpush2.msra.mxu0 0.0
    %3668 = vmatprep.subr.mxu0 0.0
    %3669 = vmatpush2.msra.mxu0 0.0
    %3670 = vmatprep.subr.mxu0 0.0
    %3671 = vmatpush2.msra.mxu0 0.0
    %3672 = vmatprep.subr.mxu0 0.0
    %3673 = vmatpush2.msra.mxu0 0.0
    %3674 = vmatprep.subr.mxu0 0.0
    %3675 = vmatpush2.msra.mxu0 0.0
    %3676 = vmatprep.subr.mxu0 0.0
    %3677 = vmatpush2.msra.mxu0 0.0
    %3678 = vmatprep.subr.mxu0 0.0
    %3679 = vmatpush2.msra.mxu0 0.0
    %3680 = vmatprep.subr.mxu0 0.0
    %3681 = vmatpush2.msra.mxu0 0.0
    %3682 = vmatprep.subr.mxu0 0.0
    %3683 = vmatpush2.msra.mxu0 0.0
    %3684 = vmatprep.subr.mxu0 0.0
    %3685 = vmatpush2.msra.mxu0 0.0
    %3686 = vmatprep.subr.mxu0 0.0
    %3687 = vmatpush2.msra.mxu0 0.0
    %3688 = vmatprep.mubr.f32.mxu0 0.0
    %3689 = vmatmul.mubr.f32.gmra.mxu0 %v3622
    %v3690 = vpop.f32.mrf.mxu0
    %v3691 = vadd.f32 0.0, %v3690
    %v3692 = vpop.f32.mrf.mxu0
    %3693 = vdwg.mxu0
    %3694 = vrot.lane.b32.xlu0 %v2498, 96
    %v3695 = vpop.permute.xlu0 %3694
    %3696 = vrot.lane.b32.xlu0 %v2500, 96
    %v3697 = vpop.permute.xlu0 %3696
    %v3701 = vsel %vm3131, %v3218, 0
    %3703 = vmatprep.subr.mxu0 0.0
    %3704 = vmatpush1.msra.mxu0 0.0
    %3705 = vmatprep.subr.mxu0 0.0
    %3706 = vmatpush1.msra.mxu0 0.0
    %3707 = vmatprep.subr.mxu0 0.0
    %3708 = vmatpush1.msra.mxu0 0.0
    %3709 = vmatprep.subr.mxu0 0.0
    %3710 = vmatpush1.msra.mxu0 0.0
    %3711 = vmatprep.subr.mxu0 0.0
    %3712 = vmatpush1.msra.mxu0 0.0
    %3713 = vmatprep.subr.mxu0 0.0
    %3714 = vmatpush1.msra.mxu0 0.0
    %3715 = vmatprep.subr.mxu0 0.0
    %3716 = vmatpush1.msra.mxu0 0.0
    %3717 = vmatprep.subr.mxu0 0.0
    %3718 = vmatpush1.msra.mxu0 0.0
    %3719 = vmatprep.subr.mxu0 0.0
    %3720 = vmatpush1.msra.mxu0 0.0
    %3721 = vmatprep.subr.mxu0 0.0
    %3722 = vmatpush1.msra.mxu0 0.0
    %3723 = vmatprep.subr.mxu0 0.0
    %3724 = vmatpush1.msra.mxu0 0.0
    %3725 = vmatprep.subr.mxu0 0.0
    %3726 = vmatpush1.msra.mxu0 0.0
    %3727 = vmatprep.subr.mxu0 0.0
    %3728 = vmatpush1.msra.mxu0 0.0
    %3729 = vmatprep.subr.mxu0 0.0
    %3730 = vmatpush1.msra.mxu0 0.0
    %3731 = vmatprep.subr.mxu0 0.0
    %3732 = vmatpush1.msra.mxu0 %v3697
    %3733 = vmatprep.subr.mxu0 0.0
    %3734 = vmatpush1.msra.mxu0 %v3695
    %3735 = vmatprep.subr.mxu0 0.0
    %3736 = vmatpush2.msra.mxu0 0.0
    %3737 = vmatprep.subr.mxu0 0.0
    %3738 = vmatpush2.msra.mxu0 0.0
    %3739 = vmatprep.subr.mxu0 0.0
    %3740 = vmatpush2.msra.mxu0 0.0
    %3741 = vmatprep.subr.mxu0 0.0
    %3742 = vmatpush2.msra.mxu0 0.0
    %3743 = vmatprep.subr.mxu0 0.0
    %3744 = vmatpush2.msra.mxu0 0.0
    %3745 = vmatprep.subr.mxu0 0.0
    %3746 = vmatpush2.msra.mxu0 0.0
    %3747 = vmatprep.subr.mxu0 0.0
    %3748 = vmatpush2.msra.mxu0 0.0
    %3749 = vmatprep.subr.mxu0 0.0
    %3750 = vmatpush2.msra.mxu0 0.0
    %3751 = vmatprep.subr.mxu0 0.0
    %3752 = vmatpush2.msra.mxu0 0.0
    %3753 = vmatprep.subr.mxu0 0.0
    %3754 = vmatpush2.msra.mxu0 0.0
    %3755 = vmatprep.subr.mxu0 0.0
    %3756 = vmatpush2.msra.mxu0 0.0
    %3757 = vmatprep.subr.mxu0 0.0
    %3758 = vmatpush2.msra.mxu0 0.0
    %3759 = vmatprep.subr.mxu0 0.0
    %3760 = vmatpush2.msra.mxu0 0.0
    %3761 = vmatprep.subr.mxu0 0.0
    %3762 = vmatpush2.msra.mxu0 0.0
    %3763 = vmatprep.subr.mxu0 0.0
    %3764 = vmatpush2.msra.mxu0 0.0
    %3765 = vmatprep.subr.mxu0 0.0
    %3766 = vmatpush2.msra.mxu0 0.0
    %3767 = vmatprep.mubr.f32.mxu0 0.0
    %3768 = vmatmul.mubr.f32.gmra.mxu0 %v3701
    %v3769 = vpop.f32.mrf.mxu0
    %v3770 = vadd.f32 0.0, %v3769
    %v3771 = vpop.f32.mrf.mxu0
    %3772 = vdwg.mxu0
    %3773 = vrot.lane.b32.xlu0 %v2502, 96
    %v3774 = vpop.permute.xlu0 %3773
    %3775 = vrot.lane.b32.xlu0 %v2504, 96
    %v3776 = vpop.permute.xlu0 %3775
    %v3780 = vsel %vm3131, %v3219, 0
    %3782 = vmatprep.subr.mxu0 0.0
    %3783 = vmatpush1.msra.mxu0 0.0
    %3784 = vmatprep.subr.mxu0 0.0
    %3785 = vmatpush1.msra.mxu0 0.0
    %3786 = vmatprep.subr.mxu0 0.0
    %3787 = vmatpush1.msra.mxu0 0.0
    %3788 = vmatprep.subr.mxu0 0.0
    %3789 = vmatpush1.msra.mxu0 0.0
    %3790 = vmatprep.subr.mxu0 0.0
    %3791 = vmatpush1.msra.mxu0 0.0
    %3792 = vmatprep.subr.mxu0 0.0
    %3793 = vmatpush1.msra.mxu0 0.0
    %3794 = vmatprep.subr.mxu0 0.0
    %3795 = vmatpush1.msra.mxu0 0.0
    %3796 = vmatprep.subr.mxu0 0.0
    %3797 = vmatpush1.msra.mxu0 0.0
    %3798 = vmatprep.subr.mxu0 0.0
    %3799 = vmatpush1.msra.mxu0 0.0
    %3800 = vmatprep.subr.mxu0 0.0
    %3801 = vmatpush1.msra.mxu0 0.0
    %3802 = vmatprep.subr.mxu0 0.0
    %3803 = vmatpush1.msra.mxu0 0.0
    %3804 = vmatprep.subr.mxu0 0.0
    %3805 = vmatpush1.msra.mxu0 0.0
    %3806 = vmatprep.subr.mxu0 0.0
    %3807 = vmatpush1.msra.mxu0 0.0
    %3808 = vmatprep.subr.mxu0 0.0
    %3809 = vmatpush1.msra.mxu0 0.0
    %3810 = vmatprep.subr.mxu0 0.0
    %3811 = vmatpush1.msra.mxu0 %v3776
    %3812 = vmatprep.subr.mxu0 0.0
    %3813 = vmatpush1.msra.mxu0 %v3774
    %3814 = vmatprep.subr.mxu0 0.0
    %3815 = vmatpush2.msra.mxu0 0.0
    %3816 = vmatprep.subr.mxu0 0.0
    %3817 = vmatpush2.msra.mxu0 0.0
    %3818 = vmatprep.subr.mxu0 0.0
    %3819 = vmatpush2.msra.mxu0 0.0
    %3820 = vmatprep.subr.mxu0 0.0
    %3821 = vmatpush2.msra.mxu0 0.0
    %3822 = vmatprep.subr.mxu0 0.0
    %3823 = vmatpush2.msra.mxu0 0.0
    %3824 = vmatprep.subr.mxu0 0.0
    %3825 = vmatpush2.msra.mxu0 0.0
    %3826 = vmatprep.subr.mxu0 0.0
    %3827 = vmatpush2.msra.mxu0 0.0
    %3828 = vmatprep.subr.mxu0 0.0
    %3829 = vmatpush2.msra.mxu0 0.0
    %3830 = vmatprep.subr.mxu0 0.0
    %3831 = vmatpush2.msra.mxu0 0.0
    %3832 = vmatprep.subr.mxu0 0.0
    %3833 = vmatpush2.msra.mxu0 0.0
    %3834 = vmatprep.subr.mxu0 0.0
    %3835 = vmatpush2.msra.mxu0 0.0
    %3836 = vmatprep.subr.mxu0 0.0
    %3837 = vmatpush2.msra.mxu0 0.0
    %3838 = vmatprep.subr.mxu0 0.0
    %3839 = vmatpush2.msra.mxu0 0.0
    %3840 = vmatprep.subr.mxu0 0.0
    %3841 = vmatpush2.msra.mxu0 0.0
    %3842 = vmatprep.subr.mxu0 0.0
    %3843 = vmatpush2.msra.mxu0 0.0
    %3844 = vmatprep.subr.mxu0 0.0
    %3845 = vmatpush2.msra.mxu0 0.0
    %3846 = vmatprep.mubr.f32.mxu0 0.0
    %3847 = vmatmul.mubr.f32.gmra.mxu0 %v3780
    %v3848 = vpop.f32.mrf.mxu0
    %v3849 = vadd.f32 0.0, %v3848
    %v3850 = vpop.f32.mrf.mxu0
    %3851 = vdwg.mxu0
    %v3853 = vsel %vm283, %v3296, 0
    %3855 = vmatprep.subr.mxu0 0.0
    %3856 = vmatpush1.msra.mxu0 0.0
    %3857 = vmatprep.subr.mxu0 0.0
    %3858 = vmatpush1.msra.mxu0 0.0
    %3859 = vmatprep.subr.mxu0 0.0
    %3860 = vmatpush1.msra.mxu0 0.0
    %3861 = vmatprep.subr.mxu0 0.0
    %3862 = vmatpush1.msra.mxu0 0.0
    %3863 = vmatprep.subr.mxu0 0.0
    %3864 = vmatpush1.msra.mxu0 0.0
    %3865 = vmatprep.subr.mxu0 0.0
    %3866 = vmatpush1.msra.mxu0 0.0
    %3867 = vmatprep.subr.mxu0 0.0
    %3868 = vmatpush1.msra.mxu0 0.0
    %3869 = vmatprep.subr.mxu0 0.0
    %3870 = vmatpush1.msra.mxu0 0.0
    %3871 = vmatprep.subr.mxu0 0.0
    %3872 = vmatpush1.msra.mxu0 0.0
    %3873 = vmatprep.subr.mxu0 0.0
    %3874 = vmatpush1.msra.mxu0 0.0
    %3875 = vmatprep.subr.mxu0 0.0
    %3876 = vmatpush1.msra.mxu0 0.0
    %3877 = vmatprep.subr.mxu0 0.0
    %3878 = vmatpush1.msra.mxu0 0.0
    %3879 = vmatprep.subr.mxu0 0.0
    %3880 = vmatpush1.msra.mxu0 0.0
    %3881 = vmatprep.subr.mxu0 0.0
    %3882 = vmatpush1.msra.mxu0 0.0
    %3883 = vmatprep.subr.mxu0 0.0
    %3884 = vmatpush1.msra.mxu0 0.0
    %3885 = vmatprep.subr.mxu0 0.0
    %3886 = vmatpush1.msra.mxu0 %v2455
    %3887 = vmatprep.subr.mxu0 0.0
    %3888 = vmatpush2.msra.mxu0 0.0
    %3889 = vmatprep.subr.mxu0 0.0
    %3890 = vmatpush2.msra.mxu0 0.0
    %3891 = vmatprep.subr.mxu0 0.0
    %3892 = vmatpush2.msra.mxu0 0.0
    %3893 = vmatprep.subr.mxu0 0.0
    %3894 = vmatpush2.msra.mxu0 0.0
    %3895 = vmatprep.subr.mxu0 0.0
    %3896 = vmatpush2.msra.mxu0 0.0
    %3897 = vmatprep.subr.mxu0 0.0
    %3898 = vmatpush2.msra.mxu0 0.0
    %3899 = vmatprep.subr.mxu0 0.0
    %3900 = vmatpush2.msra.mxu0 0.0
    %3901 = vmatprep.subr.mxu0 0.0
    %3902 = vmatpush2.msra.mxu0 0.0
    %3903 = vmatprep.subr.mxu0 0.0
    %3904 = vmatpush2.msra.mxu0 0.0
    %3905 = vmatprep.subr.mxu0 0.0
    %3906 = vmatpush2.msra.mxu0 0.0
    %3907 = vmatprep.subr.mxu0 0.0
    %3908 = vmatpush2.msra.mxu0 0.0
    %3909 = vmatprep.subr.mxu0 0.0
    %3910 = vmatpush2.msra.mxu0 0.0
    %3911 = vmatprep.subr.mxu0 0.0
    %3912 = vmatpush2.msra.mxu0 0.0
    %3913 = vmatprep.subr.mxu0 0.0
    %3914 = vmatpush2.msra.mxu0 0.0
    %3915 = vmatprep.subr.mxu0 0.0
    %3916 = vmatpush2.msra.mxu0 0.0
    %3917 = vmatprep.subr.mxu0 0.0
    %3918 = vmatpush2.msra.mxu0 0.0
    %3919 = vmatprep.mubr.f32.mxu0 0.0
    %3920 = vmatmul.mubr.f32.gmra.mxu0 %v3853
    %v3921 = vpop.f32.mrf.mxu0
    %v3922 = vadd.f32 0.0, %v3921
    %v3923 = vpop.f32.mrf.mxu0
    %3924 = vdwg.mxu0
    %v3926 = vsel %vm283, %v3375, 0
    %3928 = vmatprep.subr.mxu0 0.0
    %3929 = vmatpush1.msra.mxu0 0.0
    %3930 = vmatprep.subr.mxu0 0.0
    %3931 = vmatpush1.msra.mxu0 0.0
    %3932 = vmatprep.subr.mxu0 0.0
    %3933 = vmatpush1.msra.mxu0 0.0
    %3934 = vmatprep.subr.mxu0 0.0
    %3935 = vmatpush1.msra.mxu0 0.0
    %3936 = vmatprep.subr.mxu0 0.0
    %3937 = vmatpush1.msra.mxu0 0.0
    %3938 = vmatprep.subr.mxu0 0.0
    %3939 = vmatpush1.msra.mxu0 0.0
    %3940 = vmatprep.subr.mxu0 0.0
    %3941 = vmatpush1.msra.mxu0 0.0
    %3942 = vmatprep.subr.mxu0 0.0
    %3943 = vmatpush1.msra.mxu0 0.0
    %3944 = vmatprep.subr.mxu0 0.0
    %3945 = vmatpush1.msra.mxu0 0.0
    %3946 = vmatprep.subr.mxu0 0.0
    %3947 = vmatpush1.msra.mxu0 0.0
    %3948 = vmatprep.subr.mxu0 0.0
    %3949 = vmatpush1.msra.mxu0 0.0
    %3950 = vmatprep.subr.mxu0 0.0
    %3951 = vmatpush1.msra.mxu0 0.0
    %3952 = vmatprep.subr.mxu0 0.0
    %3953 = vmatpush1.msra.mxu0 0.0
    %3954 = vmatprep.subr.mxu0 0.0
    %3955 = vmatpush1.msra.mxu0 0.0
    %3956 = vmatprep.subr.mxu0 0.0
    %3957 = vmatpush1.msra.mxu0 0.0
    %3958 = vmatprep.subr.mxu0 0.0
    %3959 = vmatpush1.msra.mxu0 %v2456
    %3960 = vmatprep.subr.mxu0 0.0
    %3961 = vmatpush2.msra.mxu0 0.0
    %3962 = vmatprep.subr.mxu0 0.0
    %3963 = vmatpush2.msra.mxu0 0.0
    %3964 = vmatprep.subr.mxu0 0.0
    %3965 = vmatpush2.msra.mxu0 0.0
    %3966 = vmatprep.subr.mxu0 0.0
    %3967 = vmatpush2.msra.mxu0 0.0
    %3968 = vmatprep.subr.mxu0 0.0
    %3969 = vmatpush2.msra.mxu0 0.0
    %3970 = vmatprep.subr.mxu0 0.0
    %3971 = vmatpush2.msra.mxu0 0.0
    %3972 = vmatprep.subr.mxu0 0.0
    %3973 = vmatpush2.msra.mxu0 0.0
    %3974 = vmatprep.subr.mxu0 0.0
    %3975 = vmatpush2.msra.mxu0 0.0
    %3976 = vmatprep.subr.mxu0 0.0
    %3977 = vmatpush2.msra.mxu0 0.0
    %3978 = vmatprep.subr.mxu0 0.0
    %3979 = vmatpush2.msra.mxu0 0.0
    %3980 = vmatprep.subr.mxu0 0.0
    %3981 = vmatpush2.msra.mxu0 0.0
    %3982 = vmatprep.subr.mxu0 0.0
    %3983 = vmatpush2.msra.mxu0 0.0
    %3984 = vmatprep.subr.mxu0 0.0
    %3985 = vmatpush2.msra.mxu0 0.0
    %3986 = vmatprep.subr.mxu0 0.0
    %3987 = vmatpush2.msra.mxu0 0.0
    %3988 = vmatprep.subr.mxu0 0.0
    %3989 = vmatpush2.msra.mxu0 0.0
    %3990 = vmatprep.subr.mxu0 0.0
    %3991 = vmatpush2.msra.mxu0 0.0
    %3992 = vmatprep.mubr.f32.mxu0 0.0
    %3993 = vmatmul.mubr.f32.gmra.mxu0 %v3926
    %v3994 = vpop.f32.mrf.mxu0
    %v3995 = vadd.f32 0.0, %v3994
    %v3996 = vpop.f32.mrf.mxu0
    %3997 = vdwg.mxu0
    %v3999 = vsel %vm283, %v3454, 0
    %4001 = vmatprep.subr.mxu0 0.0
    %4002 = vmatpush1.msra.mxu0 0.0
    %4003 = vmatprep.subr.mxu0 0.0
    %4004 = vmatpush1.msra.mxu0 0.0
    %4005 = vmatprep.subr.mxu0 0.0
    %4006 = vmatpush1.msra.mxu0 0.0
    %4007 = vmatprep.subr.mxu0 0.0
    %4008 = vmatpush1.msra.mxu0 0.0
    %4009 = vmatprep.subr.mxu0 0.0
    %4010 = vmatpush1.msra.mxu0 0.0
    %4011 = vmatprep.subr.mxu0 0.0
    %4012 = vmatpush1.msra.mxu0 0.0
    %4013 = vmatprep.subr.mxu0 0.0
    %4014 = vmatpush1.msra.mxu0 0.0
    %4015 = vmatprep.subr.mxu0 0.0
    %4016 = vmatpush1.msra.mxu0 0.0
    %4017 = vmatprep.subr.mxu0 0.0
    %4018 = vmatpush1.msra.mxu0 0.0
    %4019 = vmatprep.subr.mxu0 0.0
    %4020 = vmatpush1.msra.mxu0 0.0
    %4021 = vmatprep.subr.mxu0 0.0
    %4022 = vmatpush1.msra.mxu0 0.0
    %4023 = vmatprep.subr.mxu0 0.0
    %4024 = vmatpush1.msra.mxu0 0.0
    %4025 = vmatprep.subr.mxu0 0.0
    %4026 = vmatpush1.msra.mxu0 0.0
    %4027 = vmatprep.subr.mxu0 0.0
    %4028 = vmatpush1.msra.mxu0 0.0
    %4029 = vmatprep.subr.mxu0 0.0
    %4030 = vmatpush1.msra.mxu0 0.0
    %4031 = vmatprep.subr.mxu0 0.0
    %4032 = vmatpush1.msra.mxu0 %v2457
    %4033 = vmatprep.subr.mxu0 0.0
    %4034 = vmatpush2.msra.mxu0 0.0
    %4035 = vmatprep.subr.mxu0 0.0
    %4036 = vmatpush2.msra.mxu0 0.0
    %4037 = vmatprep.subr.mxu0 0.0
    %4038 = vmatpush2.msra.mxu0 0.0
    %4039 = vmatprep.subr.mxu0 0.0
    %4040 = vmatpush2.msra.mxu0 0.0
    %4041 = vmatprep.subr.mxu0 0.0
    %4042 = vmatpush2.msra.mxu0 0.0
    %4043 = vmatprep.subr.mxu0 0.0
    %4044 = vmatpush2.msra.mxu0 0.0
    %4045 = vmatprep.subr.mxu0 0.0
    %4046 = vmatpush2.msra.mxu0 0.0
    %4047 = vmatprep.subr.mxu0 0.0
    %4048 = vmatpush2.msra.mxu0 0.0
    %4049 = vmatprep.subr.mxu0 0.0
    %4050 = vmatpush2.msra.mxu0 0.0
    %4051 = vmatprep.subr.mxu0 0.0
    %4052 = vmatpush2.msra.mxu0 0.0
    %4053 = vmatprep.subr.mxu0 0.0
    %4054 = vmatpush2.msra.mxu0 0.0
    %4055 = vmatprep.subr.mxu0 0.0
    %4056 = vmatpush2.msra.mxu0 0.0
    %4057 = vmatprep.subr.mxu0 0.0
    %4058 = vmatpush2.msra.mxu0 0.0
    %4059 = vmatprep.subr.mxu0 0.0
    %4060 = vmatpush2.msra.mxu0 0.0
    %4061 = vmatprep.subr.mxu0 0.0
    %4062 = vmatpush2.msra.mxu0 0.0
    %4063 = vmatprep.subr.mxu0 0.0
    %4064 = vmatpush2.msra.mxu0 0.0
    %4065 = vmatprep.mubr.f32.mxu0 0.0
    %4066 = vmatmul.mubr.f32.gmra.mxu0 %v3999
    %v4067 = vpop.f32.mrf.mxu0
    %v4068 = vadd.f32 0.0, %v4067
    %v4069 = vpop.f32.mrf.mxu0
    %4070 = vdwg.mxu0
    %v4072 = vsel %vm283, %v3533, 0
    %4074 = vmatprep.subr.mxu0 0.0
    %4075 = vmatpush1.msra.mxu0 0.0
    %4076 = vmatprep.subr.mxu0 0.0
    %4077 = vmatpush1.msra.mxu0 0.0
    %4078 = vmatprep.subr.mxu0 0.0
    %4079 = vmatpush1.msra.mxu0 0.0
    %4080 = vmatprep.subr.mxu0 0.0
    %4081 = vmatpush1.msra.mxu0 0.0
    %4082 = vmatprep.subr.mxu0 0.0
    %4083 = vmatpush1.msra.mxu0 0.0
    %4084 = vmatprep.subr.mxu0 0.0
    %4085 = vmatpush1.msra.mxu0 0.0
    %4086 = vmatprep.subr.mxu0 0.0
    %4087 = vmatpush1.msra.mxu0 0.0
    %4088 = vmatprep.subr.mxu0 0.0
    %4089 = vmatpush1.msra.mxu0 0.0
    %4090 = vmatprep.subr.mxu0 0.0
    %4091 = vmatpush1.msra.mxu0 0.0
    %4092 = vmatprep.subr.mxu0 0.0
    %4093 = vmatpush1.msra.mxu0 0.0
    %4094 = vmatprep.subr.mxu0 0.0
    %4095 = vmatpush1.msra.mxu0 0.0
    %4096 = vmatprep.subr.mxu0 0.0
    %4097 = vmatpush1.msra.mxu0 0.0
    %4098 = vmatprep.subr.mxu0 0.0
    %4099 = vmatpush1.msra.mxu0 0.0
    %4100 = vmatprep.subr.mxu0 0.0
    %4101 = vmatpush1.msra.mxu0 0.0
    %4102 = vmatprep.subr.mxu0 0.0
    %4103 = vmatpush1.msra.mxu0 0.0
    %4104 = vmatprep.subr.mxu0 0.0
    %4105 = vmatpush1.msra.mxu0 %v2458
    %4106 = vmatprep.subr.mxu0 0.0
    %4107 = vmatpush2.msra.mxu0 0.0
    %4108 = vmatprep.subr.mxu0 0.0
    %4109 = vmatpush2.msra.mxu0 0.0
    %4110 = vmatprep.subr.mxu0 0.0
    %4111 = vmatpush2.msra.mxu0 0.0
    %4112 = vmatprep.subr.mxu0 0.0
    %4113 = vmatpush2.msra.mxu0 0.0
    %4114 = vmatprep.subr.mxu0 0.0
    %4115 = vmatpush2.msra.mxu0 0.0
    %4116 = vmatprep.subr.mxu0 0.0
    %4117 = vmatpush2.msra.mxu0 0.0
    %4118 = vmatprep.subr.mxu0 0.0
    %4119 = vmatpush2.msra.mxu0 0.0
    %4120 = vmatprep.subr.mxu0 0.0
    %4121 = vmatpush2.msra.mxu0 0.0
    %4122 = vmatprep.subr.mxu0 0.0
    %4123 = vmatpush2.msra.mxu0 0.0
    %4124 = vmatprep.subr.mxu0 0.0
    %4125 = vmatpush2.msra.mxu0 0.0
    %4126 = vmatprep.subr.mxu0 0.0
    %4127 = vmatpush2.msra.mxu0 0.0
    %4128 = vmatprep.subr.mxu0 0.0
    %4129 = vmatpush2.msra.mxu0 0.0
    %4130 = vmatprep.subr.mxu0 0.0
    %4131 = vmatpush2.msra.mxu0 0.0
    %4132 = vmatprep.subr.mxu0 0.0
    %4133 = vmatpush2.msra.mxu0 0.0
    %4134 = vmatprep.subr.mxu0 0.0
    %4135 = vmatpush2.msra.mxu0 0.0
    %4136 = vmatprep.subr.mxu0 0.0
    %4137 = vmatpush2.msra.mxu0 0.0
    %4138 = vmatprep.mubr.f32.mxu0 0.0
    %4139 = vmatmul.mubr.f32.gmra.mxu0 %v4072
    %v4140 = vpop.f32.mrf.mxu0
    %v4141 = vadd.f32 0.0, %v4140
    %v4142 = vpop.f32.mrf.mxu0
    %4143 = vdwg.mxu0
    %v4145 = vsel %vm283, %v3612, 0
    %4147 = vmatprep.subr.mxu0 0.0
    %4148 = vmatpush1.msra.mxu0 0.0
    %4149 = vmatprep.subr.mxu0 0.0
    %4150 = vmatpush1.msra.mxu0 0.0
    %4151 = vmatprep.subr.mxu0 0.0
    %4152 = vmatpush1.msra.mxu0 0.0
    %4153 = vmatprep.subr.mxu0 0.0
    %4154 = vmatpush1.msra.mxu0 0.0
    %4155 = vmatprep.subr.mxu0 0.0
    %4156 = vmatpush1.msra.mxu0 0.0
    %4157 = vmatprep.subr.mxu0 0.0
    %4158 = vmatpush1.msra.mxu0 0.0
    %4159 = vmatprep.subr.mxu0 0.0
    %4160 = vmatpush1.msra.mxu0 0.0
    %4161 = vmatprep.subr.mxu0 0.0
    %4162 = vmatpush1.msra.mxu0 0.0
    %4163 = vmatprep.subr.mxu0 0.0
    %4164 = vmatpush1.msra.mxu0 0.0
    %4165 = vmatprep.subr.mxu0 0.0
    %4166 = vmatpush1.msra.mxu0 0.0
    %4167 = vmatprep.subr.mxu0 0.0
    %4168 = vmatpush1.msra.mxu0 0.0
    %4169 = vmatprep.subr.mxu0 0.0
    %4170 = vmatpush1.msra.mxu0 0.0
    %4171 = vmatprep.subr.mxu0 0.0
    %4172 = vmatpush1.msra.mxu0 0.0
    %4173 = vmatprep.subr.mxu0 0.0
    %4174 = vmatpush1.msra.mxu0 0.0
    %4175 = vmatprep.subr.mxu0 0.0
    %4176 = vmatpush1.msra.mxu0 0.0
    %4177 = vmatprep.subr.mxu0 0.0
    %4178 = vmatpush1.msra.mxu0 %v2459
    %4179 = vmatprep.subr.mxu0 0.0
    %4180 = vmatpush2.msra.mxu0 0.0
    %4181 = vmatprep.subr.mxu0 0.0
    %4182 = vmatpush2.msra.mxu0 0.0
    %4183 = vmatprep.subr.mxu0 0.0
    %4184 = vmatpush2.msra.mxu0 0.0
    %4185 = vmatprep.subr.mxu0 0.0
    %4186 = vmatpush2.msra.mxu0 0.0
    %4187 = vmatprep.subr.mxu0 0.0
    %4188 = vmatpush2.msra.mxu0 0.0
    %4189 = vmatprep.subr.mxu0 0.0
    %4190 = vmatpush2.msra.mxu0 0.0
    %4191 = vmatprep.subr.mxu0 0.0
    %4192 = vmatpush2.msra.mxu0 0.0
    %4193 = vmatprep.subr.mxu0 0.0
    %4194 = vmatpush2.msra.mxu0 0.0
    %4195 = vmatprep.subr.mxu0 0.0
    %4196 = vmatpush2.msra.mxu0 0.0
    %4197 = vmatprep.subr.mxu0 0.0
    %4198 = vmatpush2.msra.mxu0 0.0
    %4199 = vmatprep.subr.mxu0 0.0
    %4200 = vmatpush2.msra.mxu0 0.0
    %4201 = vmatprep.subr.mxu0 0.0
    %4202 = vmatpush2.msra.mxu0 0.0
    %4203 = vmatprep.subr.mxu0 0.0
    %4204 = vmatpush2.msra.mxu0 0.0
    %4205 = vmatprep.subr.mxu0 0.0
    %4206 = vmatpush2.msra.mxu0 0.0
    %4207 = vmatprep.subr.mxu0 0.0
    %4208 = vmatpush2.msra.mxu0 0.0
    %4209 = vmatprep.subr.mxu0 0.0
    %4210 = vmatpush2.msra.mxu0 0.0
    %4211 = vmatprep.mubr.f32.mxu0 0.0
    %4212 = vmatmul.mubr.f32.gmra.mxu0 %v4145
    %v4213 = vpop.f32.mrf.mxu0
    %v4214 = vadd.f32 0.0, %v4213
    %v4215 = vpop.f32.mrf.mxu0
    %4216 = vdwg.mxu0
    %v4218 = vsel %vm283, %v3691, 0
    %4220 = vmatprep.subr.mxu0 0.0
    %4221 = vmatpush1.msra.mxu0 0.0
    %4222 = vmatprep.subr.mxu0 0.0
    %4223 = vmatpush1.msra.mxu0 0.0
    %4224 = vmatprep.subr.mxu0 0.0
    %4225 = vmatpush1.msra.mxu0 0.0
    %4226 = vmatprep.subr.mxu0 0.0
    %4227 = vmatpush1.msra.mxu0 0.0
    %4228 = vmatprep.subr.mxu0 0.0
    %4229 = vmatpush1.msra.mxu0 0.0
    %4230 = vmatprep.subr.mxu0 0.0
    %4231 = vmatpush1.msra.mxu0 0.0
    %4232 = vmatprep.subr.mxu0 0.0
    %4233 = vmatpush1.msra.mxu0 0.0
    %4234 = vmatprep.subr.mxu0 0.0
    %4235 = vmatpush1.msra.mxu0 0.0
    %4236 = vmatprep.subr.mxu0 0.0
    %4237 = vmatpush1.msra.mxu0 0.0
    %4238 = vmatprep.subr.mxu0 0.0
    %4239 = vmatpush1.msra.mxu0 0.0
    %4240 = vmatprep.subr.mxu0 0.0
    %4241 = vmatpush1.msra.mxu0 0.0
    %4242 = vmatprep.subr.mxu0 0.0
    %4243 = vmatpush1.msra.mxu0 0.0
    %4244 = vmatprep.subr.mxu0 0.0
    %4245 = vmatpush1.msra.mxu0 0.0
    %4246 = vmatprep.subr.mxu0 0.0
    %4247 = vmatpush1.msra.mxu0 0.0
    %4248 = vmatprep.subr.mxu0 0.0
    %4249 = vmatpush1.msra.mxu0 0.0
    %4250 = vmatprep.subr.mxu0 0.0
    %4251 = vmatpush1.msra.mxu0 %v2460
    %4252 = vmatprep.subr.mxu0 0.0
    %4253 = vmatpush2.msra.mxu0 0.0
    %4254 = vmatprep.subr.mxu0 0.0
    %4255 = vmatpush2.msra.mxu0 0.0
    %4256 = vmatprep.subr.mxu0 0.0
    %4257 = vmatpush2.msra.mxu0 0.0
    %4258 = vmatprep.subr.mxu0 0.0
    %4259 = vmatpush2.msra.mxu0 0.0
    %4260 = vmatprep.subr.mxu0 0.0
    %4261 = vmatpush2.msra.mxu0 0.0
    %4262 = vmatprep.subr.mxu0 0.0
    %4263 = vmatpush2.msra.mxu0 0.0
    %4264 = vmatprep.subr.mxu0 0.0
    %4265 = vmatpush2.msra.mxu0 0.0
    %4266 = vmatprep.subr.mxu0 0.0
    %4267 = vmatpush2.msra.mxu0 0.0
    %4268 = vmatprep.subr.mxu0 0.0
    %4269 = vmatpush2.msra.mxu0 0.0
    %4270 = vmatprep.subr.mxu0 0.0
    %4271 = vmatpush2.msra.mxu0 0.0
    %4272 = vmatprep.subr.mxu0 0.0
    %4273 = vmatpush2.msra.mxu0 0.0
    %4274 = vmatprep.subr.mxu0 0.0
    %4275 = vmatpush2.msra.mxu0 0.0
    %4276 = vmatprep.subr.mxu0 0.0
    %4277 = vmatpush2.msra.mxu0 0.0
    %4278 = vmatprep.subr.mxu0 0.0
    %4279 = vmatpush2.msra.mxu0 0.0
    %4280 = vmatprep.subr.mxu0 0.0
    %4281 = vmatpush2.msra.mxu0 0.0
    %4282 = vmatprep.subr.mxu0 0.0
    %4283 = vmatpush2.msra.mxu0 0.0
    %4284 = vmatprep.mubr.f32.mxu0 0.0
    %4285 = vmatmul.mubr.f32.gmra.mxu0 %v4218
    %v4286 = vpop.f32.mrf.mxu0
    %v4287 = vadd.f32 0.0, %v4286
    %v4288 = vpop.f32.mrf.mxu0
    %4289 = vdwg.mxu0
    %v4291 = vsel %vm283, %v3770, 0
    %4293 = vmatprep.subr.mxu0 0.0
    %4294 = vmatpush1.msra.mxu0 0.0
    %4295 = vmatprep.subr.mxu0 0.0
    %4296 = vmatpush1.msra.mxu0 0.0
    %4297 = vmatprep.subr.mxu0 0.0
    %4298 = vmatpush1.msra.mxu0 0.0
    %4299 = vmatprep.subr.mxu0 0.0
    %4300 = vmatpush1.msra.mxu0 0.0
    %4301 = vmatprep.subr.mxu0 0.0
    %4302 = vmatpush1.msra.mxu0 0.0
    %4303 = vmatprep.subr.mxu0 0.0
    %4304 = vmatpush1.msra.mxu0 0.0
    %4305 = vmatprep.subr.mxu0 0.0
    %4306 = vmatpush1.msra.mxu0 0.0
    %4307 = vmatprep.subr.mxu0 0.0
    %4308 = vmatpush1.msra.mxu0 0.0
    %4309 = vmatprep.subr.mxu0 0.0
    %4310 = vmatpush1.msra.mxu0 0.0
    %4311 = vmatprep.subr.mxu0 0.0
    %4312 = vmatpush1.msra.mxu0 0.0
    %4313 = vmatprep.subr.mxu0 0.0
    %4314 = vmatpush1.msra.mxu0 0.0
    %4315 = vmatprep.subr.mxu0 0.0
    %4316 = vmatpush1.msra.mxu0 0.0
    %4317 = vmatprep.subr.mxu0 0.0
    %4318 = vmatpush1.msra.mxu0 0.0
    %4319 = vmatprep.subr.mxu0 0.0
    %4320 = vmatpush1.msra.mxu0 0.0
    %4321 = vmatprep.subr.mxu0 0.0
    %4322 = vmatpush1.msra.mxu0 0.0
    %4323 = vmatprep.subr.mxu0 0.0
    %4324 = vmatpush1.msra.mxu0 %v2461
    %4325 = vmatprep.subr.mxu0 0.0
    %4326 = vmatpush2.msra.mxu0 0.0
    %4327 = vmatprep.subr.mxu0 0.0
    %4328 = vmatpush2.msra.mxu0 0.0
    %4329 = vmatprep.subr.mxu0 0.0
    %4330 = vmatpush2.msra.mxu0 0.0
    %4331 = vmatprep.subr.mxu0 0.0
    %4332 = vmatpush2.msra.mxu0 0.0
    %4333 = vmatprep.subr.mxu0 0.0
    %4334 = vmatpush2.msra.mxu0 0.0
    %4335 = vmatprep.subr.mxu0 0.0
    %4336 = vmatpush2.msra.mxu0 0.0
    %4337 = vmatprep.subr.mxu0 0.0
    %4338 = vmatpush2.msra.mxu0 0.0
    %4339 = vmatprep.subr.mxu0 0.0
    %4340 = vmatpush2.msra.mxu0 0.0
    %4341 = vmatprep.subr.mxu0 0.0
    %4342 = vmatpush2.msra.mxu0 0.0
    %4343 = vmatprep.subr.mxu0 0.0
    %4344 = vmatpush2.msra.mxu0 0.0
    %4345 = vmatprep.subr.mxu0 0.0
    %4346 = vmatpush2.msra.mxu0 0.0
    %4347 = vmatprep.subr.mxu0 0.0
    %4348 = vmatpush2.msra.mxu0 0.0
    %4349 = vmatprep.subr.mxu0 0.0
    %4350 = vmatpush2.msra.mxu0 0.0
    %4351 = vmatprep.subr.mxu0 0.0
    %4352 = vmatpush2.msra.mxu0 0.0
    %4353 = vmatprep.subr.mxu0 0.0
    %4354 = vmatpush2.msra.mxu0 0.0
    %4355 = vmatprep.subr.mxu0 0.0
    %4356 = vmatpush2.msra.mxu0 0.0
    %4357 = vmatprep.mubr.f32.mxu0 0.0
    %4358 = vmatmul.mubr.f32.gmra.mxu0 %v4291
    %v4359 = vpop.f32.mrf.mxu0
    %v4360 = vadd.f32 0.0, %v4359
    %v4361 = vpop.f32.mrf.mxu0
    %4362 = vdwg.mxu0
    %v4364 = vsel %vm283, %v3849, 0
    %4366 = vmatprep.subr.mxu0 0.0
    %4367 = vmatpush1.msra.mxu0 0.0
    %4368 = vmatprep.subr.mxu0 0.0
    %4369 = vmatpush1.msra.mxu0 0.0
    %4370 = vmatprep.subr.mxu0 0.0
    %4371 = vmatpush1.msra.mxu0 0.0
    %4372 = vmatprep.subr.mxu0 0.0
    %4373 = vmatpush1.msra.mxu0 0.0
    %4374 = vmatprep.subr.mxu0 0.0
    %4375 = vmatpush1.msra.mxu0 0.0
    %4376 = vmatprep.subr.mxu0 0.0
    %4377 = vmatpush1.msra.mxu0 0.0
    %4378 = vmatprep.subr.mxu0 0.0
    %4379 = vmatpush1.msra.mxu0 0.0
    %4380 = vmatprep.subr.mxu0 0.0
    %4381 = vmatpush1.msra.mxu0 0.0
    %4382 = vmatprep.subr.mxu0 0.0
    %4383 = vmatpush1.msra.mxu0 0.0
    %4384 = vmatprep.subr.mxu0 0.0
    %4385 = vmatpush1.msra.mxu0 0.0
    %4386 = vmatprep.subr.mxu0 0.0
    %4387 = vmatpush1.msra.mxu0 0.0
    %4388 = vmatprep.subr.mxu0 0.0
    %4389 = vmatpush1.msra.mxu0 0.0
    %4390 = vmatprep.subr.mxu0 0.0
    %4391 = vmatpush1.msra.mxu0 0.0
    %4392 = vmatprep.subr.mxu0 0.0
    %4393 = vmatpush1.msra.mxu0 0.0
    %4394 = vmatprep.subr.mxu0 0.0
    %4395 = vmatpush1.msra.mxu0 0.0
    %4396 = vmatprep.subr.mxu0 0.0
    %4397 = vmatpush1.msra.mxu0 %v2462
    %4398 = vmatprep.subr.mxu0 0.0
    %4399 = vmatpush2.msra.mxu0 0.0
    %4400 = vmatprep.subr.mxu0 0.0
    %4401 = vmatpush2.msra.mxu0 0.0
    %4402 = vmatprep.subr.mxu0 0.0
    %4403 = vmatpush2.msra.mxu0 0.0
    %4404 = vmatprep.subr.mxu0 0.0
    %4405 = vmatpush2.msra.mxu0 0.0
    %4406 = vmatprep.subr.mxu0 0.0
    %4407 = vmatpush2.msra.mxu0 0.0
    %4408 = vmatprep.subr.mxu0 0.0
    %4409 = vmatpush2.msra.mxu0 0.0
    %4410 = vmatprep.subr.mxu0 0.0
    %4411 = vmatpush2.msra.mxu0 0.0
    %4412 = vmatprep.subr.mxu0 0.0
    %4413 = vmatpush2.msra.mxu0 0.0
    %4414 = vmatprep.subr.mxu0 0.0
    %4415 = vmatpush2.msra.mxu0 0.0
    %4416 = vmatprep.subr.mxu0 0.0
    %4417 = vmatpush2.msra.mxu0 0.0
    %4418 = vmatprep.subr.mxu0 0.0
    %4419 = vmatpush2.msra.mxu0 0.0
    %4420 = vmatprep.subr.mxu0 0.0
    %4421 = vmatpush2.msra.mxu0 0.0
    %4422 = vmatprep.subr.mxu0 0.0
    %4423 = vmatpush2.msra.mxu0 0.0
    %4424 = vmatprep.subr.mxu0 0.0
    %4425 = vmatpush2.msra.mxu0 0.0
    %4426 = vmatprep.subr.mxu0 0.0
    %4427 = vmatpush2.msra.mxu0 0.0
    %4428 = vmatprep.subr.mxu0 0.0
    %4429 = vmatpush2.msra.mxu0 0.0
    %4430 = vmatprep.mubr.f32.mxu0 0.0
    %4431 = vmatmul.mubr.f32.gmra.mxu0 %v4364
    %v4432 = vpop.f32.mrf.mxu0
    %v4433 = vadd.f32 0.0, %v4432
    %v4434 = vpop.f32.mrf.mxu0
    %4435 = vdwg.mxu0
    %v4436 = vsel %vm130, %v3922, 0.0
    %v4437 = vsel %vm130, %v3995, 0.0
    %v4438 = vadd.f32 %v4436, %v4437
    %v4439 = vsel %vm130, %v4068, 0.0
    %v4440 = vadd.f32 %v4438, %v4439
    %v4441 = vsel %vm130, %v4141, 0.0
    %v4442 = vadd.f32 %v4440, %v4441
    %v4443 = vsel %vm130, %v4214, 0.0
    %v4444 = vsel %vm130, %v4287, 0.0
    %v4445 = vadd.f32 %v4443, %v4444
    %v4446 = vsel %vm130, %v4360, 0.0
    %v4447 = vadd.f32 %v4445, %v4446
    %v4448 = vsel %vm130, %v4433, 0.0
    %v4449 = vadd.f32 %v4447, %v4448
    %v4450 = vlaneseq
    %v4451 = vshrl.u32 %v4450, 7
    %v4452 = vsub.s32 0, %v4451
    %v4453 = vrot.slane %v129, %v4452
    %v4454 = vadd.f32 %v4442, %v4453
    %v4455 = vadd.f32 %v4449, %v4453
    %v4456 = vadd.f32 %v2208, %v4454
    %v4457 = vadd.f32 %v2209, %v4455
    %v4458 = vsel %vm130, %v4456, 0.0
    %4459 = vadd.xlane.f32.xlu0 %v4458
    %v4460 = vpop.xlane.xlu0 %4459
    %v4461 = vsel %vm130, %v4457, 0.0
    %4462 = vadd.xlane.f32.xlu0 %v4461
    %v4463 = vpop.xlane.xlu0 %4462
    %v4464 = vmul.f32 %v4460, %v137
    %v4465 = vmul.f32 %v4463, %v137
    %v4466 = vsub.f32 %v4456, %v4464
    %v4467 = vsub.f32 %v4457, %v4465
    %v4468 = vmul.f32 %v4466, %v4466
    %v4469 = vmul.f32 %v4467, %v4467
    %v4470 = vsel %vm130, %v4468, 0.0
    %4471 = vadd.xlane.f32.xlu0 %v4470
    %v4472 = vpop.xlane.xlu0 %4471
    %v4473 = vsel %vm130, %v4469, 0.0
    %4474 = vadd.xlane.f32.xlu0 %v4473
    %v4475 = vpop.xlane.xlu0 %4474
    %v4476 = vmul.f32 %v4472, %v137
    %v4477 = vmul.f32 %v4475, %v137
    %v4478 = vadd.f32 %v4476, 1e-05
    %v4479 = vadd.f32 %v4477, 1e-05
    %v4480 = vrsqrt.pop %v4478
    %v4481 = vrsqrt.pop %v4479
    %v4482 = vmul.f32 %v4466, %v4480
    %v4483 = vmul.f32 %v4467, %v4481
    %v4484 = vmul.f32 %v4482, %v2239
    %v4485 = vmul.f32 %v4483, %v2239
    %v4486 = vadd.f32 %v4484, %v2245
    %v4487 = vadd.f32 %v4485, %v2245
    %v4488 = vld [vmem:[#allocation11] sm:$0xff]
    %v4489 = vld [vmem:[#allocation11 + $0x8] sm:$0xff]
    %v4490 = vld [vmem:[#allocation11 + $0x10] sm:$0xff]
    %v4491 = vld [vmem:[#allocation11 + $0x18] sm:$0xff]
    %v4492 = vlaneseq
    %v4493 = vshrl.u32 %v4492, 7
    %v4494 = vsub.s32 1, %v4493
    %v4495 = vrot.slane %v129, %v4494
    %v4497 = vsel %vm130, %v4486, 0
    %v4500 = vsel %vm130, %v4487, 0
    %4502 = vmatprep.subr.mxu0 0.0
    %4503 = vmatpush1.msra.mxu0 0.0
    %4504 = vmatprep.subr.mxu0 0.0
    %4505 = vmatpush1.msra.mxu0 0.0
    %4506 = vmatprep.subr.mxu0 0.0
    %4507 = vmatpush1.msra.mxu0 0.0
    %4508 = vmatprep.subr.mxu0 0.0
    %4509 = vmatpush1.msra.mxu0 0.0
    %4510 = vmatprep.subr.mxu0 0.0
    %4511 = vmatpush1.msra.mxu0 0.0
    %4512 = vmatprep.subr.mxu0 0.0
    %4513 = vmatpush1.msra.mxu0 0.0
    %4514 = vmatprep.subr.mxu0 0.0
    %4515 = vmatpush1.msra.mxu0 0.0
    %4516 = vmatprep.subr.mxu0 0.0
    %4517 = vmatpush1.msra.mxu0 0.0
    %4518 = vmatprep.subr.mxu0 0.0
    %4519 = vmatpush1.msra.mxu0 0.0
    %4520 = vmatprep.subr.mxu0 0.0
    %4521 = vmatpush1.msra.mxu0 0.0
    %4522 = vmatprep.subr.mxu0 0.0
    %4523 = vmatpush1.msra.mxu0 0.0
    %4524 = vmatprep.subr.mxu0 0.0
    %4525 = vmatpush1.msra.mxu0 0.0
    %4526 = vmatprep.subr.mxu0 0.0
    %4527 = vmatpush1.msra.mxu0 %v4491
    %4528 = vmatprep.subr.mxu0 0.0
    %4529 = vmatpush1.msra.mxu0 %v4490
    %4530 = vmatprep.subr.mxu0 0.0
    %4531 = vmatpush1.msra.mxu0 %v4489
    %4532 = vmatprep.subr.mxu0 0.0
    %4533 = vmatpush1.msra.mxu0 %v4488
    %4534 = vmatprep.subr.mxu0 0.0
    %4535 = vmatpush2.msra.mxu0 0.0
    %4536 = vmatprep.subr.mxu0 0.0
    %4537 = vmatpush2.msra.mxu0 0.0
    %4538 = vmatprep.subr.mxu0 0.0
    %4539 = vmatpush2.msra.mxu0 0.0
    %4540 = vmatprep.subr.mxu0 0.0
    %4541 = vmatpush2.msra.mxu0 0.0
    %4542 = vmatprep.subr.mxu0 0.0
    %4543 = vmatpush2.msra.mxu0 0.0
    %4544 = vmatprep.subr.mxu0 0.0
    %4545 = vmatpush2.msra.mxu0 0.0
    %4546 = vmatprep.subr.mxu0 0.0
    %4547 = vmatpush2.msra.mxu0 0.0
    %4548 = vmatprep.subr.mxu0 0.0
    %4549 = vmatpush2.msra.mxu0 0.0
    %4550 = vmatprep.subr.mxu0 0.0
    %4551 = vmatpush2.msra.mxu0 0.0
    %4552 = vmatprep.subr.mxu0 0.0
    %4553 = vmatpush2.msra.mxu0 0.0
    %4554 = vmatprep.subr.mxu0 0.0
    %4555 = vmatpush2.msra.mxu0 0.0
    %4556 = vmatprep.subr.mxu0 0.0
    %4557 = vmatpush2.msra.mxu0 0.0
    %4558 = vmatprep.subr.mxu0 0.0
    %4559 = vmatpush2.msra.mxu0 0.0
    %4560 = vmatprep.subr.mxu0 0.0
    %4561 = vmatpush2.msra.mxu0 0.0
    %4562 = vmatprep.subr.mxu0 0.0
    %4563 = vmatpush2.msra.mxu0 0.0
    %4564 = vmatprep.subr.mxu0 0.0
    %4565 = vmatpush2.msra.mxu0 0.0
    %4566 = vmatprep.mubr.f32.mxu0 0.0
    %4567 = vmatmul.mubr.f32.gmra.mxu0 %v4497
    %v4568 = vpop.f32.mrf.mxu0
    %v4569 = vadd.f32 %v4495, %v4568
    %v4570 = vpop.f32.mrf.mxu0
    %4571 = vmatprep.mubr.f32.mxu0 0.0
    %4572 = vmatmul.mubr.f32.gmra.mxu0 %v4500
    %v4573 = vpop.f32.mrf.mxu0
    %v4574 = vadd.f32 %v4495, %v4573
    %v4575 = vpop.f32.mrf.mxu0
    %4576 = vdwg.mxu0
    %v4577 = vmax.f32 %v4569, 0.0
    %v4578 = vmax.f32 %v4574, 0.0
    %v4579 = vld [vmem:[%s8] sm:$0xff]
    %v4580 = vld [vmem:[%s8 + $0x8] sm:$0xff]
    %v4581 = vld [vmem:[%s8 + $0x10] sm:$0xff]
    %v4582 = vld [vmem:[%s8 + $0x18] sm:$0xff]
    %v4583 = vld [vmem:[%s8 + $0x20] sm:$0xff]
    %v4584 = vld [vmem:[%s8 + $0x28] sm:$0xff]
    %v4585 = vld [vmem:[%s8 + $0x30] sm:$0xff]
    %v4586 = vld [vmem:[%s8 + $0x38] sm:$0xff]
    %vm4587 = vcmask 523264
    %v4589 = vsel %vm4587, %v4577, 0
    %v4592 = vsel %vm4587, %v4578, 0
    %4594 = vmatprep.subr.mxu0 0.0
    %4595 = vmatpush1.msra.mxu0 0.0
    %4596 = vmatprep.subr.mxu0 0.0
    %4597 = vmatpush1.msra.mxu0 0.0
    %4598 = vmatprep.subr.mxu0 0.0
    %4599 = vmatpush1.msra.mxu0 0.0
    %4600 = vmatprep.subr.mxu0 0.0
    %4601 = vmatpush1.msra.mxu0 0.0
    %4602 = vmatprep.subr.mxu0 0.0
    %4603 = vmatpush1.msra.mxu0 0.0
    %4604 = vmatprep.subr.mxu0 0.0
    %4605 = vmatpush1.msra.mxu0 0.0
    %4606 = vmatprep.subr.mxu0 0.0
    %4607 = vmatpush1.msra.mxu0 0.0
    %4608 = vmatprep.subr.mxu0 0.0
    %4609 = vmatpush1.msra.mxu0 0.0
    %4610 = vmatprep.subr.mxu0 0.0
    %4611 = vmatpush1.msra.mxu0 %v4586
    %4612 = vmatprep.subr.mxu0 0.0
    %4613 = vmatpush1.msra.mxu0 %v4585
    %4614 = vmatprep.subr.mxu0 0.0
    %4615 = vmatpush1.msra.mxu0 %v4584
    %4616 = vmatprep.subr.mxu0 0.0
    %4617 = vmatpush1.msra.mxu0 %v4583
    %4618 = vmatprep.subr.mxu0 0.0
    %4619 = vmatpush1.msra.mxu0 %v4582
    %4620 = vmatprep.subr.mxu0 0.0
    %4621 = vmatpush1.msra.mxu0 %v4581
    %4622 = vmatprep.subr.mxu0 0.0
    %4623 = vmatpush1.msra.mxu0 %v4580
    %4624 = vmatprep.subr.mxu0 0.0
    %4625 = vmatpush1.msra.mxu0 %v4579
    %4626 = vmatprep.subr.mxu0 0.0
    %4627 = vmatpush2.msra.mxu0 0.0
    %4628 = vmatprep.subr.mxu0 0.0
    %4629 = vmatpush2.msra.mxu0 0.0
    %4630 = vmatprep.subr.mxu0 0.0
    %4631 = vmatpush2.msra.mxu0 0.0
    %4632 = vmatprep.subr.mxu0 0.0
    %4633 = vmatpush2.msra.mxu0 0.0
    %4634 = vmatprep.subr.mxu0 0.0
    %4635 = vmatpush2.msra.mxu0 0.0
    %4636 = vmatprep.subr.mxu0 0.0
    %4637 = vmatpush2.msra.mxu0 0.0
    %4638 = vmatprep.subr.mxu0 0.0
    %4639 = vmatpush2.msra.mxu0 0.0
    %4640 = vmatprep.subr.mxu0 0.0
    %4641 = vmatpush2.msra.mxu0 0.0
    %4642 = vmatprep.subr.mxu0 0.0
    %4643 = vmatpush2.msra.mxu0 0.0
    %4644 = vmatprep.subr.mxu0 0.0
    %4645 = vmatpush2.msra.mxu0 0.0
    %4646 = vmatprep.subr.mxu0 0.0
    %4647 = vmatpush2.msra.mxu0 0.0
    %4648 = vmatprep.subr.mxu0 0.0
    %4649 = vmatpush2.msra.mxu0 0.0
    %4650 = vmatprep.subr.mxu0 0.0
    %4651 = vmatpush2.msra.mxu0 0.0
    %4652 = vmatprep.subr.mxu0 0.0
    %4653 = vmatpush2.msra.mxu0 0.0
    %4654 = vmatprep.subr.mxu0 0.0
    %4655 = vmatpush2.msra.mxu0 0.0
    %4656 = vmatprep.subr.mxu0 0.0
    %4657 = vmatpush2.msra.mxu0 0.0
    %4658 = vmatprep.mubr.f32.mxu0 0.0
    %4659 = vmatmul.mubr.f32.gmra.mxu0 %v4589
    %v4660 = vpop.f32.mrf.mxu0
    %v4661 = vadd.f32 0.0, %v4660
    %v4662 = vpop.f32.mrf.mxu0
    %4663 = vmatprep.mubr.f32.mxu0 0.0
    %4664 = vmatmul.mubr.f32.gmra.mxu0 %v4592
    %v4665 = vpop.f32.mrf.mxu0
    %v4666 = vadd.f32 0.0, %v4665
    %v4667 = vpop.f32.mrf.mxu0
    %4668 = vdwg.mxu0
    %v4669 = vadd.f32 %v4456, %v4661
    %v4670 = vadd.f32 %v4457, %v4666
    %v4671 = vlaneseq
    %v4672 = vshrl.u32 %v4671, 7
    %v4673 = vsub.s32 2, %v4672
    %v4674 = vrot.slane %v129, %v4673
    %v4675 = vadd.f32 %v4669, %v4674
    %v4676 = vadd.f32 %v4670, %v4674
    %4677 = vst.msk [vmem:[#allocation13] sm:$0xff] %vm130, %v4675
    %4678 = vst.msk [vmem:[#allocation13 + $0x8] sm:$0xff] %vm130, %v4676
    // Predicated region
    $region66: #{tpu_custom_call.1} parent=1 // pred_check
      _
    $region67: #{tpu_custom_call.1} parent=1 // pred_check_branch
      %4680 = sbr.rel (0) target = $region69
    $region68: #{tpu_custom_call.1} parent=1 // pred_region
      %s4682 = ssub.s32 256, 256
      %4683 = vsyncadd [#allocation4], %s4682
      %s4684 = sshll.u32 [#allocation13], 4
      %s4685 = int_to_ptr.vmem [resolvable:$true] %s4684
      %4690 = dma.vmem_to_hbm [thread:$0]  %s4685, 256, %s10, [#allocation4], 128, 128, 8
    $region69: #{tpu_custom_call.1} parent=1 // pred_fallthru
      _
    // Predicated region
    $region70: #{tpu_custom_call.1} parent=1 // pred_check
      _
    $region71: #{tpu_custom_call.1} parent=1 // pred_check_branch
      %4692 = sbr.rel (0) target = $region73
    $region72: #{tpu_custom_call.1} parent=1 // pred_region
      %4693 = dma.done [#allocation4], 256
    $region73: #{tpu_custom_call.1} parent=1 // pred_fallthru
      _
    %4694 = vsyncpa [#allocation3], 1
    %4695 = vsyncpa [#allocation6], 1
    %4696 = vsyncpa [#allocation9], 1
    %4697 = vsyncpa [#allocation12], 1
    %4698 = vsyncpa [#allocation4], 1

</llo_original>
